<compile_context>
chip_gen: v7x
topology: tpu7x:2x2x1
jax: 0.10.0
libtpu: 0.0.40
codegen_flags: <defaults>
</compile_context>

<pallas_src>
import jax
import jax.numpy as jnp
from jax.experimental import pallas as pl
from jax.experimental.pallas import tpu as pltpu


# -----------------------------------------------------------------------------
# Fused forward kernel: one grid step == one batch element.
# -----------------------------------------------------------------------------
def mnist_fused_kernel(a1_ref, w1_ref, b1_ref, w2_ref, b2_ref,
                       wf1_ref, bf1_ref, wf2_ref, bf2_ref,
                       o_ref,
                       p1_ref, a2_ref, p2_ref):
    """Whole MnistNet forward for one image.

    a1:  (768, 25)  conv1 im2col, rows = 4 pool parities x (12 x 16-padded) pixels
    w1:  (25, 10)   conv1 weight (taps x Cout)          b1: (1, 10)
    w2:  (250, 20)  conv2 weight ((kh,kw,ci) x Cout)    b2: (1, 20)
    wf1: (320, 50)  fc1 weight, rows pre-permuted to NHWC flatten order
    wf2: (50, 10)   fc2 weight                          bf1/bf2: (1, 50)/(1, 10)
    o:   (1, 10)    log-probabilities
    scratch: p1 (12,16,10) pooled conv1 map, a2 (64,250) conv2 im2col, p2 (1,320)
    """
    f32 = jnp.float32

    # ---- conv1 -> maxpool 2x2 -> relu : 28x28 -> 24x24 -> 12x12 --------------
    y1 = jnp.dot(a1_ref[...], w1_ref[...], preferred_element_type=f32)   # (768, 10)
    y1 = jnp.max(y1.reshape(4, 192, 10), axis=0)                         # pool over parity
    p1 = jnp.maximum(y1 + b1_ref[...], 0.0)                              # bias + relu
    # pooled 12x12x10 feature map, columns padded to 16 (padding never read)
    p1_ref[...] = p1.reshape(12, 16, 10)

    # ---- conv2 im2col assembled in VMEM + single K=250 matmul ----------------
    for kh in range(5):
        for kw in range(5):
            t = kh * 5 + kw
            slab = p1_ref[kh:kh + 8, kw:kw + 8, :].reshape(64, 10)       # rows = ho*8+wo
            a2_ref[:, t * 10:(t + 1) * 10] = slab
    y2 = jnp.dot(a2_ref[...], w2_ref[...], preferred_element_type=f32)   # (64, 20)

    # ---- maxpool 2x2 -> relu : 8x8 -> 4x4 -------------------------------------
    y2 = jnp.max(y2.reshape(4, 2, 8, 20), axis=1)                        # pool over rows (ho)
    y2 = jnp.maximum(y2 + b2_ref[...], 0.0)                              # bias + relu (commutes with max)
    # pool over columns (wo) and flatten (NHWC order) into a (1, 320) row
    for s in range(16):
        p, q = s // 4, s % 4
        v = jnp.maximum(y2[p, 2 * q:2 * q + 1, :], y2[p, 2 * q + 1:2 * q + 2, :])  # (1, 20)
        p2_ref[:, s * 20:(s + 1) * 20] = v

    # ---- fc1 -> relu -> (dropout: identity) -> fc2 -> log_softmax ------------
    # TODO(synk): F.dropout / Dropout2d(training=True) not implemented; inference path only.
    h = jnp.dot(p2_ref[...], wf1_ref[...], preferred_element_type=f32) + bf1_ref[...]
    h = jnp.maximum(h, 0.0)                                              # (1, 50)
    z = jnp.dot(h, wf2_ref[...], preferred_element_type=f32) + bf2_ref[...]  # (1, 10)
    m = jnp.max(z, axis=-1, keepdims=True)
    lse = m + jnp.log(jnp.sum(jnp.exp(z - m), axis=-1, keepdims=True))
    o_ref[...] = z - lse


# -----------------------------------------------------------------------------
# Wrapper glue: conv1 im2col (input prep only), weight re-layout, pallas_call.
# -----------------------------------------------------------------------------
def _conv1_pool_im2col(x):
    """x: (B, 28, 28) -> (B, 768, 25) pool-parity-stacked im2col for conv1.

    Row layout: pool parity (di, dj) major (4 blocks of 192), then pooled row i
    in [0, 12), then pooled col j in [0, 16) (j >= 12 is zero padding so the
    in-kernel reshape to (12, 16, 10) is a free, tile-aligned relabel).
    Column = kh * 5 + kw (Cin == 1), matching w_conv1.reshape(10, 25).
    """
    b = x.shape[0]
    blocks = []
    for di in range(2):
        for dj in range(2):
            cols = []
            for kh in range(5):
                for kw in range(5):
                    r0, c0 = di + kh, dj + kw
                    cols.append(x[:, r0:r0 + 23:2, c0:c0 + 23:2])        # (B, 12, 12)
            patch = jnp.stack(cols, axis=-1)                             # (B, 12, 12, 25)
            patch = jnp.pad(patch, ((0, 0), (0, 0), (0, 4), (0, 0)))     # (B, 12, 16, 25)
            blocks.append(patch.reshape(b, 192, 25))
    return jnp.concatenate(blocks, axis=1)                               # (B, 768, 25)


def _prep_weights(params):
    """Re-layout PyTorch-style parameters for the fused kernel (done once)."""
    w1 = params["w_conv1"].reshape(10, 25).T                             # (25, 10)
    b1 = params["b_conv1"].reshape(1, 10)
    # conv2 im2col columns are ordered (kh, kw, ci)
    w2 = jnp.transpose(params["w_conv2"], (2, 3, 1, 0)).reshape(250, 20)
    b2 = params["b_conv2"].reshape(1, 20)
    # torch flatten index = c*16 + (h*4 + w); kernel flatten index = (h*4 + w)*20 + c
    wf1 = jnp.transpose(params["w_fc1"].reshape(50, 20, 16), (2, 1, 0)).reshape(320, 50)
    bf1 = params["b_fc1"].reshape(1, 50)
    wf2 = params["w_fc2"].T                                              # (50, 10)
    bf2 = params["b_fc2"].reshape(1, 10)
    return w1, b1, w2, b2, wf1, bf1, wf2, bf2


def mnist_net_forward(params, x_nchw):
    b = x_nchw.shape[0]
    x = x_nchw.reshape(b, 28, 28).astype(jnp.float32)                    # Cin == 1
    a1 = _conv1_pool_im2col(x)                                           # (B, 768, 25)
    w1, b1, w2, b2, wf1, bf1, wf2, bf2 = _prep_weights(params)

    def _wspec(shape):
        return pl.BlockSpec(shape, lambda i: (0,) * len(shape))

    out = pl.pallas_call(
        mnist_fused_kernel,
        out_shape=jax.ShapeDtypeStruct((b, 1, 10), jnp.float32),
        grid=(b,),
        in_specs=[
            pl.BlockSpec((None, 768, 25), lambda i: (i, 0, 0)),          # per-image im2col
            _wspec((25, 10)), _wspec((1, 10)),
            _wspec((250, 20)), _wspec((1, 20)),
            _wspec((320, 50)), _wspec((1, 50)),
            _wspec((50, 10)), _wspec((1, 10)),
        ],
        out_specs=pl.BlockSpec((None, 1, 10), lambda i: (i, 0, 0)),
        scratch_shapes=[
            pltpu.VMEM((12, 16, 10), jnp.float32),   # pooled conv1 feature map
            pltpu.VMEM((64, 250), jnp.float32),      # conv2 im2col operand
            pltpu.VMEM((1, 320), jnp.float32),       # flattened pooled conv2 features
        ],
        compiler_params=pltpu.CompilerParams(
            dimension_semantics=("parallel",)),
    )(a1, w1, b1, w2, b2, wf1, bf1, wf2, bf2)
    return out.reshape(b, 10)                                            # (B, 10) log-probs


# -----------------------------------------------------------------------------
# Pure-JAX reference (eval-mode semantics) for a numerical cross-check.
# -----------------------------------------------------------------------------
def reference_forward(params, x_nchw):
    dn = ("NCHW", "OIHW", "NCHW")
    y = jax.lax.conv_general_dilated(x_nchw, params["w_conv1"], (1, 1), "VALID",
                                     dimension_numbers=dn)
    y = y + params["b_conv1"][None, :, None, None]
    y = jax.lax.reduce_window(y, -jnp.inf, jax.lax.max, (1, 1, 2, 2), (1, 1, 2, 2), "VALID")
    y = jnp.maximum(y, 0.0)
    y = jax.lax.conv_general_dilated(y, params["w_conv2"], (1, 1), "VALID",
                                     dimension_numbers=dn)
    y = y + params["b_conv2"][None, :, None, None]
    y = jax.lax.reduce_window(y, -jnp.inf, jax.lax.max, (1, 1, 2, 2), (1, 1, 2, 2), "VALID")
    y = jnp.maximum(y, 0.0)
    y = y.reshape(y.shape[0], 320)
    y = jnp.maximum(y @ params["w_fc1"].T + params["b_fc1"], 0.0)
    z = y @ params["w_fc2"].T + params["b_fc2"]
    return jax.nn.log_softmax(z, axis=-1)


def init_params(key):
    ks = jax.random.split(key, 8)
    return {
        "w_conv1": jax.random.normal(ks[0], (10, 1, 5, 5), jnp.float32) * 0.2,
        "b_conv1": jax.random.normal(ks[1], (10,), jnp.float32) * 0.1,
        "w_conv2": jax.random.normal(ks[2], (20, 10, 5, 5), jnp.float32) * 0.1,
        "b_conv2": jax.random.normal(ks[3], (20,), jnp.float32) * 0.1,
        "w_fc1":   jax.random.normal(ks[4], (50, 320), jnp.float32) * 0.1,
        "b_fc1":   jax.random.normal(ks[5], (50,), jnp.float32) * 0.1,
        "w_fc2":   jax.random.normal(ks[6], (10, 50), jnp.float32) * 0.2,
        "b_fc2":   jax.random.normal(ks[7], (10,), jnp.float32) * 0.1,
    }


if __name__ == "__main__":
    key = jax.random.PRNGKey(0)
    k_x, k_p = jax.random.split(key)
    x = jax.random.normal(k_x, (2, 1, 28, 28), jnp.float32)              # NCHW MNIST-sized
    params = init_params(k_p)

    out = jax.block_until_ready(jax.jit(mnist_net_forward)(params, x))

    assert out.shape == (2, 10), out.shape
    assert bool(jnp.all(jnp.isfinite(out)))
    # rows of log_softmax should sum (in prob space) to ~1
    assert bool(jnp.allclose(jnp.sum(jnp.exp(out), axis=1), 1.0, atol=1e-4))

    ref = jax.block_until_ready(jax.jit(reference_forward)(params, x))
    assert bool(jnp.allclose(out, ref, atol=1e-1)), float(jnp.max(jnp.abs(out - ref)))

    print("KERNEL_OK")
</pallas_src>

<mosaic_0001>
module attributes {stable_mosaic.version = 11 : i64} {
  func.func @mnist_fused_kernel(%arg0: i32, %arg1: memref<1x768x25xf32, #tpu.memory_space<vmem>>, %arg2: memref<25x10xf32, #tpu.memory_space<vmem>>, %arg3: memref<1x10xf32, #tpu.memory_space<vmem>>, %arg4: memref<250x20xf32, #tpu.memory_space<vmem>>, %arg5: memref<1x20xf32, #tpu.memory_space<vmem>>, %arg6: memref<320x50xf32, #tpu.memory_space<vmem>>, %arg7: memref<1x50xf32, #tpu.memory_space<vmem>>, %arg8: memref<50x10xf32, #tpu.memory_space<vmem>>, %arg9: memref<1x10xf32, #tpu.memory_space<vmem>>, %arg10: memref<1x1x10xf32, #tpu.memory_space<vmem>>, %arg11: memref<12x16x10xf32, #tpu.memory_space<vmem>>, %arg12: memref<64x250xf32, #tpu.memory_space<vmem>>, %arg13: memref<1x320xf32, #tpu.memory_space<vmem>>) attributes {dimension_semantics = [#tpu.dimension_semantics<parallel>], iteration_bounds = array<i64: 2>, scalar_prefetch = 0 : i64, scratch_operands = 3 : i64, tpu.core_type = #tpu.core_type<tc>, window_params = [{transform_indices = @transform_0, window_bounds = array<i64: 1, 768, 25>}, {pipeline_mode = #tpu.pipeline_mode<synchronous>, transform_indices = @transform_1, window_bounds = array<i64: 25, 10>}, {pipeline_mode = #tpu.pipeline_mode<synchronous>, transform_indices = @transform_2, window_bounds = array<i64: 1, 10>}, {pipeline_mode = #tpu.pipeline_mode<synchronous>, transform_indices = @transform_3, window_bounds = array<i64: 250, 20>}, {pipeline_mode = #tpu.pipeline_mode<synchronous>, transform_indices = @transform_4, window_bounds = array<i64: 1, 20>}, {pipeline_mode = #tpu.pipeline_mode<synchronous>, transform_indices = @transform_5, window_bounds = array<i64: 320, 50>}, {pipeline_mode = #tpu.pipeline_mode<synchronous>, transform_indices = @transform_6, window_bounds = array<i64: 1, 50>}, {pipeline_mode = #tpu.pipeline_mode<synchronous>, transform_indices = @transform_7, window_bounds = array<i64: 50, 10>}, {pipeline_mode = #tpu.pipeline_mode<synchronous>, transform_indices = @transform_8, window_bounds = array<i64: 1, 10>}, {transform_indices = @transform_9, window_bounds = array<i64: 1, 1, 10>}]} {
    %c0 = arith.constant 0 : index
    %c0_0 = arith.constant 0 : index
    %c0_1 = arith.constant 0 : index
    %0 = vector.load %arg1[%c0, %c0_0, %c0_1] : memref<1x768x25xf32, #tpu.memory_space<vmem>>, vector<1x768x25xf32>
    %1 = vector.shape_cast %0 : vector<1x768x25xf32> to vector<768x25xf32>
    %c0_2 = arith.constant 0 : index
    %c0_3 = arith.constant 0 : index
    %2 = vector.load %arg2[%c0_2, %c0_3] : memref<25x10xf32, #tpu.memory_space<vmem>>, vector<25x10xf32>
    %cst = arith.constant dense<0.000000e+00> : vector<768x10xf32>
    %3 = tpu.matmul %1, %2, %cst {dimension_numbers = #tpu.dot_dimension_numbers<[1], [0], [0], [1], [0, 0, 1, 1], [], []>} : vector<768x25xf32>, vector<25x10xf32>, vector<768x10xf32> -> vector<768x10xf32>
    %4 = vector.shape_cast %3 : vector<768x10xf32> to vector<4x192x10xf32>
    %cst_4 = arith.constant dense<0xFF800000> : vector<192x10xf32>
    %5 = vector.multi_reduction <maximumf>, %4, %cst_4 [0] : vector<4x192x10xf32> to vector<192x10xf32>
    %c0_5 = arith.constant 0 : index
    %c0_6 = arith.constant 0 : index
    %6 = vector.load %arg3[%c0_5, %c0_6] : memref<1x10xf32, #tpu.memory_space<vmem>>, vector<1x10xf32>
    %7 = vector.broadcast %6 : vector<1x10xf32> to vector<192x10xf32>
    %8 = arith.addf %5, %7 : vector<192x10xf32>
    %cst_7 = arith.constant 0.000000e+00 : f32
    %9 = vector.broadcast %cst_7 : f32 to vector<192x10xf32>
    %10 = arith.maximumf %8, %9 : vector<192x10xf32>
    %11 = vector.shape_cast %10 : vector<192x10xf32> to vector<12x16x10xf32>
    %c0_8 = arith.constant 0 : index
    %c0_9 = arith.constant 0 : index
    %c0_10 = arith.constant 0 : index
    %12 = vector.load %arg11[%c0_8, %c0_9, %c0_10] : memref<12x16x10xf32, #tpu.memory_space<vmem>>, vector<12x16x10xf32>
    tpu.vector_store %arg11[%c0_8, %c0_9, %c0_10], %11 {strides = array<i32>} : memref<12x16x10xf32, #tpu.memory_space<vmem>>, vector<12x16x10xf32>,
    %c0_11 = arith.constant 0 : index
    %c0_12 = arith.constant 0 : index
    %c0_13 = arith.constant 0 : index
    %13 = vector.load %arg11[%c0_11, %c0_12, %c0_13] : memref<12x16x10xf32, #tpu.memory_space<vmem>>, vector<8x8x10xf32>
    %14 = vector.shape_cast %13 : vector<8x8x10xf32> to vector<64x10xf32>
    %c0_14 = arith.constant 0 : index
    %c0_15 = arith.constant 0 : index
    %15 = vector.load %arg12[%c0_14, %c0_15] : memref<64x250xf32, #tpu.memory_space<vmem>>, vector<64x10xf32>
    tpu.vector_store %arg12[%c0_14, %c0_15], %14 {strides = array<i32>} : memref<64x250xf32, #tpu.memory_space<vmem>>, vector<64x10xf32>,
    %c0_16 = arith.constant 0 : index
    %c1 = arith.constant 1 : index
    %c0_17 = arith.constant 0 : index
    %16 = vector.load %arg11[%c0_16, %c1, %c0_17] : memref<12x16x10xf32, #tpu.memory_space<vmem>>, vector<8x8x10xf32>
    %17 = vector.shape_cast %16 : vector<8x8x10xf32> to vector<64x10xf32>
    %c0_18 = arith.constant 0 : index
    %c10 = arith.constant 10 : index
    %18 = vector.load %arg12[%c0_18, %c10] : memref<64x250xf32, #tpu.memory_space<vmem>>, vector<64x10xf32>
    tpu.vector_store %arg12[%c0_18, %c10], %17 {strides = array<i32>} : memref<64x250xf32, #tpu.memory_space<vmem>>, vector<64x10xf32>,
    %c0_19 = arith.constant 0 : index
    %c2 = arith.constant 2 : index
    %c0_20 = arith.constant 0 : index
    %19 = vector.load %arg11[%c0_19, %c2, %c0_20] : memref<12x16x10xf32, #tpu.memory_space<vmem>>, vector<8x8x10xf32>
    %20 = vector.shape_cast %19 : vector<8x8x10xf32> to vector<64x10xf32>
    %c0_21 = arith.constant 0 : index
    %c20 = arith.constant 20 : index
    %21 = vector.load %arg12[%c0_21, %c20] : memref<64x250xf32, #tpu.memory_space<vmem>>, vector<64x10xf32>
    tpu.vector_store %arg12[%c0_21, %c20], %20 {strides = array<i32>} : memref<64x250xf32, #tpu.memory_space<vmem>>, vector<64x10xf32>,
    %c0_22 = arith.constant 0 : index
    %c3 = arith.constant 3 : index
    %c0_23 = arith.constant 0 : index
    %22 = vector.load %arg11[%c0_22, %c3, %c0_23] : memref<12x16x10xf32, #tpu.memory_space<vmem>>, vector<8x8x10xf32>
    %23 = vector.shape_cast %22 : vector<8x8x10xf32> to vector<64x10xf32>
    %c0_24 = arith.constant 0 : index
    %c30 = arith.constant 30 : index
    %24 = vector.load %arg12[%c0_24, %c30] : memref<64x250xf32, #tpu.memory_space<vmem>>, vector<64x10xf32>
    tpu.vector_store %arg12[%c0_24, %c30], %23 {strides = array<i32>} : memref<64x250xf32, #tpu.memory_space<vmem>>, vector<64x10xf32>,
    %c0_25 = arith.constant 0 : index
    %c4 = arith.constant 4 : index
    %c0_26 = arith.constant 0 : index
    %25 = vector.load %arg11[%c0_25, %c4, %c0_26] : memref<12x16x10xf32, #tpu.memory_space<vmem>>, vector<8x8x10xf32>
    %26 = vector.shape_cast %25 : vector<8x8x10xf32> to vector<64x10xf32>
    %c0_27 = arith.constant 0 : index
    %c40 = arith.constant 40 : index
    %27 = vector.load %arg12[%c0_27, %c40] : memref<64x250xf32, #tpu.memory_space<vmem>>, vector<64x10xf32>
    tpu.vector_store %arg12[%c0_27, %c40], %26 {strides = array<i32>} : memref<64x250xf32, #tpu.memory_space<vmem>>, vector<64x10xf32>,
    %c1_28 = arith.constant 1 : index
    %c0_29 = arith.constant 0 : index
    %c0_30 = arith.constant 0 : index
    %28 = vector.load %arg11[%c1_28, %c0_29, %c0_30] : memref<12x16x10xf32, #tpu.memory_space<vmem>>, vector<8x8x10xf32>
    %29 = vector.shape_cast %28 : vector<8x8x10xf32> to vector<64x10xf32>
    %c0_31 = arith.constant 0 : index
    %c50 = arith.constant 50 : index
    %30 = vector.load %arg12[%c0_31, %c50] : memref<64x250xf32, #tpu.memory_space<vmem>>, vector<64x10xf32>
    tpu.vector_store %arg12[%c0_31, %c50], %29 {strides = array<i32>} : memref<64x250xf32, #tpu.memory_space<vmem>>, vector<64x10xf32>,
    %c1_32 = arith.constant 1 : index
    %c1_33 = arith.constant 1 : index
    %c0_34 = arith.constant 0 : index
    %31 = vector.load %arg11[%c1_32, %c1_33, %c0_34] : memref<12x16x10xf32, #tpu.memory_space<vmem>>, vector<8x8x10xf32>
    %32 = vector.shape_cast %31 : vector<8x8x10xf32> to vector<64x10xf32>
    %c0_35 = arith.constant 0 : index
    %c60 = arith.constant 60 : index
    %33 = vector.load %arg12[%c0_35, %c60] : memref<64x250xf32, #tpu.memory_space<vmem>>, vector<64x10xf32>
    tpu.vector_store %arg12[%c0_35, %c60], %32 {strides = array<i32>} : memref<64x250xf32, #tpu.memory_space<vmem>>, vector<64x10xf32>,
    %c1_36 = arith.constant 1 : index
    %c2_37 = arith.constant 2 : index
    %c0_38 = arith.constant 0 : index
    %34 = vector.load %arg11[%c1_36, %c2_37, %c0_38] : memref<12x16x10xf32, #tpu.memory_space<vmem>>, vector<8x8x10xf32>
    %35 = vector.shape_cast %34 : vector<8x8x10xf32> to vector<64x10xf32>
    %c0_39 = arith.constant 0 : index
    %c70 = arith.constant 70 : index
    %36 = vector.load %arg12[%c0_39, %c70] : memref<64x250xf32, #tpu.memory_space<vmem>>, vector<64x10xf32>
    tpu.vector_store %arg12[%c0_39, %c70], %35 {strides = array<i32>} : memref<64x250xf32, #tpu.memory_space<vmem>>, vector<64x10xf32>,
    %c1_40 = arith.constant 1 : index
    %c3_41 = arith.constant 3 : index
    %c0_42 = arith.constant 0 : index
    %37 = vector.load %arg11[%c1_40, %c3_41, %c0_42] : memref<12x16x10xf32, #tpu.memory_space<vmem>>, vector<8x8x10xf32>
    %38 = vector.shape_cast %37 : vector<8x8x10xf32> to vector<64x10xf32>
    %c0_43 = arith.constant 0 : index
    %c80 = arith.constant 80 : index
    %39 = vector.load %arg12[%c0_43, %c80] : memref<64x250xf32, #tpu.memory_space<vmem>>, vector<64x10xf32>
    tpu.vector_store %arg12[%c0_43, %c80], %38 {strides = array<i32>} : memref<64x250xf32, #tpu.memory_space<vmem>>, vector<64x10xf32>,
    %c1_44 = arith.constant 1 : index
    %c4_45 = arith.constant 4 : index
    %c0_46 = arith.constant 0 : index
    %40 = vector.load %arg11[%c1_44, %c4_45, %c0_46] : memref<12x16x10xf32, #tpu.memory_space<vmem>>, vector<8x8x10xf32>
    %41 = vector.shape_cast %40 : vector<8x8x10xf32> to vector<64x10xf32>
    %c0_47 = arith.constant 0 : index
    %c90 = arith.constant 90 : index
    %42 = vector.load %arg12[%c0_47, %c90] : memref<64x250xf32, #tpu.memory_space<vmem>>, vector<64x10xf32>
    tpu.vector_store %arg12[%c0_47, %c90], %41 {strides = array<i32>} : memref<64x250xf32, #tpu.memory_space<vmem>>, vector<64x10xf32>,
    %c2_48 = arith.constant 2 : index
    %c0_49 = arith.constant 0 : index
    %c0_50 = arith.constant 0 : index
    %43 = vector.load %arg11[%c2_48, %c0_49, %c0_50] : memref<12x16x10xf32, #tpu.memory_space<vmem>>, vector<8x8x10xf32>
    %44 = vector.shape_cast %43 : vector<8x8x10xf32> to vector<64x10xf32>
    %c0_51 = arith.constant 0 : index
    %c100 = arith.constant 100 : index
    %45 = vector.load %arg12[%c0_51, %c100] : memref<64x250xf32, #tpu.memory_space<vmem>>, vector<64x10xf32>
    tpu.vector_store %arg12[%c0_51, %c100], %44 {strides = array<i32>} : memref<64x250xf32, #tpu.memory_space<vmem>>, vector<64x10xf32>,
    %c2_52 = arith.constant 2 : index
    %c1_53 = arith.constant 1 : index
    %c0_54 = arith.constant 0 : index
    %46 = vector.load %arg11[%c2_52, %c1_53, %c0_54] : memref<12x16x10xf32, #tpu.memory_space<vmem>>, vector<8x8x10xf32>
    %47 = vector.shape_cast %46 : vector<8x8x10xf32> to vector<64x10xf32>
    %c0_55 = arith.constant 0 : index
    %c110 = arith.constant 110 : index
    %48 = vector.load %arg12[%c0_55, %c110] : memref<64x250xf32, #tpu.memory_space<vmem>>, vector<64x10xf32>
    tpu.vector_store %arg12[%c0_55, %c110], %47 {strides = array<i32>} : memref<64x250xf32, #tpu.memory_space<vmem>>, vector<64x10xf32>,
    %c2_56 = arith.constant 2 : index
    %c2_57 = arith.constant 2 : index
    %c0_58 = arith.constant 0 : index
    %49 = vector.load %arg11[%c2_56, %c2_57, %c0_58] : memref<12x16x10xf32, #tpu.memory_space<vmem>>, vector<8x8x10xf32>
    %50 = vector.shape_cast %49 : vector<8x8x10xf32> to vector<64x10xf32>
    %c0_59 = arith.constant 0 : index
    %c120 = arith.constant 120 : index
    %51 = vector.load %arg12[%c0_59, %c120] : memref<64x250xf32, #tpu.memory_space<vmem>>, vector<64x10xf32>
    tpu.vector_store %arg12[%c0_59, %c120], %50 {strides = array<i32>} : memref<64x250xf32, #tpu.memory_space<vmem>>, vector<64x10xf32>,
    %c2_60 = arith.constant 2 : index
    %c3_61 = arith.constant 3 : index
    %c0_62 = arith.constant 0 : index
    %52 = vector.load %arg11[%c2_60, %c3_61, %c0_62] : memref<12x16x10xf32, #tpu.memory_space<vmem>>, vector<8x8x10xf32>
    %53 = vector.shape_cast %52 : vector<8x8x10xf32> to vector<64x10xf32>
    %c0_63 = arith.constant 0 : index
    %c130 = arith.constant 130 : index
    %54 = vector.load %arg12[%c0_63, %c130] : memref<64x250xf32, #tpu.memory_space<vmem>>, vector<64x10xf32>
    tpu.vector_store %arg12[%c0_63, %c130], %53 {strides = array<i32>} : memref<64x250xf32, #tpu.memory_space<vmem>>, vector<64x10xf32>,
    %c2_64 = arith.constant 2 : index
    %c4_65 = arith.constant 4 : index
    %c0_66 = arith.constant 0 : index
    %55 = vector.load %arg11[%c2_64, %c4_65, %c0_66] : memref<12x16x10xf32, #tpu.memory_space<vmem>>, vector<8x8x10xf32>
    %56 = vector.shape_cast %55 : vector<8x8x10xf32> to vector<64x10xf32>
    %c0_67 = arith.constant 0 : index
    %c140 = arith.constant 140 : index
    %57 = vector.load %arg12[%c0_67, %c140] : memref<64x250xf32, #tpu.memory_space<vmem>>, vector<64x10xf32>
    tpu.vector_store %arg12[%c0_67, %c140], %56 {strides = array<i32>} : memref<64x250xf32, #tpu.memory_space<vmem>>, vector<64x10xf32>,
    %c3_68 = arith.constant 3 : index
    %c0_69 = arith.constant 0 : index
    %c0_70 = arith.constant 0 : index
    %58 = vector.load %arg11[%c3_68, %c0_69, %c0_70] : memref<12x16x10xf32, #tpu.memory_space<vmem>>, vector<8x8x10xf32>
    %59 = vector.shape_cast %58 : vector<8x8x10xf32> to vector<64x10xf32>
    %c0_71 = arith.constant 0 : index
    %c150 = arith.constant 150 : index
    %60 = vector.load %arg12[%c0_71, %c150] : memref<64x250xf32, #tpu.memory_space<vmem>>, vector<64x10xf32>
    tpu.vector_store %arg12[%c0_71, %c150], %59 {strides = array<i32>} : memref<64x250xf32, #tpu.memory_space<vmem>>, vector<64x10xf32>,
    %c3_72 = arith.constant 3 : index
    %c1_73 = arith.constant 1 : index
    %c0_74 = arith.constant 0 : index
    %61 = vector.load %arg11[%c3_72, %c1_73, %c0_74] : memref<12x16x10xf32, #tpu.memory_space<vmem>>, vector<8x8x10xf32>
    %62 = vector.shape_cast %61 : vector<8x8x10xf32> to vector<64x10xf32>
    %c0_75 = arith.constant 0 : index
    %c160 = arith.constant 160 : index
    %63 = vector.load %arg12[%c0_75, %c160] : memref<64x250xf32, #tpu.memory_space<vmem>>, vector<64x10xf32>
    tpu.vector_store %arg12[%c0_75, %c160], %62 {strides = array<i32>} : memref<64x250xf32, #tpu.memory_space<vmem>>, vector<64x10xf32>,
    %c3_76 = arith.constant 3 : index
    %c2_77 = arith.constant 2 : index
    %c0_78 = arith.constant 0 : index
    %64 = vector.load %arg11[%c3_76, %c2_77, %c0_78] : memref<12x16x10xf32, #tpu.memory_space<vmem>>, vector<8x8x10xf32>
    %65 = vector.shape_cast %64 : vector<8x8x10xf32> to vector<64x10xf32>
    %c0_79 = arith.constant 0 : index
    %c170 = arith.constant 170 : index
    %66 = vector.load %arg12[%c0_79, %c170] : memref<64x250xf32, #tpu.memory_space<vmem>>, vector<64x10xf32>
    tpu.vector_store %arg12[%c0_79, %c170], %65 {strides = array<i32>} : memref<64x250xf32, #tpu.memory_space<vmem>>, vector<64x10xf32>,
    %c3_80 = arith.constant 3 : index
    %c3_81 = arith.constant 3 : index
    %c0_82 = arith.constant 0 : index
    %67 = vector.load %arg11[%c3_80, %c3_81, %c0_82] : memref<12x16x10xf32, #tpu.memory_space<vmem>>, vector<8x8x10xf32>
    %68 = vector.shape_cast %67 : vector<8x8x10xf32> to vector<64x10xf32>
    %c0_83 = arith.constant 0 : index
    %c180 = arith.constant 180 : index
    %69 = vector.load %arg12[%c0_83, %c180] : memref<64x250xf32, #tpu.memory_space<vmem>>, vector<64x10xf32>
    tpu.vector_store %arg12[%c0_83, %c180], %68 {strides = array<i32>} : memref<64x250xf32, #tpu.memory_space<vmem>>, vector<64x10xf32>,
    %c3_84 = arith.constant 3 : index
    %c4_85 = arith.constant 4 : index
    %c0_86 = arith.constant 0 : index
    %70 = vector.load %arg11[%c3_84, %c4_85, %c0_86] : memref<12x16x10xf32, #tpu.memory_space<vmem>>, vector<8x8x10xf32>
    %71 = vector.shape_cast %70 : vector<8x8x10xf32> to vector<64x10xf32>
    %c0_87 = arith.constant 0 : index
    %c190 = arith.constant 190 : index
    %72 = vector.load %arg12[%c0_87, %c190] : memref<64x250xf32, #tpu.memory_space<vmem>>, vector<64x10xf32>
    tpu.vector_store %arg12[%c0_87, %c190], %71 {strides = array<i32>} : memref<64x250xf32, #tpu.memory_space<vmem>>, vector<64x10xf32>,
    %c4_88 = arith.constant 4 : index
    %c0_89 = arith.constant 0 : index
    %c0_90 = arith.constant 0 : index
    %73 = vector.load %arg11[%c4_88, %c0_89, %c0_90] : memref<12x16x10xf32, #tpu.memory_space<vmem>>, vector<8x8x10xf32>
    %74 = vector.shape_cast %73 : vector<8x8x10xf32> to vector<64x10xf32>
    %c0_91 = arith.constant 0 : index
    %c200 = arith.constant 200 : index
    %75 = vector.load %arg12[%c0_91, %c200] : memref<64x250xf32, #tpu.memory_space<vmem>>, vector<64x10xf32>
    tpu.vector_store %arg12[%c0_91, %c200], %74 {strides = array<i32>} : memref<64x250xf32, #tpu.memory_space<vmem>>, vector<64x10xf32>,
    %c4_92 = arith.constant 4 : index
    %c1_93 = arith.constant 1 : index
    %c0_94 = arith.constant 0 : index
    %76 = vector.load %arg11[%c4_92, %c1_93, %c0_94] : memref<12x16x10xf32, #tpu.memory_space<vmem>>, vector<8x8x10xf32>
    %77 = vector.shape_cast %76 : vector<8x8x10xf32> to vector<64x10xf32>
    %c0_95 = arith.constant 0 : index
    %c210 = arith.constant 210 : index
    %78 = vector.load %arg12[%c0_95, %c210] : memref<64x250xf32, #tpu.memory_space<vmem>>, vector<64x10xf32>
    tpu.vector_store %arg12[%c0_95, %c210], %77 {strides = array<i32>} : memref<64x250xf32, #tpu.memory_space<vmem>>, vector<64x10xf32>,
    %c4_96 = arith.constant 4 : index
    %c2_97 = arith.constant 2 : index
    %c0_98 = arith.constant 0 : index
    %79 = vector.load %arg11[%c4_96, %c2_97, %c0_98] : memref<12x16x10xf32, #tpu.memory_space<vmem>>, vector<8x8x10xf32>
    %80 = vector.shape_cast %79 : vector<8x8x10xf32> to vector<64x10xf32>
    %c0_99 = arith.constant 0 : index
    %c220 = arith.constant 220 : index
    %81 = vector.load %arg12[%c0_99, %c220] : memref<64x250xf32, #tpu.memory_space<vmem>>, vector<64x10xf32>
    tpu.vector_store %arg12[%c0_99, %c220], %80 {strides = array<i32>} : memref<64x250xf32, #tpu.memory_space<vmem>>, vector<64x10xf32>,
    %c4_100 = arith.constant 4 : index
    %c3_101 = arith.constant 3 : index
    %c0_102 = arith.constant 0 : index
    %82 = vector.load %arg11[%c4_100, %c3_101, %c0_102] : memref<12x16x10xf32, #tpu.memory_space<vmem>>, vector<8x8x10xf32>
    %83 = vector.shape_cast %82 : vector<8x8x10xf32> to vector<64x10xf32>
    %c0_103 = arith.constant 0 : index
    %c230 = arith.constant 230 : index
    %84 = vector.load %arg12[%c0_103, %c230] : memref<64x250xf32, #tpu.memory_space<vmem>>, vector<64x10xf32>
    tpu.vector_store %arg12[%c0_103, %c230], %83 {strides = array<i32>} : memref<64x250xf32, #tpu.memory_space<vmem>>, vector<64x10xf32>,
    %c4_104 = arith.constant 4 : index
    %c4_105 = arith.constant 4 : index
    %c0_106 = arith.constant 0 : index
    %85 = vector.load %arg11[%c4_104, %c4_105, %c0_106] : memref<12x16x10xf32, #tpu.memory_space<vmem>>, vector<8x8x10xf32>
    %86 = vector.shape_cast %85 : vector<8x8x10xf32> to vector<64x10xf32>
    %c0_107 = arith.constant 0 : index
    %c240 = arith.constant 240 : index
    %87 = vector.load %arg12[%c0_107, %c240] : memref<64x250xf32, #tpu.memory_space<vmem>>, vector<64x10xf32>
    tpu.vector_store %arg12[%c0_107, %c240], %86 {strides = array<i32>} : memref<64x250xf32, #tpu.memory_space<vmem>>, vector<64x10xf32>,
    %c0_108 = arith.constant 0 : index
    %c0_109 = arith.constant 0 : index
    %88 = vector.load %arg12[%c0_108, %c0_109] : memref<64x250xf32, #tpu.memory_space<vmem>>, vector<64x250xf32>
    %c0_110 = arith.constant 0 : index
    %c0_111 = arith.constant 0 : index
    %89 = vector.load %arg4[%c0_110, %c0_111] : memref<250x20xf32, #tpu.memory_space<vmem>>, vector<250x20xf32>
    %cst_112 = arith.constant dense<0.000000e+00> : vector<64x20xf32>
    %90 = tpu.matmul %88, %89, %cst_112 {dimension_numbers = #tpu.dot_dimension_numbers<[1], [0], [0], [1], [0, 0, 1, 1], [], []>} : vector<64x250xf32>, vector<250x20xf32>, vector<64x20xf32> -> vector<64x20xf32>
    %91 = vector.shape_cast %90 : vector<64x20xf32> to vector<4x2x8x20xf32>
    %cst_113 = arith.constant dense<0xFF800000> : vector<4x8x20xf32>
    %92 = vector.multi_reduction <maximumf>, %91, %cst_113 [1] : vector<4x2x8x20xf32> to vector<4x8x20xf32>
    %c0_114 = arith.constant 0 : index
    %c0_115 = arith.constant 0 : index
    %93 = vector.load %arg5[%c0_114, %c0_115] : memref<1x20xf32, #tpu.memory_space<vmem>>, vector<1x20xf32>
    %94 = vector.shape_cast %93 : vector<1x20xf32> to vector<1x1x20xf32>
    %95 = vector.broadcast %94 : vector<1x1x20xf32> to vector<4x8x20xf32>
    %96 = arith.addf %92, %95 : vector<4x8x20xf32>
    %cst_116 = arith.constant 0.000000e+00 : f32
    %97 = vector.broadcast %cst_116 : f32 to vector<4x8x20xf32>
    %98 = arith.maximumf %96, %97 : vector<4x8x20xf32>
    %99 = vector.extract_strided_slice %98 {offsets = [0, 0, 0], sizes = [1, 1, 20], strides = [1, 1, 1]} : vector<4x8x20xf32> to vector<1x1x20xf32>
    %100 = vector.shape_cast %99 : vector<1x1x20xf32> to vector<1x20xf32>
    %101 = vector.extract_strided_slice %98 {offsets = [0, 1, 0], sizes = [1, 1, 20], strides = [1, 1, 1]} : vector<4x8x20xf32> to vector<1x1x20xf32>
    %102 = vector.shape_cast %101 : vector<1x1x20xf32> to vector<1x20xf32>
    %103 = arith.maximumf %100, %102 : vector<1x20xf32>
    %c0_117 = arith.constant 0 : index
    %c0_118 = arith.constant 0 : index
    %104 = vector.load %arg13[%c0_117, %c0_118] : memref<1x320xf32, #tpu.memory_space<vmem>>, vector<1x20xf32>
    tpu.vector_store %arg13[%c0_117, %c0_118], %103 {strides = array<i32>} : memref<1x320xf32, #tpu.memory_space<vmem>>, vector<1x20xf32>,
    %105 = vector.extract_strided_slice %98 {offsets = [0, 2, 0], sizes = [1, 1, 20], strides = [1, 1, 1]} : vector<4x8x20xf32> to vector<1x1x20xf32>
    %106 = vector.shape_cast %105 : vector<1x1x20xf32> to vector<1x20xf32>
    %107 = vector.extract_strided_slice %98 {offsets = [0, 3, 0], sizes = [1, 1, 20], strides = [1, 1, 1]} : vector<4x8x20xf32> to vector<1x1x20xf32>
    %108 = vector.shape_cast %107 : vector<1x1x20xf32> to vector<1x20xf32>
    %109 = arith.maximumf %106, %108 : vector<1x20xf32>
    %c0_119 = arith.constant 0 : index
    %c20_120 = arith.constant 20 : index
    %110 = vector.load %arg13[%c0_119, %c20_120] : memref<1x320xf32, #tpu.memory_space<vmem>>, vector<1x20xf32>
    tpu.vector_store %arg13[%c0_119, %c20_120], %109 {strides = array<i32>} : memref<1x320xf32, #tpu.memory_space<vmem>>, vector<1x20xf32>,
    %111 = vector.extract_strided_slice %98 {offsets = [0, 4, 0], sizes = [1, 1, 20], strides = [1, 1, 1]} : vector<4x8x20xf32> to vector<1x1x20xf32>
    %112 = vector.shape_cast %111 : vector<1x1x20xf32> to vector<1x20xf32>
    %113 = vector.extract_strided_slice %98 {offsets = [0, 5, 0], sizes = [1, 1, 20], strides = [1, 1, 1]} : vector<4x8x20xf32> to vector<1x1x20xf32>
    %114 = vector.shape_cast %113 : vector<1x1x20xf32> to vector<1x20xf32>
    %115 = arith.maximumf %112, %114 : vector<1x20xf32>
    %c0_121 = arith.constant 0 : index
    %c40_122 = arith.constant 40 : index
    %116 = vector.load %arg13[%c0_121, %c40_122] : memref<1x320xf32, #tpu.memory_space<vmem>>, vector<1x20xf32>
    tpu.vector_store %arg13[%c0_121, %c40_122], %115 {strides = array<i32>} : memref<1x320xf32, #tpu.memory_space<vmem>>, vector<1x20xf32>,
    %117 = vector.extract_strided_slice %98 {offsets = [0, 6, 0], sizes = [1, 1, 20], strides = [1, 1, 1]} : vector<4x8x20xf32> to vector<1x1x20xf32>
    %118 = vector.shape_cast %117 : vector<1x1x20xf32> to vector<1x20xf32>
    %119 = vector.extract_strided_slice %98 {offsets = [0, 7, 0], sizes = [1, 1, 20], strides = [1, 1, 1]} : vector<4x8x20xf32> to vector<1x1x20xf32>
    %120 = vector.shape_cast %119 : vector<1x1x20xf32> to vector<1x20xf32>
    %121 = arith.maximumf %118, %120 : vector<1x20xf32>
    %c0_123 = arith.constant 0 : index
    %c60_124 = arith.constant 60 : index
    %122 = vector.load %arg13[%c0_123, %c60_124] : memref<1x320xf32, #tpu.memory_space<vmem>>, vector<1x20xf32>
    tpu.vector_store %arg13[%c0_123, %c60_124], %121 {strides = array<i32>} : memref<1x320xf32, #tpu.memory_space<vmem>>, vector<1x20xf32>,
    %123 = vector.extract_strided_slice %98 {offsets = [1, 0, 0], sizes = [1, 1, 20], strides = [1, 1, 1]} : vector<4x8x20xf32> to vector<1x1x20xf32>
    %124 = vector.shape_cast %123 : vector<1x1x20xf32> to vector<1x20xf32>
    %125 = vector.extract_strided_slice %98 {offsets = [1, 1, 0], sizes = [1, 1, 20], strides = [1, 1, 1]} : vector<4x8x20xf32> to vector<1x1x20xf32>
    %126 = vector.shape_cast %125 : vector<1x1x20xf32> to vector<1x20xf32>
    %127 = arith.maximumf %124, %126 : vector<1x20xf32>
    %c0_125 = arith.constant 0 : index
    %c80_126 = arith.constant 80 : index
    %128 = vector.load %arg13[%c0_125, %c80_126] : memref<1x320xf32, #tpu.memory_space<vmem>>, vector<1x20xf32>
    tpu.vector_store %arg13[%c0_125, %c80_126], %127 {strides = array<i32>} : memref<1x320xf32, #tpu.memory_space<vmem>>, vector<1x20xf32>,
    %129 = vector.extract_strided_slice %98 {offsets = [1, 2, 0], sizes = [1, 1, 20], strides = [1, 1, 1]} : vector<4x8x20xf32> to vector<1x1x20xf32>
    %130 = vector.shape_cast %129 : vector<1x1x20xf32> to vector<1x20xf32>
    %131 = vector.extract_strided_slice %98 {offsets = [1, 3, 0], sizes = [1, 1, 20], strides = [1, 1, 1]} : vector<4x8x20xf32> to vector<1x1x20xf32>
    %132 = vector.shape_cast %131 : vector<1x1x20xf32> to vector<1x20xf32>
    %133 = arith.maximumf %130, %132 : vector<1x20xf32>
    %c0_127 = arith.constant 0 : index
    %c100_128 = arith.constant 100 : index
    %134 = vector.load %arg13[%c0_127, %c100_128] : memref<1x320xf32, #tpu.memory_space<vmem>>, vector<1x20xf32>
    tpu.vector_store %arg13[%c0_127, %c100_128], %133 {strides = array<i32>} : memref<1x320xf32, #tpu.memory_space<vmem>>, vector<1x20xf32>,
    %135 = vector.extract_strided_slice %98 {offsets = [1, 4, 0], sizes = [1, 1, 20], strides = [1, 1, 1]} : vector<4x8x20xf32> to vector<1x1x20xf32>
    %136 = vector.shape_cast %135 : vector<1x1x20xf32> to vector<1x20xf32>
    %137 = vector.extract_strided_slice %98 {offsets = [1, 5, 0], sizes = [1, 1, 20], strides = [1, 1, 1]} : vector<4x8x20xf32> to vector<1x1x20xf32>
    %138 = vector.shape_cast %137 : vector<1x1x20xf32> to vector<1x20xf32>
    %139 = arith.maximumf %136, %138 : vector<1x20xf32>
    %c0_129 = arith.constant 0 : index
    %c120_130 = arith.constant 120 : index
    %140 = vector.load %arg13[%c0_129, %c120_130] : memref<1x320xf32, #tpu.memory_space<vmem>>, vector<1x20xf32>
    tpu.vector_store %arg13[%c0_129, %c120_130], %139 {strides = array<i32>} : memref<1x320xf32, #tpu.memory_space<vmem>>, vector<1x20xf32>,
    %141 = vector.extract_strided_slice %98 {offsets = [1, 6, 0], sizes = [1, 1, 20], strides = [1, 1, 1]} : vector<4x8x20xf32> to vector<1x1x20xf32>
    %142 = vector.shape_cast %141 : vector<1x1x20xf32> to vector<1x20xf32>
    %143 = vector.extract_strided_slice %98 {offsets = [1, 7, 0], sizes = [1, 1, 20], strides = [1, 1, 1]} : vector<4x8x20xf32> to vector<1x1x20xf32>
    %144 = vector.shape_cast %143 : vector<1x1x20xf32> to vector<1x20xf32>
    %145 = arith.maximumf %142, %144 : vector<1x20xf32>
    %c0_131 = arith.constant 0 : index
    %c140_132 = arith.constant 140 : index
    %146 = vector.load %arg13[%c0_131, %c140_132] : memref<1x320xf32, #tpu.memory_space<vmem>>, vector<1x20xf32>
    tpu.vector_store %arg13[%c0_131, %c140_132], %145 {strides = array<i32>} : memref<1x320xf32, #tpu.memory_space<vmem>>, vector<1x20xf32>,
    %147 = vector.extract_strided_slice %98 {offsets = [2, 0, 0], sizes = [1, 1, 20], strides = [1, 1, 1]} : vector<4x8x20xf32> to vector<1x1x20xf32>
    %148 = vector.shape_cast %147 : vector<1x1x20xf32> to vector<1x20xf32>
    %149 = vector.extract_strided_slice %98 {offsets = [2, 1, 0], sizes = [1, 1, 20], strides = [1, 1, 1]} : vector<4x8x20xf32> to vector<1x1x20xf32>
    %150 = vector.shape_cast %149 : vector<1x1x20xf32> to vector<1x20xf32>
    %151 = arith.maximumf %148, %150 : vector<1x20xf32>
    %c0_133 = arith.constant 0 : index
    %c160_134 = arith.constant 160 : index
    %152 = vector.load %arg13[%c0_133, %c160_134] : memref<1x320xf32, #tpu.memory_space<vmem>>, vector<1x20xf32>
    tpu.vector_store %arg13[%c0_133, %c160_134], %151 {strides = array<i32>} : memref<1x320xf32, #tpu.memory_space<vmem>>, vector<1x20xf32>,
    %153 = vector.extract_strided_slice %98 {offsets = [2, 2, 0], sizes = [1, 1, 20], strides = [1, 1, 1]} : vector<4x8x20xf32> to vector<1x1x20xf32>
    %154 = vector.shape_cast %153 : vector<1x1x20xf32> to vector<1x20xf32>
    %155 = vector.extract_strided_slice %98 {offsets = [2, 3, 0], sizes = [1, 1, 20], strides = [1, 1, 1]} : vector<4x8x20xf32> to vector<1x1x20xf32>
    %156 = vector.shape_cast %155 : vector<1x1x20xf32> to vector<1x20xf32>
    %157 = arith.maximumf %154, %156 : vector<1x20xf32>
    %c0_135 = arith.constant 0 : index
    %c180_136 = arith.constant 180 : index
    %158 = vector.load %arg13[%c0_135, %c180_136] : memref<1x320xf32, #tpu.memory_space<vmem>>, vector<1x20xf32>
    tpu.vector_store %arg13[%c0_135, %c180_136], %157 {strides = array<i32>} : memref<1x320xf32, #tpu.memory_space<vmem>>, vector<1x20xf32>,
    %159 = vector.extract_strided_slice %98 {offsets = [2, 4, 0], sizes = [1, 1, 20], strides = [1, 1, 1]} : vector<4x8x20xf32> to vector<1x1x20xf32>
    %160 = vector.shape_cast %159 : vector<1x1x20xf32> to vector<1x20xf32>
    %161 = vector.extract_strided_slice %98 {offsets = [2, 5, 0], sizes = [1, 1, 20], strides = [1, 1, 1]} : vector<4x8x20xf32> to vector<1x1x20xf32>
    %162 = vector.shape_cast %161 : vector<1x1x20xf32> to vector<1x20xf32>
    %163 = arith.maximumf %160, %162 : vector<1x20xf32>
    %c0_137 = arith.constant 0 : index
    %c200_138 = arith.constant 200 : index
    %164 = vector.load %arg13[%c0_137, %c200_138] : memref<1x320xf32, #tpu.memory_space<vmem>>, vector<1x20xf32>
    tpu.vector_store %arg13[%c0_137, %c200_138], %163 {strides = array<i32>} : memref<1x320xf32, #tpu.memory_space<vmem>>, vector<1x20xf32>,
    %165 = vector.extract_strided_slice %98 {offsets = [2, 6, 0], sizes = [1, 1, 20], strides = [1, 1, 1]} : vector<4x8x20xf32> to vector<1x1x20xf32>
    %166 = vector.shape_cast %165 : vector<1x1x20xf32> to vector<1x20xf32>
    %167 = vector.extract_strided_slice %98 {offsets = [2, 7, 0], sizes = [1, 1, 20], strides = [1, 1, 1]} : vector<4x8x20xf32> to vector<1x1x20xf32>
    %168 = vector.shape_cast %167 : vector<1x1x20xf32> to vector<1x20xf32>
    %169 = arith.maximumf %166, %168 : vector<1x20xf32>
    %c0_139 = arith.constant 0 : index
    %c220_140 = arith.constant 220 : index
    %170 = vector.load %arg13[%c0_139, %c220_140] : memref<1x320xf32, #tpu.memory_space<vmem>>, vector<1x20xf32>
    tpu.vector_store %arg13[%c0_139, %c220_140], %169 {strides = array<i32>} : memref<1x320xf32, #tpu.memory_space<vmem>>, vector<1x20xf32>,
    %171 = vector.extract_strided_slice %98 {offsets = [3, 0, 0], sizes = [1, 1, 20], strides = [1, 1, 1]} : vector<4x8x20xf32> to vector<1x1x20xf32>
    %172 = vector.shape_cast %171 : vector<1x1x20xf32> to vector<1x20xf32>
    %173 = vector.extract_strided_slice %98 {offsets = [3, 1, 0], sizes = [1, 1, 20], strides = [1, 1, 1]} : vector<4x8x20xf32> to vector<1x1x20xf32>
    %174 = vector.shape_cast %173 : vector<1x1x20xf32> to vector<1x20xf32>
    %175 = arith.maximumf %172, %174 : vector<1x20xf32>
    %c0_141 = arith.constant 0 : index
    %c240_142 = arith.constant 240 : index
    %176 = vector.load %arg13[%c0_141, %c240_142] : memref<1x320xf32, #tpu.memory_space<vmem>>, vector<1x20xf32>
    tpu.vector_store %arg13[%c0_141, %c240_142], %175 {strides = array<i32>} : memref<1x320xf32, #tpu.memory_space<vmem>>, vector<1x20xf32>,
    %177 = vector.extract_strided_slice %98 {offsets = [3, 2, 0], sizes = [1, 1, 20], strides = [1, 1, 1]} : vector<4x8x20xf32> to vector<1x1x20xf32>
    %178 = vector.shape_cast %177 : vector<1x1x20xf32> to vector<1x20xf32>
    %179 = vector.extract_strided_slice %98 {offsets = [3, 3, 0], sizes = [1, 1, 20], strides = [1, 1, 1]} : vector<4x8x20xf32> to vector<1x1x20xf32>
    %180 = vector.shape_cast %179 : vector<1x1x20xf32> to vector<1x20xf32>
    %181 = arith.maximumf %178, %180 : vector<1x20xf32>
    %c0_143 = arith.constant 0 : index
    %c260 = arith.constant 260 : index
    %182 = vector.load %arg13[%c0_143, %c260] : memref<1x320xf32, #tpu.memory_space<vmem>>, vector<1x20xf32>
    tpu.vector_store %arg13[%c0_143, %c260], %181 {strides = array<i32>} : memref<1x320xf32, #tpu.memory_space<vmem>>, vector<1x20xf32>,
    %183 = vector.extract_strided_slice %98 {offsets = [3, 4, 0], sizes = [1, 1, 20], strides = [1, 1, 1]} : vector<4x8x20xf32> to vector<1x1x20xf32>
    %184 = vector.shape_cast %183 : vector<1x1x20xf32> to vector<1x20xf32>
    %185 = vector.extract_strided_slice %98 {offsets = [3, 5, 0], sizes = [1, 1, 20], strides = [1, 1, 1]} : vector<4x8x20xf32> to vector<1x1x20xf32>
    %186 = vector.shape_cast %185 : vector<1x1x20xf32> to vector<1x20xf32>
    %187 = arith.maximumf %184, %186 : vector<1x20xf32>
    %c0_144 = arith.constant 0 : index
    %c280 = arith.constant 280 : index
    %188 = vector.load %arg13[%c0_144, %c280] : memref<1x320xf32, #tpu.memory_space<vmem>>, vector<1x20xf32>
    tpu.vector_store %arg13[%c0_144, %c280], %187 {strides = array<i32>} : memref<1x320xf32, #tpu.memory_space<vmem>>, vector<1x20xf32>,
    %189 = vector.extract_strided_slice %98 {offsets = [3, 6, 0], sizes = [1, 1, 20], strides = [1, 1, 1]} : vector<4x8x20xf32> to vector<1x1x20xf32>
    %190 = vector.shape_cast %189 : vector<1x1x20xf32> to vector<1x20xf32>
    %191 = vector.extract_strided_slice %98 {offsets = [3, 7, 0], sizes = [1, 1, 20], strides = [1, 1, 1]} : vector<4x8x20xf32> to vector<1x1x20xf32>
    %192 = vector.shape_cast %191 : vector<1x1x20xf32> to vector<1x20xf32>
    %193 = arith.maximumf %190, %192 : vector<1x20xf32>
    %c0_145 = arith.constant 0 : index
    %c300 = arith.constant 300 : index
    %194 = vector.load %arg13[%c0_145, %c300] : memref<1x320xf32, #tpu.memory_space<vmem>>, vector<1x20xf32>
    tpu.vector_store %arg13[%c0_145, %c300], %193 {strides = array<i32>} : memref<1x320xf32, #tpu.memory_space<vmem>>, vector<1x20xf32>,
    %c0_146 = arith.constant 0 : index
    %c0_147 = arith.constant 0 : index
    %195 = vector.load %arg13[%c0_146, %c0_147] : memref<1x320xf32, #tpu.memory_space<vmem>>, vector<1x320xf32>
    %c0_148 = arith.constant 0 : index
    %c0_149 = arith.constant 0 : index
    %196 = vector.load %arg6[%c0_148, %c0_149] : memref<320x50xf32, #tpu.memory_space<vmem>>, vector<320x50xf32>
    %cst_150 = arith.constant dense<0.000000e+00> : vector<1x50xf32>
    %197 = tpu.matmul %195, %196, %cst_150 {dimension_numbers = #tpu.dot_dimension_numbers<[1], [0], [0], [1], [0, 0, 1, 1], [], []>} : vector<1x320xf32>, vector<320x50xf32>, vector<1x50xf32> -> vector<1x50xf32>
    %c0_151 = arith.constant 0 : index
    %c0_152 = arith.constant 0 : index
    %198 = vector.load %arg7[%c0_151, %c0_152] : memref<1x50xf32, #tpu.memory_space<vmem>>, vector<1x50xf32>
    %199 = arith.addf %197, %198 : vector<1x50xf32>
    %cst_153 = arith.constant 0.000000e+00 : f32
    %200 = vector.broadcast %cst_153 : f32 to vector<1x50xf32>
    %201 = arith.maximumf %199, %200 : vector<1x50xf32>
    %c0_154 = arith.constant 0 : index
    %c0_155 = arith.constant 0 : index
    %202 = vector.load %arg8[%c0_154, %c0_155] : memref<50x10xf32, #tpu.memory_space<vmem>>, vector<50x10xf32>
    %cst_156 = arith.constant dense<0.000000e+00> : vector<1x10xf32>
    %203 = tpu.matmul %201, %202, %cst_156 {dimension_numbers = #tpu.dot_dimension_numbers<[1], [0], [0], [1], [0, 0, 1, 1], [], []>} : vector<1x50xf32>, vector<50x10xf32>, vector<1x10xf32> -> vector<1x10xf32>
    %c0_157 = arith.constant 0 : index
    %c0_158 = arith.constant 0 : index
    %204 = vector.load %arg9[%c0_157, %c0_158] : memref<1x10xf32, #tpu.memory_space<vmem>>, vector<1x10xf32>
    %205 = arith.addf %203, %204 : vector<1x10xf32>
    %cst_159 = arith.constant dense<0xFF800000> : vector<1xf32>
    %206 = vector.multi_reduction <maximumf>, %205, %cst_159 [1] : vector<1x10xf32> to vector<1xf32>
    %207 = vector.shape_cast %206 : vector<1xf32> to vector<1x1xf32>
    %208 = vector.broadcast %207 : vector<1x1xf32> to vector<1x10xf32>
    %209 = arith.subf %205, %208 : vector<1x10xf32>
    %210 = math.exp %209 : vector<1x10xf32>
    %cst_160 = arith.constant dense<0.000000e+00> : vector<1xf32>
    %211 = vector.multi_reduction <add>, %210, %cst_160 [1] : vector<1x10xf32> to vector<1xf32>
    %212 = vector.shape_cast %211 : vector<1xf32> to vector<1x1xf32>
    %213 = math.log %212 : vector<1x1xf32>
    %214 = arith.addf %207, %213 : vector<1x1xf32>
    %215 = vector.broadcast %214 : vector<1x1xf32> to vector<1x10xf32>
    %216 = arith.subf %205, %215 : vector<1x10xf32>
    %c0_161 = arith.constant 0 : index
    %c0_162 = arith.constant 0 : index
    %c0_163 = arith.constant 0 : index
    %217 = vector.load %arg10[%c0_161, %c0_162, %c0_163] : memref<1x1x10xf32, #tpu.memory_space<vmem>>, vector<1x1x10xf32>
    %218 = vector.shape_cast %217 : vector<1x1x10xf32> to vector<1x10xf32>
    %219 = vector.shape_cast %216 : vector<1x10xf32> to vector<1x1x10xf32>
    tpu.vector_store %arg10[%c0_161, %c0_162, %c0_163], %219 {strides = array<i32>} : memref<1x1x10xf32, #tpu.memory_space<vmem>>, vector<1x1x10xf32>,
    return
  }
  func.func @transform_0(%arg0: i32) -> (i32, i32, i32) {
    %c0_i32 = arith.constant 0 : i32
    %c0_i32_0 = arith.constant 0 : i32
    %c0_i32_1 = arith.constant 0 : i32
    return %arg0, %c0_i32, %c0_i32_0 : i32, i32, i32
  }
  func.func @transform_1(%arg0: i32) -> (i32, i32) {
    %c0_i32 = arith.constant 0 : i32
    %c0_i32_0 = arith.constant 0 : i32
    %c0_i32_1 = arith.constant 0 : i32
    return %c0_i32, %c0_i32_0 : i32, i32
  }
  func.func @transform_2(%arg0: i32) -> (i32, i32) {
    %c0_i32 = arith.constant 0 : i32
    %c0_i32_0 = arith.constant 0 : i32
    %c0_i32_1 = arith.constant 0 : i32
    return %c0_i32, %c0_i32_0 : i32, i32
  }
  func.func @transform_3(%arg0: i32) -> (i32, i32) {
    %c0_i32 = arith.constant 0 : i32
    %c0_i32_0 = arith.constant 0 : i32
    %c0_i32_1 = arith.constant 0 : i32
    return %c0_i32, %c0_i32_0 : i32, i32
  }
  func.func @transform_4(%arg0: i32) -> (i32, i32) {
    %c0_i32 = arith.constant 0 : i32
    %c0_i32_0 = arith.constant 0 : i32
    %c0_i32_1 = arith.constant 0 : i32
    return %c0_i32, %c0_i32_0 : i32, i32
  }
  func.func @transform_5(%arg0: i32) -> (i32, i32) {
    %c0_i32 = arith.constant 0 : i32
    %c0_i32_0 = arith.constant 0 : i32
    %c0_i32_1 = arith.constant 0 : i32
    return %c0_i32, %c0_i32_0 : i32, i32
  }
  func.func @transform_6(%arg0: i32) -> (i32, i32) {
    %c0_i32 = arith.constant 0 : i32
    %c0_i32_0 = arith.constant 0 : i32
    %c0_i32_1 = arith.constant 0 : i32
    return %c0_i32, %c0_i32_0 : i32, i32
  }
  func.func @transform_7(%arg0: i32) -> (i32, i32) {
    %c0_i32 = arith.constant 0 : i32
    %c0_i32_0 = arith.constant 0 : i32
    %c0_i32_1 = arith.constant 0 : i32
    return %c0_i32, %c0_i32_0 : i32, i32
  }
  func.func @transform_8(%arg0: i32) -> (i32, i32) {
    %c0_i32 = arith.constant 0 : i32
    %c0_i32_0 = arith.constant 0 : i32
    %c0_i32_1 = arith.constant 0 : i32
    return %c0_i32, %c0_i32_0 : i32, i32
  }
  func.func @transform_9(%arg0: i32) -> (i32, i32, i32) {
    %c0_i32 = arith.constant 0 : i32
    %c0_i32_0 = arith.constant 0 : i32
    %c0_i32_1 = arith.constant 0 : i32
    return %arg0, %c0_i32, %c0_i32_0 : i32, i32, i32
  }
}

</mosaic_0001>

<llo_original>
// kernel: mnist_net_forward.1
$region0: #{mnist_net_forward.1}
  #allocation0 [shape = 'u32[]', space=smem, size = 0x4, offset = 0x4, fixed_abs, tag = 'smem constant byte address 0x4 - core index']
  #allocation1 [shape = 'u32[144,128]{1,0:T(1,128)}', space=vmem, size = 0x12000, scoped, tag = 'internal scratch']
  #allocation2 [shape = 'f32[12,16,10]{2,1,0:T(8,128)}', space=vmem, size = 0x18000, scoped, tag = 'scratch operand']
  #allocation3 [shape = 'f32[64,250]{1,0:T(8,128)}', space=vmem, size = 0x10000, scoped, tag = 'scratch operand']
  #allocation4 [shape = 'f32[1,320]{1,0:T(1,128)}', space=vmem, size = 0x600, scoped, tag = 'scratch operand']
  %s0 = inlined_call_operand.vmem [shape: f32[2,768,25], index: 0, kind: input, shape index: {}]
  %s1 = inlined_call_operand.vmem [shape: f32[25,10], index: 1, kind: input, shape index: {}]
  %s2 = inlined_call_operand.vmem [shape: f32[1,10], index: 2, kind: input, shape index: {}]
  %s3 = inlined_call_operand.vmem [shape: f32[250,20], index: 3, kind: input, shape index: {}]
  %s4 = inlined_call_operand.vmem [shape: f32[1,20], index: 4, kind: input, shape index: {}]
  %s5 = inlined_call_operand.vmem [shape: f32[320,50], index: 5, kind: input, shape index: {}]
  %s6 = inlined_call_operand.vmem [shape: f32[1,50], index: 6, kind: input, shape index: {}]
  %s7 = inlined_call_operand.vmem [shape: f32[50,10], index: 7, kind: input, shape index: {}]
  %s8 = inlined_call_operand.vmem [shape: f32[1,10], index: 8, kind: input, shape index: {}]
  %s9 = inlined_call_operand.hbm [shape: f32[2,1,10], index: 9, kind: output, shape index: {}]
  %s10 = sld [smem:[#allocation0]]
  $region69: #{mnist_net_forward.1} parent=0
    _
  %s12 = ssub.s32 1, %s10
  %s13 = scalar_select 0, %s12, %s10
  $region1: #{mnist_net_forward.1} parent=0
    #allocation5 [shape = 'u8[1024]{0}', space=vmem, size = 0x400, scoped, tag = 'output window, operand 0']
    #allocation6 [shape = 's32[2]{0}', space=sflag, size = 0x8, scoped, tag = 'scoped memory for mnist_net_forward.1']
    %14 = vsyncpa [#allocation6], 0
    %s15 = scalar_lea.sflag [#allocation6], 1
    %16 = vsyncpa %s15, 0
    loop: start=0, step=1, limit=4
    $region2: #{mnist_net_forward.1} parent=1 // loop_pre_header
      _
    $region3: #{mnist_net_forward.1} parent=1 // loop_header
      %s18 = sphi 0, %s22
      %p19 = scmp.ge.s32.totalorder %s18, 4
      %s28 = sphi 0, %s30
      %s31 = sphi 0, %s28
      %s32 = sphi 0, %s31
      %s48 = sphi 0, %s32
      %s52 = sphi 0, %s52
      %s54 = sphi 0, %s52
      %s55 = sphi 0, %s54
      %s69 = sphi 0, %s55
      %s73 = sphi 0, %s73
      %s75 = sphi 0, %s73
      %s76 = sphi 0, %s75
      %s90 = sphi 0, %s76
      %s94 = sphi 0, %s94
      %s96 = sphi 0, %s94
      %s97 = sphi 0, %s96
      %s111 = sphi 0, %s97
      %s115 = sphi 0, %s115
      %s117 = sphi 0, %s115
      %s118 = sphi 0, %s117
      %s132 = sphi 0, %s118
      %s136 = sphi 0, %s136
      %s138 = sphi 0, %s136
      %s139 = sphi 0, %s138
      %s153 = sphi 0, %s139
      %s157 = sphi 0, %s157
      %s159 = sphi 0, %s157
      %s160 = sphi 0, %s159
      %s174 = sphi 0, %s160
      %s178 = sphi 0, %s178
      %s180 = sphi 0, %s178
      %s181 = sphi 0, %s180
      %s195 = sphi 0, %s181
      %s199 = sphi 0, %s199
      %s201 = sphi 0, %s199
      %s202 = sphi 0, %s201
      %s216 = sphi 0, %s202
      %s222 = sphi 0, %s224
      %s225 = sphi 0, %s222
      %s226 = sphi 0, %s225
      %s242 = sphi 0, %s226
    $region4: #{mnist_net_forward.1} parent=1 // loop_header_branch
      %21 = sbr.rel (%p19) target = $region8
    $region5: #{mnist_net_forward.1} parent=1 // loop_body
      %s23 = ssub.s32 %s18, 1
      %s24 = ssub.s32 %s18, 2
      %s25 = sadd.s32 %s18, 1
      %s26 = ssub.s32 %s18, %s25
      %p27 = scmp.eq.s32.totalorder %s26, 0
      %s29 = sadd.s32 %s28, 1
      %s30 = scalar_select %p27, %s28, %s29
      %p33 = pneg %p27
      %p34 = scmp.eq.s32.totalorder %s18, 1
      %p35 = por %p33, %p34
      %p36 = scmp.ne.s32.totalorder %s28, %s31
      %p37 = scmp.eq.s32.totalorder %s18, 0
      %p38 = por %p36, %p37
      %p39 = scmp.ne.s32.totalorder %s28, %s31
      %p40 = scmp.eq.s32.totalorder %s23, 1
      %p41 = por %p39, %p40
      %p42 = scmp.ne.s32.totalorder %s31, %s32
      %p43 = scmp.eq.s32.totalorder %s23, 0
      %p44 = por %p42, %p43
      %p45 = scmp.ne.s32.totalorder %s31, %s32
      %p46 = scmp.eq.s32.totalorder %s24, 1
      %p47 = por %p45, %p46
      %p49 = scmp.ne.s32.totalorder %s32, %s48
      %p50 = scmp.eq.s32.totalorder %s24, 0
      %p51 = por %p49, %p50
      %s53 = sadd.s32 %s52, 1
      %p56 = scmp.eq.s32.totalorder %s18, 1
      %p57 = scmp.ne.s32.totalorder %s52, %s54
      %p58 = scmp.eq.s32.totalorder %s18, 0
      %p59 = por %p57, %p58
      %p60 = scmp.ne.s32.totalorder %s52, %s54
      %p61 = scmp.eq.s32.totalorder %s23, 1
      %p62 = por %p60, %p61
      %p63 = scmp.ne.s32.totalorder %s54, %s55
      %p64 = scmp.eq.s32.totalorder %s23, 0
      %p65 = por %p63, %p64
      %p66 = scmp.ne.s32.totalorder %s54, %s55
      %p67 = scmp.eq.s32.totalorder %s24, 1
      %p68 = por %p66, %p67
      %p70 = scmp.ne.s32.totalorder %s55, %s69
      %p71 = scmp.eq.s32.totalorder %s24, 0
      %p72 = por %p70, %p71
      %s74 = sadd.s32 %s73, 1
      %p77 = scmp.eq.s32.totalorder %s18, 1
      %p78 = scmp.ne.s32.totalorder %s73, %s75
      %p79 = scmp.eq.s32.totalorder %s18, 0
      %p80 = por %p78, %p79
      %p81 = scmp.ne.s32.totalorder %s73, %s75
      %p82 = scmp.eq.s32.totalorder %s23, 1
      %p83 = por %p81, %p82
      %p84 = scmp.ne.s32.totalorder %s75, %s76
      %p85 = scmp.eq.s32.totalorder %s23, 0
      %p86 = por %p84, %p85
      %p87 = scmp.ne.s32.totalorder %s75, %s76
      %p88 = scmp.eq.s32.totalorder %s24, 1
      %p89 = por %p87, %p88
      %p91 = scmp.ne.s32.totalorder %s76, %s90
      %p92 = scmp.eq.s32.totalorder %s24, 0
      %p93 = por %p91, %p92
      %s95 = sadd.s32 %s94, 1
      %p98 = scmp.eq.s32.totalorder %s18, 1
      %p99 = scmp.ne.s32.totalorder %s94, %s96
      %p100 = scmp.eq.s32.totalorder %s18, 0
      %p101 = por %p99, %p100
      %p102 = scmp.ne.s32.totalorder %s94, %s96
      %p103 = scmp.eq.s32.totalorder %s23, 1
      %p104 = por %p102, %p103
      %p105 = scmp.ne.s32.totalorder %s96, %s97
      %p106 = scmp.eq.s32.totalorder %s23, 0
      %p107 = por %p105, %p106
      %p108 = scmp.ne.s32.totalorder %s96, %s97
      %p109 = scmp.eq.s32.totalorder %s24, 1
      %p110 = por %p108, %p109
      %p112 = scmp.ne.s32.totalorder %s97, %s111
      %p113 = scmp.eq.s32.totalorder %s24, 0
      %p114 = por %p112, %p113
      %s116 = sadd.s32 %s115, 1
      %p119 = scmp.eq.s32.totalorder %s18, 1
      %p120 = scmp.ne.s32.totalorder %s115, %s117
      %p121 = scmp.eq.s32.totalorder %s18, 0
      %p122 = por %p120, %p121
      %p123 = scmp.ne.s32.totalorder %s115, %s117
      %p124 = scmp.eq.s32.totalorder %s23, 1
      %p125 = por %p123, %p124
      %p126 = scmp.ne.s32.totalorder %s117, %s118
      %p127 = scmp.eq.s32.totalorder %s23, 0
      %p128 = por %p126, %p127
      %p129 = scmp.ne.s32.totalorder %s117, %s118
      %p130 = scmp.eq.s32.totalorder %s24, 1
      %p131 = por %p129, %p130
      %p133 = scmp.ne.s32.totalorder %s118, %s132
      %p134 = scmp.eq.s32.totalorder %s24, 0
      %p135 = por %p133, %p134
      %s137 = sadd.s32 %s136, 1
      %p140 = scmp.eq.s32.totalorder %s18, 1
      %p141 = scmp.ne.s32.totalorder %s136, %s138
      %p142 = scmp.eq.s32.totalorder %s18, 0
      %p143 = por %p141, %p142
      %p144 = scmp.ne.s32.totalorder %s136, %s138
      %p145 = scmp.eq.s32.totalorder %s23, 1
      %p146 = por %p144, %p145
      %p147 = scmp.ne.s32.totalorder %s138, %s139
      %p148 = scmp.eq.s32.totalorder %s23, 0
      %p149 = por %p147, %p148
      %p150 = scmp.ne.s32.totalorder %s138, %s139
      %p151 = scmp.eq.s32.totalorder %s24, 1
      %p152 = por %p150, %p151
      %p154 = scmp.ne.s32.totalorder %s139, %s153
      %p155 = scmp.eq.s32.totalorder %s24, 0
      %p156 = por %p154, %p155
      %s158 = sadd.s32 %s157, 1
      %p161 = scmp.eq.s32.totalorder %s18, 1
      %p162 = scmp.ne.s32.totalorder %s157, %s159
      %p163 = scmp.eq.s32.totalorder %s18, 0
      %p164 = por %p162, %p163
      %p165 = scmp.ne.s32.totalorder %s157, %s159
      %p166 = scmp.eq.s32.totalorder %s23, 1
      %p167 = por %p165, %p166
      %p168 = scmp.ne.s32.totalorder %s159, %s160
      %p169 = scmp.eq.s32.totalorder %s23, 0
      %p170 = por %p168, %p169
      %p171 = scmp.ne.s32.totalorder %s159, %s160
      %p172 = scmp.eq.s32.totalorder %s24, 1
      %p173 = por %p171, %p172
      %p175 = scmp.ne.s32.totalorder %s160, %s174
      %p176 = scmp.eq.s32.totalorder %s24, 0
      %p177 = por %p175, %p176
      %s179 = sadd.s32 %s178, 1
      %p182 = scmp.eq.s32.totalorder %s18, 1
      %p183 = scmp.ne.s32.totalorder %s178, %s180
      %p184 = scmp.eq.s32.totalorder %s18, 0
      %p185 = por %p183, %p184
      %p186 = scmp.ne.s32.totalorder %s178, %s180
      %p187 = scmp.eq.s32.totalorder %s23, 1
      %p188 = por %p186, %p187
      %p189 = scmp.ne.s32.totalorder %s180, %s181
      %p190 = scmp.eq.s32.totalorder %s23, 0
      %p191 = por %p189, %p190
      %p192 = scmp.ne.s32.totalorder %s180, %s181
      %p193 = scmp.eq.s32.totalorder %s24, 1
      %p194 = por %p192, %p193
      %p196 = scmp.ne.s32.totalorder %s181, %s195
      %p197 = scmp.eq.s32.totalorder %s24, 0
      %p198 = por %p196, %p197
      %s200 = sadd.s32 %s199, 1
      %p203 = scmp.eq.s32.totalorder %s18, 1
      %p204 = scmp.ne.s32.totalorder %s199, %s201
      %p205 = scmp.eq.s32.totalorder %s18, 0
      %p206 = por %p204, %p205
      %p207 = scmp.ne.s32.totalorder %s199, %s201
      %p208 = scmp.eq.s32.totalorder %s23, 1
      %p209 = por %p207, %p208
      %p210 = scmp.ne.s32.totalorder %s201, %s202
      %p211 = scmp.eq.s32.totalorder %s23, 0
      %p212 = por %p210, %p211
      %p213 = scmp.ne.s32.totalorder %s201, %s202
      %p214 = scmp.eq.s32.totalorder %s24, 1
      %p215 = por %p213, %p214
      %p217 = scmp.ne.s32.totalorder %s202, %s216
      %p218 = scmp.eq.s32.totalorder %s24, 0
      %p219 = por %p217, %p218
      %s220 = ssub.s32 %s18, %s25
      %p221 = scmp.eq.s32.totalorder %s220, 0
      %s223 = sadd.s32 %s222, 1
      %s224 = scalar_select %p221, %s222, %s223
      %p227 = pneg %p221
      %p228 = scmp.eq.s32.totalorder %s18, 1
      %p229 = por %p227, %p228
      %p230 = scmp.ne.s32.totalorder %s222, %s225
      %p231 = scmp.eq.s32.totalorder %s18, 0
      %p232 = por %p230, %p231
      %p233 = scmp.ne.s32.totalorder %s222, %s225
      %p234 = scmp.eq.s32.totalorder %s23, 1
      %p235 = por %p233, %p234
      %p236 = scmp.ne.s32.totalorder %s225, %s226
      %p237 = scmp.eq.s32.totalorder %s23, 0
      %p238 = por %p236, %p237
      %p239 = scmp.ne.s32.totalorder %s225, %s226
      %p240 = scmp.eq.s32.totalorder %s24, 1
      %p241 = por %p239, %p240
      %p243 = scmp.ne.s32.totalorder %s226, %s242
      %p244 = scmp.eq.s32.totalorder %s24, 0
      %p245 = por %p243, %p244
      %p246 = scmp.le.s32.totalorder 1, %s18
      %p247 = scmp.lt.s32.totalorder %s18, 3
      %p248 = pnand %p246, %p247
      %p249 = pneg %p248
      // Predicated region
      $region9: #{mnist_net_forward.1} parent=5 // pred_check
        _
      $region10: #{mnist_net_forward.1} parent=5 // pred_check_branch
        %251 = sbr.rel (%p248) target = $region12
      $region11: #{mnist_net_forward.1} parent=5 // pred_region
        %s252 = ssub.s32 %s18, 1
        // Predicated region
        $region13: #{mnist_net_forward.1} parent=11 // pred_check
          %p253 = pneg %p65
        $region14: #{mnist_net_forward.1} parent=11 // pred_check_branch
          %255 = sbr.rel (%p253) target = $region16
        $region15: #{mnist_net_forward.1} parent=11 // pred_region
          _
        $region16: #{mnist_net_forward.1} parent=11 // pred_fallthru
          _
        // Predicated region
        $region17: #{mnist_net_forward.1} parent=11 // pred_check
          %p256 = pneg %p86
        $region18: #{mnist_net_forward.1} parent=11 // pred_check_branch
          %258 = sbr.rel (%p256) target = $region20
        $region19: #{mnist_net_forward.1} parent=11 // pred_region
          _
        $region20: #{mnist_net_forward.1} parent=11 // pred_fallthru
          _
        // Predicated region
        $region21: #{mnist_net_forward.1} parent=11 // pred_check
          %p259 = pneg %p107
        $region22: #{mnist_net_forward.1} parent=11 // pred_check_branch
          %261 = sbr.rel (%p259) target = $region24
        $region23: #{mnist_net_forward.1} parent=11 // pred_region
          _
        $region24: #{mnist_net_forward.1} parent=11 // pred_fallthru
          _
        // Predicated region
        $region25: #{mnist_net_forward.1} parent=11 // pred_check
          %p262 = pneg %p128
        $region26: #{mnist_net_forward.1} parent=11 // pred_check_branch
          %264 = sbr.rel (%p262) target = $region28
        $region27: #{mnist_net_forward.1} parent=11 // pred_region
          _
        $region28: #{mnist_net_forward.1} parent=11 // pred_fallthru
          _
        // Predicated region
        $region29: #{mnist_net_forward.1} parent=11 // pred_check
          %p265 = pneg %p149
        $region30: #{mnist_net_forward.1} parent=11 // pred_check_branch
          %267 = sbr.rel (%p265) target = $region32
        $region31: #{mnist_net_forward.1} parent=11 // pred_region
          _
        $region32: #{mnist_net_forward.1} parent=11 // pred_fallthru
          _
        // Predicated region
        $region33: #{mnist_net_forward.1} parent=11 // pred_check
          %p268 = pneg %p170
        $region34: #{mnist_net_forward.1} parent=11 // pred_check_branch
          %270 = sbr.rel (%p268) target = $region36
        $region35: #{mnist_net_forward.1} parent=11 // pred_region
          _
        $region36: #{mnist_net_forward.1} parent=11 // pred_fallthru
          _
        // Predicated region
        $region37: #{mnist_net_forward.1} parent=11 // pred_check
          %p271 = pneg %p191
        $region38: #{mnist_net_forward.1} parent=11 // pred_check_branch
          %273 = sbr.rel (%p271) target = $region40
        $region39: #{mnist_net_forward.1} parent=11 // pred_region
          _
        $region40: #{mnist_net_forward.1} parent=11 // pred_fallthru
          _
        // Predicated region
        $region41: #{mnist_net_forward.1} parent=11 // pred_check
          %p274 = pneg %p212
        $region42: #{mnist_net_forward.1} parent=11 // pred_check_branch
          %276 = sbr.rel (%p274) target = $region44
        $region43: #{mnist_net_forward.1} parent=11 // pred_region
          _
        $region44: #{mnist_net_forward.1} parent=11 // pred_fallthru
          _
      $region12: #{mnist_net_forward.1} parent=5 // pred_fallthru
        _
      %p277 = scmp.lt.s32.totalorder %s18, 2
      // Predicated region
      $region45: #{mnist_net_forward.1} parent=5 // pred_check
        %p278 = pneg %p277
      $region46: #{mnist_net_forward.1} parent=5 // pred_check_branch
        %280 = sbr.rel (%p278) target = $region48
      $region47: #{mnist_net_forward.1} parent=5 // pred_region
        // Predicated region
        $region49: #{mnist_net_forward.1} parent=47 // pred_check
          %p281 = pneg %p38
        $region50: #{mnist_net_forward.1} parent=47 // pred_check_branch
          %283 = sbr.rel (%p281) target = $region52
        $region51: #{mnist_net_forward.1} parent=47 // pred_region
          %p284 = scmp.lt.s32.totalorder %s18, 1
          %s285 = scalar_select %p284, %s18, 1
          %s286 = smul.addr %s285, 96
          %s287 = smul.addr %s286, 8
          %s288 = scalar_lea.vmem %s0, %s287
        $region52: #{mnist_net_forward.1} parent=47 // pred_fallthru
          _
      $region48: #{mnist_net_forward.1} parent=5 // pred_fallthru
        _
      %p289 = scmp.le.s32.totalorder 1, %s18
      %p290 = scmp.lt.s32.totalorder %s18, 3
      %p291 = pnand %p289, %p290
      %p292 = pneg %p291
      // Predicated region
      $region53: #{mnist_net_forward.1} parent=5 // pred_check
        _
      $region54: #{mnist_net_forward.1} parent=5 // pred_check_branch
        %294 = sbr.rel (%p291) target = $region56
      $region55: #{mnist_net_forward.1} parent=5 // pred_region
        %s295 = ssub.s32 %s18, 1
        %p296 = scmp.lt.s32.totalorder %s23, 1
        %s297 = scalar_select %p296, %s23, 1
        %s298 = smul.addr %s297, 96
        %s299 = smul.addr %s298, 8
        %s300 = scalar_lea.vmem %s0, %s299
        %p301 = pneg %p44
        %p302 = pneg %p41
        %p303 = pneg %p65
        %p304 = pneg %p62
        %p305 = pneg %p86
        %p306 = pneg %p83
        %p307 = pneg %p107
        %p308 = pneg %p104
        %p309 = pneg %p128
        %p310 = pneg %p125
        %p311 = pneg %p149
        %p312 = pneg %p146
        %p313 = pneg %p170
        %p314 = pneg %p167
        %p315 = pneg %p191
        %p316 = pneg %p188
        %p317 = pneg %p212
        %p318 = pneg %p209
        %p319 = pneg %p238
        %p320 = pneg %p235
        %s321 = sand.u32 %s225, 1
        %s322 = scalar_lea.sflag [#allocation6], %s321
        %s323 = sand.u32 %s225, 1
        %s324 = scalar_lea.vmem [#allocation5], %s323
        %p325 = scmp.lt.s32.totalorder %s23, 1
        %s326 = scalar_select %p325, %s23, 1
        %s327 = smul.addr %s326, 96
        %s328 = smul.addr %s327, 8
        %s329 = scalar_lea.vmem %s0, %s328
        %v330 = vld [vmem:[%s329] sm:$0xff]
        %v331 = vld [vmem:[%s329 + $0x8] sm:$0xff]
        %v332 = vld [vmem:[%s329 + $0x10] sm:$0xff]
        %v333 = vld [vmem:[%s329 + $0x18] sm:$0xff]
        %v334 = vld [vmem:[%s329 + $0x20] sm:$0xff]
        %v335 = vld [vmem:[%s329 + $0x28] sm:$0xff]
        %v336 = vld [vmem:[%s329 + $0x30] sm:$0xff]
        %v337 = vld [vmem:[%s329 + $0x38] sm:$0xff]
        %v338 = vld [vmem:[%s329 + $0x40] sm:$0xff]
        %v339 = vld [vmem:[%s329 + $0x48] sm:$0xff]
        %v340 = vld [vmem:[%s329 + $0x50] sm:$0xff]
        %v341 = vld [vmem:[%s329 + $0x58] sm:$0xff]
        %v342 = vld [vmem:[%s329 + $0x60] sm:$0xff]
        %v343 = vld [vmem:[%s329 + $0x68] sm:$0xff]
        %v344 = vld [vmem:[%s329 + $0x70] sm:$0xff]
        %v345 = vld [vmem:[%s329 + $0x78] sm:$0xff]
        %v346 = vld [vmem:[%s329 + $0x80] sm:$0xff]
        %v347 = vld [vmem:[%s329 + $0x88] sm:$0xff]
        %v348 = vld [vmem:[%s329 + $0x90] sm:$0xff]
        %v349 = vld [vmem:[%s329 + $0x98] sm:$0xff]
        %v350 = vld [vmem:[%s329 + $0xa0] sm:$0xff]
        %v351 = vld [vmem:[%s329 + $0xa8] sm:$0xff]
        %v352 = vld [vmem:[%s329 + $0xb0] sm:$0xff]
        %v353 = vld [vmem:[%s329 + $0xb8] sm:$0xff]
        %v354 = vld [vmem:[%s329 + $0xc0] sm:$0xff]
        %v355 = vld [vmem:[%s329 + $0xc8] sm:$0xff]
        %v356 = vld [vmem:[%s329 + $0xd0] sm:$0xff]
        %v357 = vld [vmem:[%s329 + $0xd8] sm:$0xff]
        %v358 = vld [vmem:[%s329 + $0xe0] sm:$0xff]
        %v359 = vld [vmem:[%s329 + $0xe8] sm:$0xff]
        %v360 = vld [vmem:[%s329 + $0xf0] sm:$0xff]
        %v361 = vld [vmem:[%s329 + $0xf8] sm:$0xff]
        %v362 = vld [vmem:[%s329 + $0x100] sm:$0xff]
        %v363 = vld [vmem:[%s329 + $0x108] sm:$0xff]
        %v364 = vld [vmem:[%s329 + $0x110] sm:$0xff]
        %v365 = vld [vmem:[%s329 + $0x118] sm:$0xff]
        %v366 = vld [vmem:[%s329 + $0x120] sm:$0xff]
        %v367 = vld [vmem:[%s329 + $0x128] sm:$0xff]
        %v368 = vld [vmem:[%s329 + $0x130] sm:$0xff]
        %v369 = vld [vmem:[%s329 + $0x138] sm:$0xff]
        %v370 = vld [vmem:[%s329 + $0x140] sm:$0xff]
        %v371 = vld [vmem:[%s329 + $0x148] sm:$0xff]
        %v372 = vld [vmem:[%s329 + $0x150] sm:$0xff]
        %v373 = vld [vmem:[%s329 + $0x158] sm:$0xff]
        %v374 = vld [vmem:[%s329 + $0x160] sm:$0xff]
        %v375 = vld [vmem:[%s329 + $0x168] sm:$0xff]
        %v376 = vld [vmem:[%s329 + $0x170] sm:$0xff]
        %v377 = vld [vmem:[%s329 + $0x178] sm:$0xff]
        %v378 = vld [vmem:[%s329 + $0x180] sm:$0xff]
        %v379 = vld [vmem:[%s329 + $0x188] sm:$0xff]
        %v380 = vld [vmem:[%s329 + $0x190] sm:$0xff]
        %v381 = vld [vmem:[%s329 + $0x198] sm:$0xff]
        %v382 = vld [vmem:[%s329 + $0x1a0] sm:$0xff]
        %v383 = vld [vmem:[%s329 + $0x1a8] sm:$0xff]
        %v384 = vld [vmem:[%s329 + $0x1b0] sm:$0xff]
        %v385 = vld [vmem:[%s329 + $0x1b8] sm:$0xff]
        %v386 = vld [vmem:[%s329 + $0x1c0] sm:$0xff]
        %v387 = vld [vmem:[%s329 + $0x1c8] sm:$0xff]
        %v388 = vld [vmem:[%s329 + $0x1d0] sm:$0xff]
        %v389 = vld [vmem:[%s329 + $0x1d8] sm:$0xff]
        %v390 = vld [vmem:[%s329 + $0x1e0] sm:$0xff]
        %v391 = vld [vmem:[%s329 + $0x1e8] sm:$0xff]
        %v392 = vld [vmem:[%s329 + $0x1f0] sm:$0xff]
        %v393 = vld [vmem:[%s329 + $0x1f8] sm:$0xff]
        %v394 = vld [vmem:[%s329 + $0x200] sm:$0xff]
        %v395 = vld [vmem:[%s329 + $0x208] sm:$0xff]
        %v396 = vld [vmem:[%s329 + $0x210] sm:$0xff]
        %v397 = vld [vmem:[%s329 + $0x218] sm:$0xff]
        %v398 = vld [vmem:[%s329 + $0x220] sm:$0xff]
        %v399 = vld [vmem:[%s329 + $0x228] sm:$0xff]
        %v400 = vld [vmem:[%s329 + $0x230] sm:$0xff]
        %v401 = vld [vmem:[%s329 + $0x238] sm:$0xff]
        %v402 = vld [vmem:[%s329 + $0x240] sm:$0xff]
        %v403 = vld [vmem:[%s329 + $0x248] sm:$0xff]
        %v404 = vld [vmem:[%s329 + $0x250] sm:$0xff]
        %v405 = vld [vmem:[%s329 + $0x258] sm:$0xff]
        %v406 = vld [vmem:[%s329 + $0x260] sm:$0xff]
        %v407 = vld [vmem:[%s329 + $0x268] sm:$0xff]
        %v408 = vld [vmem:[%s329 + $0x270] sm:$0xff]
        %v409 = vld [vmem:[%s329 + $0x278] sm:$0xff]
        %v410 = vld [vmem:[%s329 + $0x280] sm:$0xff]
        %v411 = vld [vmem:[%s329 + $0x288] sm:$0xff]
        %v412 = vld [vmem:[%s329 + $0x290] sm:$0xff]
        %v413 = vld [vmem:[%s329 + $0x298] sm:$0xff]
        %v414 = vld [vmem:[%s329 + $0x2a0] sm:$0xff]
        %v415 = vld [vmem:[%s329 + $0x2a8] sm:$0xff]
        %v416 = vld [vmem:[%s329 + $0x2b0] sm:$0xff]
        %v417 = vld [vmem:[%s329 + $0x2b8] sm:$0xff]
        %v418 = vld [vmem:[%s329 + $0x2c0] sm:$0xff]
        %v419 = vld [vmem:[%s329 + $0x2c8] sm:$0xff]
        %v420 = vld [vmem:[%s329 + $0x2d0] sm:$0xff]
        %v421 = vld [vmem:[%s329 + $0x2d8] sm:$0xff]
        %v422 = vld [vmem:[%s329 + $0x2e0] sm:$0xff]
        %v423 = vld [vmem:[%s329 + $0x2e8] sm:$0xff]
        %v424 = vld [vmem:[%s329 + $0x2f0] sm:$0xff]
        %v425 = vld [vmem:[%s329 + $0x2f8] sm:$0xff]
        %v426 = vld [vmem:[%s1] sm:$0xff]
        %v427 = vld [vmem:[%s1 + $0x8] sm:$0xff]
        %v428 = vld [vmem:[%s1 + $0x10] sm:$0xff]
        %v429 = vld [vmem:[%s1 + $0x18] sm:$0x1]
        %vm430 = vcmask 203776
        %v432 = vsel %vm430, %v330, 0
        %v435 = vsel %vm430, %v331, 0
        %v438 = vsel %vm430, %v332, 0
        %v441 = vsel %vm430, %v333, 0
        %v444 = vsel %vm430, %v334, 0
        %v447 = vsel %vm430, %v335, 0
        %v450 = vsel %vm430, %v336, 0
        %v453 = vsel %vm430, %v337, 0
        %v456 = vsel %vm430, %v338, 0
        %v459 = vsel %vm430, %v339, 0
        %v462 = vsel %vm430, %v340, 0
        %v465 = vsel %vm430, %v341, 0
        %v468 = vsel %vm430, %v342, 0
        %v471 = vsel %vm430, %v343, 0
        %v474 = vsel %vm430, %v344, 0
        %v477 = vsel %vm430, %v345, 0
        %v480 = vsel %vm430, %v346, 0
        %v483 = vsel %vm430, %v347, 0
        %v486 = vsel %vm430, %v348, 0
        %v489 = vsel %vm430, %v349, 0
        %v492 = vsel %vm430, %v350, 0
        %v495 = vsel %vm430, %v351, 0
        %v498 = vsel %vm430, %v352, 0
        %v501 = vsel %vm430, %v353, 0
        %v504 = vsel %vm430, %v354, 0
        %v507 = vsel %vm430, %v355, 0
        %v510 = vsel %vm430, %v356, 0
        %v513 = vsel %vm430, %v357, 0
        %v516 = vsel %vm430, %v358, 0
        %v519 = vsel %vm430, %v359, 0
        %v522 = vsel %vm430, %v360, 0
        %v525 = vsel %vm430, %v361, 0
        %v528 = vsel %vm430, %v362, 0
        %v531 = vsel %vm430, %v363, 0
        %v534 = vsel %vm430, %v364, 0
        %v537 = vsel %vm430, %v365, 0
        %v540 = vsel %vm430, %v366, 0
        %v543 = vsel %vm430, %v367, 0
        %v546 = vsel %vm430, %v368, 0
        %v549 = vsel %vm430, %v369, 0
        %v552 = vsel %vm430, %v370, 0
        %v555 = vsel %vm430, %v371, 0
        %v558 = vsel %vm430, %v372, 0
        %v561 = vsel %vm430, %v373, 0
        %v564 = vsel %vm430, %v374, 0
        %v567 = vsel %vm430, %v375, 0
        %v570 = vsel %vm430, %v376, 0
        %v573 = vsel %vm430, %v377, 0
        %v576 = vsel %vm430, %v378, 0
        %v579 = vsel %vm430, %v379, 0
        %v582 = vsel %vm430, %v380, 0
        %v585 = vsel %vm430, %v381, 0
        %v588 = vsel %vm430, %v382, 0
        %v591 = vsel %vm430, %v383, 0
        %v594 = vsel %vm430, %v384, 0
        %v597 = vsel %vm430, %v385, 0
        %v600 = vsel %vm430, %v386, 0
        %v603 = vsel %vm430, %v387, 0
        %v606 = vsel %vm430, %v388, 0
        %v609 = vsel %vm430, %v389, 0
        %v612 = vsel %vm430, %v390, 0
        %v615 = vsel %vm430, %v391, 0
        %v618 = vsel %vm430, %v392, 0
        %v621 = vsel %vm430, %v393, 0
        %v624 = vsel %vm430, %v394, 0
        %v627 = vsel %vm430, %v395, 0
        %v630 = vsel %vm430, %v396, 0
        %v633 = vsel %vm430, %v397, 0
        %v636 = vsel %vm430, %v398, 0
        %v639 = vsel %vm430, %v399, 0
        %v642 = vsel %vm430, %v400, 0
        %v645 = vsel %vm430, %v401, 0
        %v648 = vsel %vm430, %v402, 0
        %v651 = vsel %vm430, %v403, 0
        %v654 = vsel %vm430, %v404, 0
        %v657 = vsel %vm430, %v405, 0
        %v660 = vsel %vm430, %v406, 0
        %v663 = vsel %vm430, %v407, 0
        %v666 = vsel %vm430, %v408, 0
        %v669 = vsel %vm430, %v409, 0
        %v672 = vsel %vm430, %v410, 0
        %v675 = vsel %vm430, %v411, 0
        %v678 = vsel %vm430, %v412, 0
        %v681 = vsel %vm430, %v413, 0
        %v684 = vsel %vm430, %v414, 0
        %v687 = vsel %vm430, %v415, 0
        %v690 = vsel %vm430, %v416, 0
        %v693 = vsel %vm430, %v417, 0
        %v696 = vsel %vm430, %v418, 0
        %v699 = vsel %vm430, %v419, 0
        %v702 = vsel %vm430, %v420, 0
        %v705 = vsel %vm430, %v421, 0
        %v708 = vsel %vm430, %v422, 0
        %v711 = vsel %vm430, %v423, 0
        %v714 = vsel %vm430, %v424, 0
        %v717 = vsel %vm430, %v425, 0
        %vm719 = vcmask 1040384
        %v721 = vsel %vm719, %v429, 0
        %723 = vmatprep.subr.mxu0 0.0
        %724 = vmatpush1.msra.mxu0 %v426
        %725 = vmatprep.subr.mxu0 0.0
        %726 = vmatpush1.msra.mxu0 %v427
        %727 = vmatprep.subr.mxu0 0.0
        %728 = vmatpush1.msra.mxu0 %v428
        %729 = vmatprep.subr.mxu0 0.0
        %730 = vmatpush1.msra.mxu0 %v721
        %731 = vmatprep.subr.mxu0 0.0
        %732 = vmatpush1.msra.mxu0 0.0
        %733 = vmatprep.subr.mxu0 0.0
        %734 = vmatpush1.msra.mxu0 0.0
        %735 = vmatprep.subr.mxu0 0.0
        %736 = vmatpush1.msra.mxu0 0.0
        %737 = vmatprep.subr.mxu0 0.0
        %738 = vmatpush1.msra.mxu0 0.0
        %739 = vmatprep.subr.mxu0 0.0
        %740 = vmatpush1.msra.mxu0 0.0
        %741 = vmatprep.subr.mxu0 0.0
        %742 = vmatpush1.msra.mxu0 0.0
        %743 = vmatprep.subr.mxu0 0.0
        %744 = vmatpush1.msra.mxu0 0.0
        %745 = vmatprep.subr.mxu0 0.0
        %746 = vmatpush1.msra.mxu0 0.0
        %747 = vmatprep.subr.mxu0 0.0
        %748 = vmatpush1.msra.mxu0 0.0
        %749 = vmatprep.subr.mxu0 0.0
        %750 = vmatpush1.msra.mxu0 0.0
        %751 = vmatprep.subr.mxu0 0.0
        %752 = vmatpush1.msra.mxu0 0.0
        %753 = vmatprep.subr.mxu0 0.0
        %754 = vmatpush1.msra.mxu0 0.0
        %755 = vmatprep.subr.mxu0 0.0
        %756 = vmatpush1.msra.mxu0 0.0
        %757 = vmatprep.subr.mxu0 0.0
        %758 = vmatpush1.msra.mxu0 0.0
        %759 = vmatprep.subr.mxu0 0.0
        %760 = vmatpush1.msra.mxu0 0.0
        %761 = vmatprep.subr.mxu0 0.0
        %762 = vmatpush1.msra.mxu0 0.0
        %763 = vmatprep.subr.mxu0 0.0
        %764 = vmatpush1.msra.mxu0 0.0
        %765 = vmatprep.subr.mxu0 0.0
        %766 = vmatpush1.msra.mxu0 0.0
        %767 = vmatprep.subr.mxu0 0.0
        %768 = vmatpush1.msra.mxu0 0.0
        %769 = vmatprep.subr.mxu0 0.0
        %770 = vmatpush1.msra.mxu0 0.0
        %771 = vmatprep.subr.mxu0 0.0
        %772 = vmatpush1.msra.mxu0 0.0
        %773 = vmatprep.subr.mxu0 0.0
        %774 = vmatpush1.msra.mxu0 0.0
        %775 = vmatprep.subr.mxu0 0.0
        %776 = vmatpush1.msra.mxu0 0.0
        %777 = vmatprep.subr.mxu0 0.0
        %778 = vmatpush1.msra.mxu0 0.0
        %779 = vmatprep.subr.mxu0 0.0
        %780 = vmatpush1.msra.mxu0 0.0
        %781 = vmatprep.subr.mxu0 0.0
        %782 = vmatpush1.msra.mxu0 0.0
        %783 = vmatprep.subr.mxu0 0.0
        %784 = vmatpush1.msra.mxu0 0.0
        %785 = vmatprep.subr.mxu0 0.0
        %786 = vmatpush1.msra.mxu0 0.0
        %787 = vmatprep.mubr.f32.mxu0 0.0
        %788 = vmatmul.mubr.f32.gmra.mrb[0].mxu0 %v432
        %v789 = vpop.f32.mrb[0].mxu0
        %v790 = vadd.f32 0.0, %v789
        %v791 = vpop.f32.mrb[0].mxu0
        %792 = vmatprep.mubr.f32.mxu0 0.0
        %793 = vmatmul.mubr.f32.gmra.mrb[0].mxu0 %v435
        %v794 = vpop.f32.mrb[0].mxu0
        %v795 = vadd.f32 0.0, %v794
        %v796 = vpop.f32.mrb[0].mxu0
        %797 = vmatprep.mubr.f32.mxu0 0.0
        %798 = vmatmul.mubr.f32.gmra.mrb[0].mxu0 %v438
        %v799 = vpop.f32.mrb[0].mxu0
        %v800 = vadd.f32 0.0, %v799
        %v801 = vpop.f32.mrb[0].mxu0
        %802 = vmatprep.mubr.f32.mxu0 0.0
        %803 = vmatmul.mubr.f32.gmra.mrb[0].mxu0 %v441
        %v804 = vpop.f32.mrb[0].mxu0
        %v805 = vadd.f32 0.0, %v804
        %v806 = vpop.f32.mrb[0].mxu0
        %807 = vmatprep.mubr.f32.mxu0 0.0
        %808 = vmatmul.mubr.f32.gmra.mrb[0].mxu0 %v444
        %v809 = vpop.f32.mrb[0].mxu0
        %v810 = vadd.f32 0.0, %v809
        %v811 = vpop.f32.mrb[0].mxu0
        %812 = vmatprep.mubr.f32.mxu0 0.0
        %813 = vmatmul.mubr.f32.gmra.mrb[0].mxu0 %v447
        %v814 = vpop.f32.mrb[0].mxu0
        %v815 = vadd.f32 0.0, %v814
        %v816 = vpop.f32.mrb[0].mxu0
        %817 = vmatprep.mubr.f32.mxu0 0.0
        %818 = vmatmul.mubr.f32.gmra.mrb[0].mxu0 %v450
        %v819 = vpop.f32.mrb[0].mxu0
        %v820 = vadd.f32 0.0, %v819
        %v821 = vpop.f32.mrb[0].mxu0
        %822 = vmatprep.mubr.f32.mxu0 0.0
        %823 = vmatmul.mubr.f32.gmra.mrb[0].mxu0 %v453
        %v824 = vpop.f32.mrb[0].mxu0
        %v825 = vadd.f32 0.0, %v824
        %v826 = vpop.f32.mrb[0].mxu0
        %827 = vmatprep.mubr.f32.mxu0 0.0
        %828 = vmatmul.mubr.f32.gmra.mrb[0].mxu0 %v456
        %v829 = vpop.f32.mrb[0].mxu0
        %v830 = vadd.f32 0.0, %v829
        %v831 = vpop.f32.mrb[0].mxu0
        %832 = vmatprep.mubr.f32.mxu0 0.0
        %833 = vmatmul.mubr.f32.gmra.mrb[0].mxu0 %v459
        %v834 = vpop.f32.mrb[0].mxu0
        %v835 = vadd.f32 0.0, %v834
        %v836 = vpop.f32.mrb[0].mxu0
        %837 = vmatprep.mubr.f32.mxu0 0.0
        %838 = vmatmul.mubr.f32.gmra.mrb[0].mxu0 %v462
        %v839 = vpop.f32.mrb[0].mxu0
        %v840 = vadd.f32 0.0, %v839
        %v841 = vpop.f32.mrb[0].mxu0
        %842 = vmatprep.mubr.f32.mxu0 0.0
        %843 = vmatmul.mubr.f32.gmra.mrb[0].mxu0 %v465
        %v844 = vpop.f32.mrb[0].mxu0
        %v845 = vadd.f32 0.0, %v844
        %v846 = vpop.f32.mrb[0].mxu0
        %847 = vmatprep.mubr.f32.mxu0 0.0
        %848 = vmatmul.mubr.f32.gmra.mrb[0].mxu0 %v468
        %v849 = vpop.f32.mrb[0].mxu0
        %v850 = vadd.f32 0.0, %v849
        %v851 = vpop.f32.mrb[0].mxu0
        %852 = vmatprep.mubr.f32.mxu0 0.0
        %853 = vmatmul.mubr.f32.gmra.mrb[0].mxu0 %v471
        %v854 = vpop.f32.mrb[0].mxu0
        %v855 = vadd.f32 0.0, %v854
        %v856 = vpop.f32.mrb[0].mxu0
        %857 = vmatprep.mubr.f32.mxu0 0.0
        %858 = vmatmul.mubr.f32.gmra.mrb[0].mxu0 %v474
        %v859 = vpop.f32.mrb[0].mxu0
        %v860 = vadd.f32 0.0, %v859
        %v861 = vpop.f32.mrb[0].mxu0
        %862 = vmatprep.mubr.f32.mxu0 0.0
        %863 = vmatmul.mubr.f32.gmra.mrb[0].mxu0 %v477
        %v864 = vpop.f32.mrb[0].mxu0
        %v865 = vadd.f32 0.0, %v864
        %v866 = vpop.f32.mrb[0].mxu0
        %867 = vmatprep.mubr.f32.mxu0 0.0
        %868 = vmatmul.mubr.f32.gmra.mrb[0].mxu0 %v480
        %v869 = vpop.f32.mrb[0].mxu0
        %v870 = vadd.f32 0.0, %v869
        %v871 = vpop.f32.mrb[0].mxu0
        %872 = vmatprep.mubr.f32.mxu0 0.0
        %873 = vmatmul.mubr.f32.gmra.mrb[0].mxu0 %v483
        %v874 = vpop.f32.mrb[0].mxu0
        %v875 = vadd.f32 0.0, %v874
        %v876 = vpop.f32.mrb[0].mxu0
        %877 = vmatprep.mubr.f32.mxu0 0.0
        %878 = vmatmul.mubr.f32.gmra.mrb[0].mxu0 %v486
        %v879 = vpop.f32.mrb[0].mxu0
        %v880 = vadd.f32 0.0, %v879
        %v881 = vpop.f32.mrb[0].mxu0
        %882 = vmatprep.mubr.f32.mxu0 0.0
        %883 = vmatmul.mubr.f32.gmra.mrb[0].mxu0 %v489
        %v884 = vpop.f32.mrb[0].mxu0
        %v885 = vadd.f32 0.0, %v884
        %v886 = vpop.f32.mrb[0].mxu0
        %887 = vmatprep.mubr.f32.mxu0 0.0
        %888 = vmatmul.mubr.f32.gmra.mrb[0].mxu0 %v492
        %v889 = vpop.f32.mrb[0].mxu0
        %v890 = vadd.f32 0.0, %v889
        %v891 = vpop.f32.mrb[0].mxu0
        %892 = vmatprep.mubr.f32.mxu0 0.0
        %893 = vmatmul.mubr.f32.gmra.mrb[0].mxu0 %v495
        %v894 = vpop.f32.mrb[0].mxu0
        %v895 = vadd.f32 0.0, %v894
        %v896 = vpop.f32.mrb[0].mxu0
        %897 = vmatprep.mubr.f32.mxu0 0.0
        %898 = vmatmul.mubr.f32.gmra.mrb[0].mxu0 %v498
        %v899 = vpop.f32.mrb[0].mxu0
        %v900 = vadd.f32 0.0, %v899
        %v901 = vpop.f32.mrb[0].mxu0
        %902 = vmatprep.mubr.f32.mxu0 0.0
        %903 = vmatmul.mubr.f32.gmra.mrb[0].mxu0 %v501
        %v904 = vpop.f32.mrb[0].mxu0
        %v905 = vadd.f32 0.0, %v904
        %v906 = vpop.f32.mrb[0].mxu0
        %907 = vmatprep.mubr.f32.mxu0 0.0
        %908 = vmatmul.mubr.f32.gmra.mrb[0].mxu0 %v504
        %v909 = vpop.f32.mrb[0].mxu0
        %v910 = vadd.f32 0.0, %v909
        %v911 = vpop.f32.mrb[0].mxu0
        %912 = vmatprep.mubr.f32.mxu0 0.0
        %913 = vmatmul.mubr.f32.gmra.mrb[0].mxu0 %v507
        %v914 = vpop.f32.mrb[0].mxu0
        %v915 = vadd.f32 0.0, %v914
        %v916 = vpop.f32.mrb[0].mxu0
        %917 = vmatprep.mubr.f32.mxu0 0.0
        %918 = vmatmul.mubr.f32.gmra.mrb[0].mxu0 %v510
        %v919 = vpop.f32.mrb[0].mxu0
        %v920 = vadd.f32 0.0, %v919
        %v921 = vpop.f32.mrb[0].mxu0
        %922 = vmatprep.mubr.f32.mxu0 0.0
        %923 = vmatmul.mubr.f32.gmra.mrb[0].mxu0 %v513
        %v924 = vpop.f32.mrb[0].mxu0
        %v925 = vadd.f32 0.0, %v924
        %v926 = vpop.f32.mrb[0].mxu0
        %927 = vmatprep.mubr.f32.mxu0 0.0
        %928 = vmatmul.mubr.f32.gmra.mrb[0].mxu0 %v516
        %v929 = vpop.f32.mrb[0].mxu0
        %v930 = vadd.f32 0.0, %v929
        %v931 = vpop.f32.mrb[0].mxu0
        %932 = vmatprep.mubr.f32.mxu0 0.0
        %933 = vmatmul.mubr.f32.gmra.mrb[0].mxu0 %v519
        %v934 = vpop.f32.mrb[0].mxu0
        %v935 = vadd.f32 0.0, %v934
        %v936 = vpop.f32.mrb[0].mxu0
        %937 = vmatprep.mubr.f32.mxu0 0.0
        %938 = vmatmul.mubr.f32.gmra.mrb[0].mxu0 %v522
        %v939 = vpop.f32.mrb[0].mxu0
        %v940 = vadd.f32 0.0, %v939
        %v941 = vpop.f32.mrb[0].mxu0
        %942 = vmatprep.mubr.f32.mxu0 0.0
        %943 = vmatmul.mubr.f32.gmra.mrb[0].mxu0 %v525
        %v944 = vpop.f32.mrb[0].mxu0
        %v945 = vadd.f32 0.0, %v944
        %v946 = vpop.f32.mrb[0].mxu0
        %947 = vmatprep.mubr.f32.mxu0 0.0
        %948 = vmatmul.mubr.f32.gmra.mrb[0].mxu0 %v528
        %v949 = vpop.f32.mrb[0].mxu0
        %v950 = vadd.f32 0.0, %v949
        %v951 = vpop.f32.mrb[0].mxu0
        %952 = vmatprep.mubr.f32.mxu0 0.0
        %953 = vmatmul.mubr.f32.gmra.mrb[0].mxu0 %v531
        %v954 = vpop.f32.mrb[0].mxu0
        %v955 = vadd.f32 0.0, %v954
        %v956 = vpop.f32.mrb[0].mxu0
        %957 = vmatprep.mubr.f32.mxu0 0.0
        %958 = vmatmul.mubr.f32.gmra.mrb[0].mxu0 %v534
        %v959 = vpop.f32.mrb[0].mxu0
        %v960 = vadd.f32 0.0, %v959
        %v961 = vpop.f32.mrb[0].mxu0
        %962 = vmatprep.mubr.f32.mxu0 0.0
        %963 = vmatmul.mubr.f32.gmra.mrb[0].mxu0 %v537
        %v964 = vpop.f32.mrb[0].mxu0
        %v965 = vadd.f32 0.0, %v964
        %v966 = vpop.f32.mrb[0].mxu0
        %967 = vmatprep.mubr.f32.mxu0 0.0
        %968 = vmatmul.mubr.f32.gmra.mrb[0].mxu0 %v540
        %v969 = vpop.f32.mrb[0].mxu0
        %v970 = vadd.f32 0.0, %v969
        %v971 = vpop.f32.mrb[0].mxu0
        %972 = vmatprep.mubr.f32.mxu0 0.0
        %973 = vmatmul.mubr.f32.gmra.mrb[0].mxu0 %v543
        %v974 = vpop.f32.mrb[0].mxu0
        %v975 = vadd.f32 0.0, %v974
        %v976 = vpop.f32.mrb[0].mxu0
        %977 = vmatprep.mubr.f32.mxu0 0.0
        %978 = vmatmul.mubr.f32.gmra.mrb[0].mxu0 %v546
        %v979 = vpop.f32.mrb[0].mxu0
        %v980 = vadd.f32 0.0, %v979
        %v981 = vpop.f32.mrb[0].mxu0
        %982 = vmatprep.mubr.f32.mxu0 0.0
        %983 = vmatmul.mubr.f32.gmra.mrb[0].mxu0 %v549
        %v984 = vpop.f32.mrb[0].mxu0
        %v985 = vadd.f32 0.0, %v984
        %v986 = vpop.f32.mrb[0].mxu0
        %987 = vmatprep.mubr.f32.mxu0 0.0
        %988 = vmatmul.mubr.f32.gmra.mrb[0].mxu0 %v552
        %v989 = vpop.f32.mrb[0].mxu0
        %v990 = vadd.f32 0.0, %v989
        %v991 = vpop.f32.mrb[0].mxu0
        %992 = vmatprep.mubr.f32.mxu0 0.0
        %993 = vmatmul.mubr.f32.gmra.mrb[0].mxu0 %v555
        %v994 = vpop.f32.mrb[0].mxu0
        %v995 = vadd.f32 0.0, %v994
        %v996 = vpop.f32.mrb[0].mxu0
        %997 = vmatprep.mubr.f32.mxu0 0.0
        %998 = vmatmul.mubr.f32.gmra.mrb[0].mxu0 %v558
        %v999 = vpop.f32.mrb[0].mxu0
        %v1000 = vadd.f32 0.0, %v999
        %v1001 = vpop.f32.mrb[0].mxu0
        %1002 = vmatprep.mubr.f32.mxu0 0.0
        %1003 = vmatmul.mubr.f32.gmra.mrb[0].mxu0 %v561
        %v1004 = vpop.f32.mrb[0].mxu0
        %v1005 = vadd.f32 0.0, %v1004
        %v1006 = vpop.f32.mrb[0].mxu0
        %1007 = vmatprep.mubr.f32.mxu0 0.0
        %1008 = vmatmul.mubr.f32.gmra.mrb[0].mxu0 %v564
        %v1009 = vpop.f32.mrb[0].mxu0
        %v1010 = vadd.f32 0.0, %v1009
        %v1011 = vpop.f32.mrb[0].mxu0
        %1012 = vmatprep.mubr.f32.mxu0 0.0
        %1013 = vmatmul.mubr.f32.gmra.mrb[0].mxu0 %v567
        %v1014 = vpop.f32.mrb[0].mxu0
        %v1015 = vadd.f32 0.0, %v1014
        %v1016 = vpop.f32.mrb[0].mxu0
        %1017 = vmatprep.mubr.f32.mxu0 0.0
        %1018 = vmatmul.mubr.f32.gmra.mrb[0].mxu0 %v570
        %v1019 = vpop.f32.mrb[0].mxu0
        %v1020 = vadd.f32 0.0, %v1019
        %v1021 = vpop.f32.mrb[0].mxu0
        %1022 = vmatprep.mubr.f32.mxu0 0.0
        %1023 = vmatmul.mubr.f32.gmra.mrb[0].mxu0 %v573
        %v1024 = vpop.f32.mrb[0].mxu0
        %v1025 = vadd.f32 0.0, %v1024
        %v1026 = vpop.f32.mrb[0].mxu0
        %1027 = vmatprep.mubr.f32.mxu0 0.0
        %1028 = vmatmul.mubr.f32.gmra.mrb[0].mxu0 %v576
        %v1029 = vpop.f32.mrb[0].mxu0
        %v1030 = vadd.f32 0.0, %v1029
        %v1031 = vpop.f32.mrb[0].mxu0
        %1032 = vmatprep.mubr.f32.mxu0 0.0
        %1033 = vmatmul.mubr.f32.gmra.mrb[0].mxu0 %v579
        %v1034 = vpop.f32.mrb[0].mxu0
        %v1035 = vadd.f32 0.0, %v1034
        %v1036 = vpop.f32.mrb[0].mxu0
        %1037 = vmatprep.mubr.f32.mxu0 0.0
        %1038 = vmatmul.mubr.f32.gmra.mrb[0].mxu0 %v582
        %v1039 = vpop.f32.mrb[0].mxu0
        %v1040 = vadd.f32 0.0, %v1039
        %v1041 = vpop.f32.mrb[0].mxu0
        %1042 = vmatprep.mubr.f32.mxu0 0.0
        %1043 = vmatmul.mubr.f32.gmra.mrb[0].mxu0 %v585
        %v1044 = vpop.f32.mrb[0].mxu0
        %v1045 = vadd.f32 0.0, %v1044
        %v1046 = vpop.f32.mrb[0].mxu0
        %1047 = vmatprep.mubr.f32.mxu0 0.0
        %1048 = vmatmul.mubr.f32.gmra.mrb[0].mxu0 %v588
        %v1049 = vpop.f32.mrb[0].mxu0
        %v1050 = vadd.f32 0.0, %v1049
        %v1051 = vpop.f32.mrb[0].mxu0
        %1052 = vmatprep.mubr.f32.mxu0 0.0
        %1053 = vmatmul.mubr.f32.gmra.mrb[0].mxu0 %v591
        %v1054 = vpop.f32.mrb[0].mxu0
        %v1055 = vadd.f32 0.0, %v1054
        %v1056 = vpop.f32.mrb[0].mxu0
        %1057 = vmatprep.mubr.f32.mxu0 0.0
        %1058 = vmatmul.mubr.f32.gmra.mrb[0].mxu0 %v594
        %v1059 = vpop.f32.mrb[0].mxu0
        %v1060 = vadd.f32 0.0, %v1059
        %v1061 = vpop.f32.mrb[0].mxu0
        %1062 = vmatprep.mubr.f32.mxu0 0.0
        %1063 = vmatmul.mubr.f32.gmra.mrb[0].mxu0 %v597
        %v1064 = vpop.f32.mrb[0].mxu0
        %v1065 = vadd.f32 0.0, %v1064
        %v1066 = vpop.f32.mrb[0].mxu0
        %1067 = vmatprep.mubr.f32.mxu0 0.0
        %1068 = vmatmul.mubr.f32.gmra.mrb[0].mxu0 %v600
        %v1069 = vpop.f32.mrb[0].mxu0
        %v1070 = vadd.f32 0.0, %v1069
        %v1071 = vpop.f32.mrb[0].mxu0
        %1072 = vmatprep.mubr.f32.mxu0 0.0
        %1073 = vmatmul.mubr.f32.gmra.mrb[0].mxu0 %v603
        %v1074 = vpop.f32.mrb[0].mxu0
        %v1075 = vadd.f32 0.0, %v1074
        %v1076 = vpop.f32.mrb[0].mxu0
        %1077 = vmatprep.mubr.f32.mxu0 0.0
        %1078 = vmatmul.mubr.f32.gmra.mrb[0].mxu0 %v606
        %v1079 = vpop.f32.mrb[0].mxu0
        %v1080 = vadd.f32 0.0, %v1079
        %v1081 = vpop.f32.mrb[0].mxu0
        %1082 = vmatprep.mubr.f32.mxu0 0.0
        %1083 = vmatmul.mubr.f32.gmra.mrb[0].mxu0 %v609
        %v1084 = vpop.f32.mrb[0].mxu0
        %v1085 = vadd.f32 0.0, %v1084
        %v1086 = vpop.f32.mrb[0].mxu0
        %1087 = vmatprep.mubr.f32.mxu0 0.0
        %1088 = vmatmul.mubr.f32.gmra.mrb[0].mxu0 %v612
        %v1089 = vpop.f32.mrb[0].mxu0
        %v1090 = vadd.f32 0.0, %v1089
        %v1091 = vpop.f32.mrb[0].mxu0
        %1092 = vmatprep.mubr.f32.mxu0 0.0
        %1093 = vmatmul.mubr.f32.gmra.mrb[0].mxu0 %v615
        %v1094 = vpop.f32.mrb[0].mxu0
        %v1095 = vadd.f32 0.0, %v1094
        %v1096 = vpop.f32.mrb[0].mxu0
        %1097 = vmatprep.mubr.f32.mxu0 0.0
        %1098 = vmatmul.mubr.f32.gmra.mrb[0].mxu0 %v618
        %v1099 = vpop.f32.mrb[0].mxu0
        %v1100 = vadd.f32 0.0, %v1099
        %v1101 = vpop.f32.mrb[0].mxu0
        %1102 = vmatprep.mubr.f32.mxu0 0.0
        %1103 = vmatmul.mubr.f32.gmra.mrb[0].mxu0 %v621
        %v1104 = vpop.f32.mrb[0].mxu0
        %v1105 = vadd.f32 0.0, %v1104
        %v1106 = vpop.f32.mrb[0].mxu0
        %1107 = vmatprep.mubr.f32.mxu0 0.0
        %1108 = vmatmul.mubr.f32.gmra.mrb[0].mxu0 %v624
        %v1109 = vpop.f32.mrb[0].mxu0
        %v1110 = vadd.f32 0.0, %v1109
        %v1111 = vpop.f32.mrb[0].mxu0
        %1112 = vmatprep.mubr.f32.mxu0 0.0
        %1113 = vmatmul.mubr.f32.gmra.mrb[0].mxu0 %v627
        %v1114 = vpop.f32.mrb[0].mxu0
        %v1115 = vadd.f32 0.0, %v1114
        %v1116 = vpop.f32.mrb[0].mxu0
        %1117 = vmatprep.mubr.f32.mxu0 0.0
        %1118 = vmatmul.mubr.f32.gmra.mrb[0].mxu0 %v630
        %v1119 = vpop.f32.mrb[0].mxu0
        %v1120 = vadd.f32 0.0, %v1119
        %v1121 = vpop.f32.mrb[0].mxu0
        %1122 = vmatprep.mubr.f32.mxu0 0.0
        %1123 = vmatmul.mubr.f32.gmra.mrb[0].mxu0 %v633
        %v1124 = vpop.f32.mrb[0].mxu0
        %v1125 = vadd.f32 0.0, %v1124
        %v1126 = vpop.f32.mrb[0].mxu0
        %1127 = vmatprep.mubr.f32.mxu0 0.0
        %1128 = vmatmul.mubr.f32.gmra.mrb[0].mxu0 %v636
        %v1129 = vpop.f32.mrb[0].mxu0
        %v1130 = vadd.f32 0.0, %v1129
        %v1131 = vpop.f32.mrb[0].mxu0
        %1132 = vmatprep.mubr.f32.mxu0 0.0
        %1133 = vmatmul.mubr.f32.gmra.mrb[0].mxu0 %v639
        %v1134 = vpop.f32.mrb[0].mxu0
        %v1135 = vadd.f32 0.0, %v1134
        %v1136 = vpop.f32.mrb[0].mxu0
        %1137 = vmatprep.mubr.f32.mxu0 0.0
        %1138 = vmatmul.mubr.f32.gmra.mrb[0].mxu0 %v642
        %v1139 = vpop.f32.mrb[0].mxu0
        %v1140 = vadd.f32 0.0, %v1139
        %v1141 = vpop.f32.mrb[0].mxu0
        %1142 = vmatprep.mubr.f32.mxu0 0.0
        %1143 = vmatmul.mubr.f32.gmra.mrb[0].mxu0 %v645
        %v1144 = vpop.f32.mrb[0].mxu0
        %v1145 = vadd.f32 0.0, %v1144
        %v1146 = vpop.f32.mrb[0].mxu0
        %1147 = vmatprep.mubr.f32.mxu0 0.0
        %1148 = vmatmul.mubr.f32.gmra.mrb[0].mxu0 %v648
        %v1149 = vpop.f32.mrb[0].mxu0
        %v1150 = vadd.f32 0.0, %v1149
        %v1151 = vpop.f32.mrb[0].mxu0
        %1152 = vmatprep.mubr.f32.mxu0 0.0
        %1153 = vmatmul.mubr.f32.gmra.mrb[0].mxu0 %v651
        %v1154 = vpop.f32.mrb[0].mxu0
        %v1155 = vadd.f32 0.0, %v1154
        %v1156 = vpop.f32.mrb[0].mxu0
        %1157 = vmatprep.mubr.f32.mxu0 0.0
        %1158 = vmatmul.mubr.f32.gmra.mrb[0].mxu0 %v654
        %v1159 = vpop.f32.mrb[0].mxu0
        %v1160 = vadd.f32 0.0, %v1159
        %v1161 = vpop.f32.mrb[0].mxu0
        %1162 = vmatprep.mubr.f32.mxu0 0.0
        %1163 = vmatmul.mubr.f32.gmra.mrb[0].mxu0 %v657
        %v1164 = vpop.f32.mrb[0].mxu0
        %v1165 = vadd.f32 0.0, %v1164
        %v1166 = vpop.f32.mrb[0].mxu0
        %1167 = vmatprep.mubr.f32.mxu0 0.0
        %1168 = vmatmul.mubr.f32.gmra.mrb[0].mxu0 %v660
        %v1169 = vpop.f32.mrb[0].mxu0
        %v1170 = vadd.f32 0.0, %v1169
        %v1171 = vpop.f32.mrb[0].mxu0
        %1172 = vmatprep.mubr.f32.mxu0 0.0
        %1173 = vmatmul.mubr.f32.gmra.mrb[0].mxu0 %v663
        %v1174 = vpop.f32.mrb[0].mxu0
        %v1175 = vadd.f32 0.0, %v1174
        %v1176 = vpop.f32.mrb[0].mxu0
        %1177 = vmatprep.mubr.f32.mxu0 0.0
        %1178 = vmatmul.mubr.f32.gmra.mrb[0].mxu0 %v666
        %v1179 = vpop.f32.mrb[0].mxu0
        %v1180 = vadd.f32 0.0, %v1179
        %v1181 = vpop.f32.mrb[0].mxu0
        %1182 = vmatprep.mubr.f32.mxu0 0.0
        %1183 = vmatmul.mubr.f32.gmra.mrb[0].mxu0 %v669
        %v1184 = vpop.f32.mrb[0].mxu0
        %v1185 = vadd.f32 0.0, %v1184
        %v1186 = vpop.f32.mrb[0].mxu0
        %1187 = vmatprep.mubr.f32.mxu0 0.0
        %1188 = vmatmul.mubr.f32.gmra.mrb[0].mxu0 %v672
        %v1189 = vpop.f32.mrb[0].mxu0
        %v1190 = vadd.f32 0.0, %v1189
        %v1191 = vpop.f32.mrb[0].mxu0
        %1192 = vmatprep.mubr.f32.mxu0 0.0
        %1193 = vmatmul.mubr.f32.gmra.mrb[0].mxu0 %v675
        %v1194 = vpop.f32.mrb[0].mxu0
        %v1195 = vadd.f32 0.0, %v1194
        %v1196 = vpop.f32.mrb[0].mxu0
        %1197 = vmatprep.mubr.f32.mxu0 0.0
        %1198 = vmatmul.mubr.f32.gmra.mrb[0].mxu0 %v678
        %v1199 = vpop.f32.mrb[0].mxu0
        %v1200 = vadd.f32 0.0, %v1199
        %v1201 = vpop.f32.mrb[0].mxu0
        %1202 = vmatprep.mubr.f32.mxu0 0.0
        %1203 = vmatmul.mubr.f32.gmra.mrb[0].mxu0 %v681
        %v1204 = vpop.f32.mrb[0].mxu0
        %v1205 = vadd.f32 0.0, %v1204
        %v1206 = vpop.f32.mrb[0].mxu0
        %1207 = vmatprep.mubr.f32.mxu0 0.0
        %1208 = vmatmul.mubr.f32.gmra.mrb[0].mxu0 %v684
        %v1209 = vpop.f32.mrb[0].mxu0
        %v1210 = vadd.f32 0.0, %v1209
        %v1211 = vpop.f32.mrb[0].mxu0
        %1212 = vmatprep.mubr.f32.mxu0 0.0
        %1213 = vmatmul.mubr.f32.gmra.mrb[0].mxu0 %v687
        %v1214 = vpop.f32.mrb[0].mxu0
        %v1215 = vadd.f32 0.0, %v1214
        %v1216 = vpop.f32.mrb[0].mxu0
        %1217 = vmatprep.mubr.f32.mxu0 0.0
        %1218 = vmatmul.mubr.f32.gmra.mrb[0].mxu0 %v690
        %v1219 = vpop.f32.mrb[0].mxu0
        %v1220 = vadd.f32 0.0, %v1219
        %v1221 = vpop.f32.mrb[0].mxu0
        %1222 = vmatprep.mubr.f32.mxu0 0.0
        %1223 = vmatmul.mubr.f32.gmra.mrb[0].mxu0 %v693
        %v1224 = vpop.f32.mrb[0].mxu0
        %v1225 = vadd.f32 0.0, %v1224
        %v1226 = vpop.f32.mrb[0].mxu0
        %1227 = vmatprep.mubr.f32.mxu0 0.0
        %1228 = vmatmul.mubr.f32.gmra.mrb[0].mxu0 %v696
        %v1229 = vpop.f32.mrb[0].mxu0
        %v1230 = vadd.f32 0.0, %v1229
        %v1231 = vpop.f32.mrb[0].mxu0
        %1232 = vmatprep.mubr.f32.mxu0 0.0
        %1233 = vmatmul.mubr.f32.gmra.mrb[0].mxu0 %v699
        %v1234 = vpop.f32.mrb[0].mxu0
        %v1235 = vadd.f32 0.0, %v1234
        %v1236 = vpop.f32.mrb[0].mxu0
        %1237 = vmatprep.mubr.f32.mxu0 0.0
        %1238 = vmatmul.mubr.f32.gmra.mrb[0].mxu0 %v702
        %v1239 = vpop.f32.mrb[0].mxu0
        %v1240 = vadd.f32 0.0, %v1239
        %v1241 = vpop.f32.mrb[0].mxu0
        %1242 = vmatprep.mubr.f32.mxu0 0.0
        %1243 = vmatmul.mubr.f32.gmra.mrb[0].mxu0 %v705
        %v1244 = vpop.f32.mrb[0].mxu0
        %v1245 = vadd.f32 0.0, %v1244
        %v1246 = vpop.f32.mrb[0].mxu0
        %1247 = vmatprep.mubr.f32.mxu0 0.0
        %1248 = vmatmul.mubr.f32.gmra.mrb[0].mxu0 %v708
        %v1249 = vpop.f32.mrb[0].mxu0
        %v1250 = vadd.f32 0.0, %v1249
        %v1251 = vpop.f32.mrb[0].mxu0
        %1252 = vmatprep.mubr.f32.mxu0 0.0
        %1253 = vmatmul.mubr.f32.gmra.mrb[0].mxu0 %v711
        %v1254 = vpop.f32.mrb[0].mxu0
        %v1255 = vadd.f32 0.0, %v1254
        %v1256 = vpop.f32.mrb[0].mxu0
        %1257 = vmatprep.mubr.f32.mxu0 0.0
        %1258 = vmatmul.mubr.f32.gmra.mrb[0].mxu0 %v714
        %v1259 = vpop.f32.mrb[0].mxu0
        %v1260 = vadd.f32 0.0, %v1259
        %v1261 = vpop.f32.mrb[0].mxu0
        %1262 = vmatprep.mubr.f32.mxu0 0.0
        %1263 = vmatmul.mubr.f32.gmra.mrb[0].mxu0 %v717
        %v1264 = vpop.f32.mrb[0].mxu0
        %v1265 = vadd.f32 0.0, %v1264
        %v1266 = vpop.f32.mrb[0].mxu0
        %1267 = vdwg.mxu0
        %vm1268 = vcmask 80896
        %v1269 = vsel %vm1268, %v790, -inf
        %v1270 = vsel %vm1268, %v910, -inf
        %v1271 = vmax.f32 %v1269, %v1270
        %v1272 = vsel %vm1268, %v1030, -inf
        %v1273 = vmax.f32 %v1271, %v1272
        %v1274 = vsel %vm1268, %v1150, -inf
        %v1275 = vmax.f32 %v1273, %v1274
        %v1276 = vsel %vm1268, %v795, -inf
        %v1277 = vsel %vm1268, %v915, -inf
        %v1278 = vmax.f32 %v1276, %v1277
        %v1279 = vsel %vm1268, %v1035, -inf
        %v1280 = vmax.f32 %v1278, %v1279
        %v1281 = vsel %vm1268, %v1155, -inf
        %v1282 = vmax.f32 %v1280, %v1281
        %v1283 = vsel %vm1268, %v800, -inf
        %v1284 = vsel %vm1268, %v920, -inf
        %v1285 = vmax.f32 %v1283, %v1284
        %v1286 = vsel %vm1268, %v1040, -inf
        %v1287 = vmax.f32 %v1285, %v1286
        %v1288 = vsel %vm1268, %v1160, -inf
        %v1289 = vmax.f32 %v1287, %v1288
        %v1290 = vsel %vm1268, %v805, -inf
        %v1291 = vsel %vm1268, %v925, -inf
        %v1292 = vmax.f32 %v1290, %v1291
        %v1293 = vsel %vm1268, %v1045, -inf
        %v1294 = vmax.f32 %v1292, %v1293
        %v1295 = vsel %vm1268, %v1165, -inf
        %v1296 = vmax.f32 %v1294, %v1295
        %v1297 = vsel %vm1268, %v810, -inf
        %v1298 = vsel %vm1268, %v930, -inf
        %v1299 = vmax.f32 %v1297, %v1298
        %v1300 = vsel %vm1268, %v1050, -inf
        %v1301 = vmax.f32 %v1299, %v1300
        %v1302 = vsel %vm1268, %v1170, -inf
        %v1303 = vmax.f32 %v1301, %v1302
        %v1304 = vsel %vm1268, %v815, -inf
        %v1305 = vsel %vm1268, %v935, -inf
        %v1306 = vmax.f32 %v1304, %v1305
        %v1307 = vsel %vm1268, %v1055, -inf
        %v1308 = vmax.f32 %v1306, %v1307
        %v1309 = vsel %vm1268, %v1175, -inf
        %v1310 = vmax.f32 %v1308, %v1309
        %v1311 = vsel %vm1268, %v820, -inf
        %v1312 = vsel %vm1268, %v940, -inf
        %v1313 = vmax.f32 %v1311, %v1312
        %v1314 = vsel %vm1268, %v1060, -inf
        %v1315 = vmax.f32 %v1313, %v1314
        %v1316 = vsel %vm1268, %v1180, -inf
        %v1317 = vmax.f32 %v1315, %v1316
        %v1318 = vsel %vm1268, %v825, -inf
        %v1319 = vsel %vm1268, %v945, -inf
        %v1320 = vmax.f32 %v1318, %v1319
        %v1321 = vsel %vm1268, %v1065, -inf
        %v1322 = vmax.f32 %v1320, %v1321
        %v1323 = vsel %vm1268, %v1185, -inf
        %v1324 = vmax.f32 %v1322, %v1323
        %v1325 = vsel %vm1268, %v830, -inf
        %v1326 = vsel %vm1268, %v950, -inf
        %v1327 = vmax.f32 %v1325, %v1326
        %v1328 = vsel %vm1268, %v1070, -inf
        %v1329 = vmax.f32 %v1327, %v1328
        %v1330 = vsel %vm1268, %v1190, -inf
        %v1331 = vmax.f32 %v1329, %v1330
        %v1332 = vsel %vm1268, %v835, -inf
        %v1333 = vsel %vm1268, %v955, -inf
        %v1334 = vmax.f32 %v1332, %v1333
        %v1335 = vsel %vm1268, %v1075, -inf
        %v1336 = vmax.f32 %v1334, %v1335
        %v1337 = vsel %vm1268, %v1195, -inf
        %v1338 = vmax.f32 %v1336, %v1337
        %v1339 = vsel %vm1268, %v840, -inf
        %v1340 = vsel %vm1268, %v960, -inf
        %v1341 = vmax.f32 %v1339, %v1340
        %v1342 = vsel %vm1268, %v1080, -inf
        %v1343 = vmax.f32 %v1341, %v1342
        %v1344 = vsel %vm1268, %v1200, -inf
        %v1345 = vmax.f32 %v1343, %v1344
        %v1346 = vsel %vm1268, %v845, -inf
        %v1347 = vsel %vm1268, %v965, -inf
        %v1348 = vmax.f32 %v1346, %v1347
        %v1349 = vsel %vm1268, %v1085, -inf
        %v1350 = vmax.f32 %v1348, %v1349
        %v1351 = vsel %vm1268, %v1205, -inf
        %v1352 = vmax.f32 %v1350, %v1351
        %v1353 = vsel %vm1268, %v850, -inf
        %v1354 = vsel %vm1268, %v970, -inf
        %v1355 = vmax.f32 %v1353, %v1354
        %v1356 = vsel %vm1268, %v1090, -inf
        %v1357 = vmax.f32 %v1355, %v1356
        %v1358 = vsel %vm1268, %v1210, -inf
        %v1359 = vmax.f32 %v1357, %v1358
        %v1360 = vsel %vm1268, %v855, -inf
        %v1361 = vsel %vm1268, %v975, -inf
        %v1362 = vmax.f32 %v1360, %v1361
        %v1363 = vsel %vm1268, %v1095, -inf
        %v1364 = vmax.f32 %v1362, %v1363
        %v1365 = vsel %vm1268, %v1215, -inf
        %v1366 = vmax.f32 %v1364, %v1365
        %v1367 = vsel %vm1268, %v860, -inf
        %v1368 = vsel %vm1268, %v980, -inf
        %v1369 = vmax.f32 %v1367, %v1368
        %v1370 = vsel %vm1268, %v1100, -inf
        %v1371 = vmax.f32 %v1369, %v1370
        %v1372 = vsel %vm1268, %v1220, -inf
        %v1373 = vmax.f32 %v1371, %v1372
        %v1374 = vsel %vm1268, %v865, -inf
        %v1375 = vsel %vm1268, %v985, -inf
        %v1376 = vmax.f32 %v1374, %v1375
        %v1377 = vsel %vm1268, %v1105, -inf
        %v1378 = vmax.f32 %v1376, %v1377
        %v1379 = vsel %vm1268, %v1225, -inf
        %v1380 = vmax.f32 %v1378, %v1379
        %v1381 = vsel %vm1268, %v870, -inf
        %v1382 = vsel %vm1268, %v990, -inf
        %v1383 = vmax.f32 %v1381, %v1382
        %v1384 = vsel %vm1268, %v1110, -inf
        %v1385 = vmax.f32 %v1383, %v1384
        %v1386 = vsel %vm1268, %v1230, -inf
        %v1387 = vmax.f32 %v1385, %v1386
        %v1388 = vsel %vm1268, %v875, -inf
        %v1389 = vsel %vm1268, %v995, -inf
        %v1390 = vmax.f32 %v1388, %v1389
        %v1391 = vsel %vm1268, %v1115, -inf
        %v1392 = vmax.f32 %v1390, %v1391
        %v1393 = vsel %vm1268, %v1235, -inf
        %v1394 = vmax.f32 %v1392, %v1393
        %v1395 = vsel %vm1268, %v880, -inf
        %v1396 = vsel %vm1268, %v1000, -inf
        %v1397 = vmax.f32 %v1395, %v1396
        %v1398 = vsel %vm1268, %v1120, -inf
        %v1399 = vmax.f32 %v1397, %v1398
        %v1400 = vsel %vm1268, %v1240, -inf
        %v1401 = vmax.f32 %v1399, %v1400
        %v1402 = vsel %vm1268, %v885, -inf
        %v1403 = vsel %vm1268, %v1005, -inf
        %v1404 = vmax.f32 %v1402, %v1403
        %v1405 = vsel %vm1268, %v1125, -inf
        %v1406 = vmax.f32 %v1404, %v1405
        %v1407 = vsel %vm1268, %v1245, -inf
        %v1408 = vmax.f32 %v1406, %v1407
        %v1409 = vsel %vm1268, %v890, -inf
        %v1410 = vsel %vm1268, %v1010, -inf
        %v1411 = vmax.f32 %v1409, %v1410
        %v1412 = vsel %vm1268, %v1130, -inf
        %v1413 = vmax.f32 %v1411, %v1412
        %v1414 = vsel %vm1268, %v1250, -inf
        %v1415 = vmax.f32 %v1413, %v1414
        %v1416 = vsel %vm1268, %v895, -inf
        %v1417 = vsel %vm1268, %v1015, -inf
        %v1418 = vmax.f32 %v1416, %v1417
        %v1419 = vsel %vm1268, %v1135, -inf
        %v1420 = vmax.f32 %v1418, %v1419
        %v1421 = vsel %vm1268, %v1255, -inf
        %v1422 = vmax.f32 %v1420, %v1421
        %v1423 = vsel %vm1268, %v900, -inf
        %v1424 = vsel %vm1268, %v1020, -inf
        %v1425 = vmax.f32 %v1423, %v1424
        %v1426 = vsel %vm1268, %v1140, -inf
        %v1427 = vmax.f32 %v1425, %v1426
        %v1428 = vsel %vm1268, %v1260, -inf
        %v1429 = vmax.f32 %v1427, %v1428
        %v1430 = vsel %vm1268, %v905, -inf
        %v1431 = vsel %vm1268, %v1025, -inf
        %v1432 = vmax.f32 %v1430, %v1431
        %v1433 = vsel %vm1268, %v1145, -inf
        %v1434 = vmax.f32 %v1432, %v1433
        %v1435 = vsel %vm1268, %v1265, -inf
        %v1436 = vmax.f32 %v1434, %v1435
        %v1437 = vld [vmem:[%s2] sm:$0x1]
        %v1439 = vlaneseq
        %v1440 = vshrl.u32 %v1439, 7
        %v1441 = vsub.s32 0, %v1440
        %v1442 = vrot.slane %v1437, %v1441
        %v1444 = vadd.f32 %v1275, %v1442
        %v1445 = vadd.f32 %v1282, %v1442
        %v1446 = vadd.f32 %v1289, %v1442
        %v1447 = vadd.f32 %v1296, %v1442
        %v1448 = vadd.f32 %v1303, %v1442
        %v1449 = vadd.f32 %v1310, %v1442
        %v1450 = vadd.f32 %v1317, %v1442
        %v1451 = vadd.f32 %v1324, %v1442
        %v1452 = vadd.f32 %v1331, %v1442
        %v1453 = vadd.f32 %v1338, %v1442
        %v1454 = vadd.f32 %v1345, %v1442
        %v1455 = vadd.f32 %v1352, %v1442
        %v1456 = vadd.f32 %v1359, %v1442
        %v1457 = vadd.f32 %v1366, %v1442
        %v1458 = vadd.f32 %v1373, %v1442
        %v1459 = vadd.f32 %v1380, %v1442
        %v1460 = vadd.f32 %v1387, %v1442
        %v1461 = vadd.f32 %v1394, %v1442
        %v1462 = vadd.f32 %v1401, %v1442
        %v1463 = vadd.f32 %v1408, %v1442
        %v1464 = vadd.f32 %v1415, %v1442
        %v1465 = vadd.f32 %v1422, %v1442
        %v1466 = vadd.f32 %v1429, %v1442
        %v1467 = vadd.f32 %v1436, %v1442
        %v1468 = vmax.f32 %v1444, 0.0
        %v1469 = vmax.f32 %v1445, 0.0
        %v1470 = vmax.f32 %v1446, 0.0
        %v1471 = vmax.f32 %v1447, 0.0
        %v1472 = vmax.f32 %v1448, 0.0
        %v1473 = vmax.f32 %v1449, 0.0
        %v1474 = vmax.f32 %v1450, 0.0
        %v1475 = vmax.f32 %v1451, 0.0
        %v1476 = vmax.f32 %v1452, 0.0
        %v1477 = vmax.f32 %v1453, 0.0
        %v1478 = vmax.f32 %v1454, 0.0
        %v1479 = vmax.f32 %v1455, 0.0
        %v1480 = vmax.f32 %v1456, 0.0
        %v1481 = vmax.f32 %v1457, 0.0
        %v1482 = vmax.f32 %v1458, 0.0
        %v1483 = vmax.f32 %v1459, 0.0
        %v1484 = vmax.f32 %v1460, 0.0
        %v1485 = vmax.f32 %v1461, 0.0
        %v1486 = vmax.f32 %v1462, 0.0
        %v1487 = vmax.f32 %v1463, 0.0
        %v1488 = vmax.f32 %v1464, 0.0
        %v1489 = vmax.f32 %v1465, 0.0
        %v1490 = vmax.f32 %v1466, 0.0
        %v1491 = vmax.f32 %v1467, 0.0
        %1492 = vst.msk [vmem:[#allocation2] sm:$0xff] %vm1268, %v1468
        %1493 = vst.msk [vmem:[#allocation2 + $0x8] sm:$0xff] %vm1268, %v1469
        %1494 = vst.msk [vmem:[#allocation2 + $0x10] sm:$0xff] %vm1268, %v1470
        %1495 = vst.msk [vmem:[#allocation2 + $0x18] sm:$0xff] %vm1268, %v1471
        %1496 = vst.msk [vmem:[#allocation2 + $0x20] sm:$0xff] %vm1268, %v1472
        %1497 = vst.msk [vmem:[#allocation2 + $0x28] sm:$0xff] %vm1268, %v1473
        %1498 = vst.msk [vmem:[#allocation2 + $0x30] sm:$0xff] %vm1268, %v1474
        %1499 = vst.msk [vmem:[#allocation2 + $0x38] sm:$0xff] %vm1268, %v1475
        %1500 = vst.msk [vmem:[#allocation2 + $0x40] sm:$0xff] %vm1268, %v1476
        %1501 = vst.msk [vmem:[#allocation2 + $0x48] sm:$0xff] %vm1268, %v1477
        %1502 = vst.msk [vmem:[#allocation2 + $0x50] sm:$0xff] %vm1268, %v1478
        %1503 = vst.msk [vmem:[#allocation2 + $0x58] sm:$0xff] %vm1268, %v1479
        %1504 = vst.msk [vmem:[#allocation2 + $0x60] sm:$0xff] %vm1268, %v1480
        %1505 = vst.msk [vmem:[#allocation2 + $0x68] sm:$0xff] %vm1268, %v1481
        %1506 = vst.msk [vmem:[#allocation2 + $0x70] sm:$0xff] %vm1268, %v1482
        %1507 = vst.msk [vmem:[#allocation2 + $0x78] sm:$0xff] %vm1268, %v1483
        %1508 = vst.msk [vmem:[#allocation2 + $0x80] sm:$0xff] %vm1268, %v1484
        %1509 = vst.msk [vmem:[#allocation2 + $0x88] sm:$0xff] %vm1268, %v1485
        %1510 = vst.msk [vmem:[#allocation2 + $0x90] sm:$0xff] %vm1268, %v1486
        %1511 = vst.msk [vmem:[#allocation2 + $0x98] sm:$0xff] %vm1268, %v1487
        %1512 = vst.msk [vmem:[#allocation2 + $0xa0] sm:$0xff] %vm1268, %v1488
        %1513 = vst.msk [vmem:[#allocation2 + $0xa8] sm:$0xff] %vm1268, %v1489
        %1514 = vst.msk [vmem:[#allocation2 + $0xb0] sm:$0xff] %vm1268, %v1490
        %1515 = vst.msk [vmem:[#allocation2 + $0xb8] sm:$0xff] %vm1268, %v1491
        %v1516 = vld [vmem:[#allocation2] sm:$0xff]
        %v1517 = vld [vmem:[#allocation2 + $0x10] sm:$0xff]
        %v1518 = vld [vmem:[#allocation2 + $0x20] sm:$0xff]
        %v1519 = vld [vmem:[#allocation2 + $0x30] sm:$0xff]
        %v1520 = vld [vmem:[#allocation2 + $0x40] sm:$0xff]
        %v1521 = vld [vmem:[#allocation2 + $0x50] sm:$0xff]
        %v1522 = vld [vmem:[#allocation2 + $0x60] sm:$0xff]
        %v1523 = vld [vmem:[#allocation2 + $0x70] sm:$0xff]
        %1524 = vst.msk [vmem:[#allocation3] sm:$0xff] %vm1268, %v1516
        %1525 = vst.msk [vmem:[#allocation3 + $0x10] sm:$0xff] %vm1268, %v1517
        %1526 = vst.msk [vmem:[#allocation3 + $0x20] sm:$0xff] %vm1268, %v1518
        %1527 = vst.msk [vmem:[#allocation3 + $0x30] sm:$0xff] %vm1268, %v1519
        %1528 = vst.msk [vmem:[#allocation3 + $0x40] sm:$0xff] %vm1268, %v1520
        %1529 = vst.msk [vmem:[#allocation3 + $0x50] sm:$0xff] %vm1268, %v1521
        %1530 = vst.msk [vmem:[#allocation3 + $0x60] sm:$0xff] %vm1268, %v1522
        %1531 = vst.msk [vmem:[#allocation3 + $0x70] sm:$0xff] %vm1268, %v1523
        %v1532 = vld [vmem:[#allocation2 + $0x1] sm:$0xff]
        %v1533 = vld [vmem:[#allocation2 + $0x11] sm:$0xff]
        %v1534 = vld [vmem:[#allocation2 + $0x21] sm:$0xff]
        %v1535 = vld [vmem:[#allocation2 + $0x31] sm:$0xff]
        %v1536 = vld [vmem:[#allocation2 + $0x41] sm:$0xff]
        %v1537 = vld [vmem:[#allocation2 + $0x51] sm:$0xff]
        %v1538 = vld [vmem:[#allocation2 + $0x61] sm:$0xff]
        %v1539 = vld [vmem:[#allocation2 + $0x71] sm:$0xff]
        %1548 = vrot.lane.b32.xlu0 %v1532, 10
        %v1549 = vpop.permute.xlu0 %1548
        %1550 = vrot.lane.b32.xlu0 %v1533, 10
        %v1551 = vpop.permute.xlu0 %1550
        %1552 = vrot.lane.b32.xlu0 %v1534, 10
        %v1553 = vpop.permute.xlu0 %1552
        %1554 = vrot.lane.b32.xlu0 %v1535, 10
        %v1555 = vpop.permute.xlu0 %1554
        %1556 = vrot.lane.b32.xlu0 %v1536, 10
        %v1557 = vpop.permute.xlu0 %1556
        %1558 = vrot.lane.b32.xlu0 %v1537, 10
        %v1559 = vpop.permute.xlu0 %1558
        %1560 = vrot.lane.b32.xlu0 %v1538, 10
        %v1561 = vpop.permute.xlu0 %1560
        %1562 = vrot.lane.b32.xlu0 %v1539, 10
        %v1563 = vpop.permute.xlu0 %1562
        %vm1572 = vcmask 162896
        %1573 = vst.msk [vmem:[#allocation3] sm:$0xff] %vm1572, %v1549
        %1574 = vst.msk [vmem:[#allocation3 + $0x10] sm:$0xff] %vm1572, %v1551
        %1575 = vst.msk [vmem:[#allocation3 + $0x20] sm:$0xff] %vm1572, %v1553
        %1576 = vst.msk [vmem:[#allocation3 + $0x30] sm:$0xff] %vm1572, %v1555
        %1577 = vst.msk [vmem:[#allocation3 + $0x40] sm:$0xff] %vm1572, %v1557
        %1578 = vst.msk [vmem:[#allocation3 + $0x50] sm:$0xff] %vm1572, %v1559
        %1579 = vst.msk [vmem:[#allocation3 + $0x60] sm:$0xff] %vm1572, %v1561
        %1580 = vst.msk [vmem:[#allocation3 + $0x70] sm:$0xff] %vm1572, %v1563
        %v1581 = vld [vmem:[#allocation2 + $0x2] sm:$0xff]
        %v1582 = vld [vmem:[#allocation2 + $0x12] sm:$0xff]
        %v1583 = vld [vmem:[#allocation2 + $0x22] sm:$0xff]
        %v1584 = vld [vmem:[#allocation2 + $0x32] sm:$0xff]
        %v1585 = vld [vmem:[#allocation2 + $0x42] sm:$0xff]
        %v1586 = vld [vmem:[#allocation2 + $0x52] sm:$0xff]
        %v1587 = vld [vmem:[#allocation2 + $0x62] sm:$0xff]
        %v1588 = vld [vmem:[#allocation2 + $0x72] sm:$0xff]
        %1597 = vrot.lane.b32.xlu0 %v1581, 20
        %v1598 = vpop.permute.xlu0 %1597
        %1599 = vrot.lane.b32.xlu0 %v1582, 20
        %v1600 = vpop.permute.xlu0 %1599
        %1601 = vrot.lane.b32.xlu0 %v1583, 20
        %v1602 = vpop.permute.xlu0 %1601
        %1603 = vrot.lane.b32.xlu0 %v1584, 20
        %v1604 = vpop.permute.xlu0 %1603
        %1605 = vrot.lane.b32.xlu0 %v1585, 20
        %v1606 = vpop.permute.xlu0 %1605
        %1607 = vrot.lane.b32.xlu0 %v1586, 20
        %v1608 = vpop.permute.xlu0 %1607
        %1609 = vrot.lane.b32.xlu0 %v1587, 20
        %v1610 = vpop.permute.xlu0 %1609
        %1611 = vrot.lane.b32.xlu0 %v1588, 20
        %v1612 = vpop.permute.xlu0 %1611
        %vm1621 = vcmask 244896
        %1622 = vst.msk [vmem:[#allocation3] sm:$0xff] %vm1621, %v1598
        %1623 = vst.msk [vmem:[#allocation3 + $0x10] sm:$0xff] %vm1621, %v1600
        %1624 = vst.msk [vmem:[#allocation3 + $0x20] sm:$0xff] %vm1621, %v1602
        %1625 = vst.msk [vmem:[#allocation3 + $0x30] sm:$0xff] %vm1621, %v1604
        %1626 = vst.msk [vmem:[#allocation3 + $0x40] sm:$0xff] %vm1621, %v1606
        %1627 = vst.msk [vmem:[#allocation3 + $0x50] sm:$0xff] %vm1621, %v1608
        %1628 = vst.msk [vmem:[#allocation3 + $0x60] sm:$0xff] %vm1621, %v1610
        %1629 = vst.msk [vmem:[#allocation3 + $0x70] sm:$0xff] %vm1621, %v1612
        %v1630 = vld [vmem:[#allocation2 + $0x3] sm:$0xff]
        %v1631 = vld [vmem:[#allocation2 + $0x13] sm:$0xff]
        %v1632 = vld [vmem:[#allocation2 + $0x23] sm:$0xff]
        %v1633 = vld [vmem:[#allocation2 + $0x33] sm:$0xff]
        %v1634 = vld [vmem:[#allocation2 + $0x43] sm:$0xff]
        %v1635 = vld [vmem:[#allocation2 + $0x53] sm:$0xff]
        %v1636 = vld [vmem:[#allocation2 + $0x63] sm:$0xff]
        %v1637 = vld [vmem:[#allocation2 + $0x73] sm:$0xff]
        %1646 = vrot.lane.b32.xlu0 %v1630, 30
        %v1647 = vpop.permute.xlu0 %1646
        %1648 = vrot.lane.b32.xlu0 %v1631, 30
        %v1649 = vpop.permute.xlu0 %1648
        %1650 = vrot.lane.b32.xlu0 %v1632, 30
        %v1651 = vpop.permute.xlu0 %1650
        %1652 = vrot.lane.b32.xlu0 %v1633, 30
        %v1653 = vpop.permute.xlu0 %1652
        %1654 = vrot.lane.b32.xlu0 %v1634, 30
        %v1655 = vpop.permute.xlu0 %1654
        %1656 = vrot.lane.b32.xlu0 %v1635, 30
        %v1657 = vpop.permute.xlu0 %1656
        %1658 = vrot.lane.b32.xlu0 %v1636, 30
        %v1659 = vpop.permute.xlu0 %1658
        %1660 = vrot.lane.b32.xlu0 %v1637, 30
        %v1661 = vpop.permute.xlu0 %1660
        %vm1670 = vcmask 326896
        %1671 = vst.msk [vmem:[#allocation3] sm:$0xff] %vm1670, %v1647
        %1672 = vst.msk [vmem:[#allocation3 + $0x10] sm:$0xff] %vm1670, %v1649
        %1673 = vst.msk [vmem:[#allocation3 + $0x20] sm:$0xff] %vm1670, %v1651
        %1674 = vst.msk [vmem:[#allocation3 + $0x30] sm:$0xff] %vm1670, %v1653
        %1675 = vst.msk [vmem:[#allocation3 + $0x40] sm:$0xff] %vm1670, %v1655
        %1676 = vst.msk [vmem:[#allocation3 + $0x50] sm:$0xff] %vm1670, %v1657
        %1677 = vst.msk [vmem:[#allocation3 + $0x60] sm:$0xff] %vm1670, %v1659
        %1678 = vst.msk [vmem:[#allocation3 + $0x70] sm:$0xff] %vm1670, %v1661
        %v1679 = vld [vmem:[#allocation2 + $0x4] sm:$0xff]
        %v1680 = vld [vmem:[#allocation2 + $0x14] sm:$0xff]
        %v1681 = vld [vmem:[#allocation2 + $0x24] sm:$0xff]
        %v1682 = vld [vmem:[#allocation2 + $0x34] sm:$0xff]
        %v1683 = vld [vmem:[#allocation2 + $0x44] sm:$0xff]
        %v1684 = vld [vmem:[#allocation2 + $0x54] sm:$0xff]
        %v1685 = vld [vmem:[#allocation2 + $0x64] sm:$0xff]
        %v1686 = vld [vmem:[#allocation2 + $0x74] sm:$0xff]
        %1695 = vrot.lane.b32.xlu0 %v1679, 40
        %v1696 = vpop.permute.xlu0 %1695
        %1697 = vrot.lane.b32.xlu0 %v1680, 40
        %v1698 = vpop.permute.xlu0 %1697
        %1699 = vrot.lane.b32.xlu0 %v1681, 40
        %v1700 = vpop.permute.xlu0 %1699
        %1701 = vrot.lane.b32.xlu0 %v1682, 40
        %v1702 = vpop.permute.xlu0 %1701
        %1703 = vrot.lane.b32.xlu0 %v1683, 40
        %v1704 = vpop.permute.xlu0 %1703
        %1705 = vrot.lane.b32.xlu0 %v1684, 40
        %v1706 = vpop.permute.xlu0 %1705
        %1707 = vrot.lane.b32.xlu0 %v1685, 40
        %v1708 = vpop.permute.xlu0 %1707
        %1709 = vrot.lane.b32.xlu0 %v1686, 40
        %v1710 = vpop.permute.xlu0 %1709
        %vm1719 = vcmask 408896
        %1720 = vst.msk [vmem:[#allocation3] sm:$0xff] %vm1719, %v1696
        %1721 = vst.msk [vmem:[#allocation3 + $0x10] sm:$0xff] %vm1719, %v1698
        %1722 = vst.msk [vmem:[#allocation3 + $0x20] sm:$0xff] %vm1719, %v1700
        %1723 = vst.msk [vmem:[#allocation3 + $0x30] sm:$0xff] %vm1719, %v1702
        %1724 = vst.msk [vmem:[#allocation3 + $0x40] sm:$0xff] %vm1719, %v1704
        %1725 = vst.msk [vmem:[#allocation3 + $0x50] sm:$0xff] %vm1719, %v1706
        %1726 = vst.msk [vmem:[#allocation3 + $0x60] sm:$0xff] %vm1719, %v1708
        %1727 = vst.msk [vmem:[#allocation3 + $0x70] sm:$0xff] %vm1719, %v1710
        %s1728 = scalar_lea.vmem [#allocation2], 16
        %v1729 = vld [vmem:[%s1728] sm:$0xff]
        %v1730 = vld [vmem:[%s1728 + $0x10] sm:$0xff]
        %v1731 = vld [vmem:[%s1728 + $0x20] sm:$0xff]
        %v1732 = vld [vmem:[%s1728 + $0x30] sm:$0xff]
        %v1733 = vld [vmem:[%s1728 + $0x40] sm:$0xff]
        %v1734 = vld [vmem:[%s1728 + $0x50] sm:$0xff]
        %v1735 = vld [vmem:[%s1728 + $0x60] sm:$0xff]
        %v1736 = vld [vmem:[%s1728 + $0x70] sm:$0xff]
        %1745 = vrot.lane.b32.xlu0 %v1729, 50
        %v1746 = vpop.permute.xlu0 %1745
        %1747 = vrot.lane.b32.xlu0 %v1730, 50
        %v1748 = vpop.permute.xlu0 %1747
        %1749 = vrot.lane.b32.xlu0 %v1731, 50
        %v1750 = vpop.permute.xlu0 %1749
        %1751 = vrot.lane.b32.xlu0 %v1732, 50
        %v1752 = vpop.permute.xlu0 %1751
        %1753 = vrot.lane.b32.xlu0 %v1733, 50
        %v1754 = vpop.permute.xlu0 %1753
        %1755 = vrot.lane.b32.xlu0 %v1734, 50
        %v1756 = vpop.permute.xlu0 %1755
        %1757 = vrot.lane.b32.xlu0 %v1735, 50
        %v1758 = vpop.permute.xlu0 %1757
        %1759 = vrot.lane.b32.xlu0 %v1736, 50
        %v1760 = vpop.permute.xlu0 %1759
        %vm1769 = vcmask 490896
        %1770 = vst.msk [vmem:[#allocation3] sm:$0xff] %vm1769, %v1746
        %1771 = vst.msk [vmem:[#allocation3 + $0x10] sm:$0xff] %vm1769, %v1748
        %1772 = vst.msk [vmem:[#allocation3 + $0x20] sm:$0xff] %vm1769, %v1750
        %1773 = vst.msk [vmem:[#allocation3 + $0x30] sm:$0xff] %vm1769, %v1752
        %1774 = vst.msk [vmem:[#allocation3 + $0x40] sm:$0xff] %vm1769, %v1754
        %1775 = vst.msk [vmem:[#allocation3 + $0x50] sm:$0xff] %vm1769, %v1756
        %1776 = vst.msk [vmem:[#allocation3 + $0x60] sm:$0xff] %vm1769, %v1758
        %1777 = vst.msk [vmem:[#allocation3 + $0x70] sm:$0xff] %vm1769, %v1760
        %v1778 = vld [vmem:[%s1728 + $0x1] sm:$0xff]
        %v1779 = vld [vmem:[%s1728 + $0x11] sm:$0xff]
        %v1780 = vld [vmem:[%s1728 + $0x21] sm:$0xff]
        %v1781 = vld [vmem:[%s1728 + $0x31] sm:$0xff]
        %v1782 = vld [vmem:[%s1728 + $0x41] sm:$0xff]
        %v1783 = vld [vmem:[%s1728 + $0x51] sm:$0xff]
        %v1784 = vld [vmem:[%s1728 + $0x61] sm:$0xff]
        %v1785 = vld [vmem:[%s1728 + $0x71] sm:$0xff]
        %1794 = vrot.lane.b32.xlu0 %v1778, 60
        %v1795 = vpop.permute.xlu0 %1794
        %1796 = vrot.lane.b32.xlu0 %v1779, 60
        %v1797 = vpop.permute.xlu0 %1796
        %1798 = vrot.lane.b32.xlu0 %v1780, 60
        %v1799 = vpop.permute.xlu0 %1798
        %1800 = vrot.lane.b32.xlu0 %v1781, 60
        %v1801 = vpop.permute.xlu0 %1800
        %1802 = vrot.lane.b32.xlu0 %v1782, 60
        %v1803 = vpop.permute.xlu0 %1802
        %1804 = vrot.lane.b32.xlu0 %v1783, 60
        %v1805 = vpop.permute.xlu0 %1804
        %1806 = vrot.lane.b32.xlu0 %v1784, 60
        %v1807 = vpop.permute.xlu0 %1806
        %1808 = vrot.lane.b32.xlu0 %v1785, 60
        %v1809 = vpop.permute.xlu0 %1808
        %vm1818 = vcmask 572896
        %1819 = vst.msk [vmem:[#allocation3] sm:$0xff] %vm1818, %v1795
        %1820 = vst.msk [vmem:[#allocation3 + $0x10] sm:$0xff] %vm1818, %v1797
        %1821 = vst.msk [vmem:[#allocation3 + $0x20] sm:$0xff] %vm1818, %v1799
        %1822 = vst.msk [vmem:[#allocation3 + $0x30] sm:$0xff] %vm1818, %v1801
        %1823 = vst.msk [vmem:[#allocation3 + $0x40] sm:$0xff] %vm1818, %v1803
        %1824 = vst.msk [vmem:[#allocation3 + $0x50] sm:$0xff] %vm1818, %v1805
        %1825 = vst.msk [vmem:[#allocation3 + $0x60] sm:$0xff] %vm1818, %v1807
        %1826 = vst.msk [vmem:[#allocation3 + $0x70] sm:$0xff] %vm1818, %v1809
        %v1827 = vld [vmem:[%s1728 + $0x2] sm:$0xff]
        %v1828 = vld [vmem:[%s1728 + $0x12] sm:$0xff]
        %v1829 = vld [vmem:[%s1728 + $0x22] sm:$0xff]
        %v1830 = vld [vmem:[%s1728 + $0x32] sm:$0xff]
        %v1831 = vld [vmem:[%s1728 + $0x42] sm:$0xff]
        %v1832 = vld [vmem:[%s1728 + $0x52] sm:$0xff]
        %v1833 = vld [vmem:[%s1728 + $0x62] sm:$0xff]
        %v1834 = vld [vmem:[%s1728 + $0x72] sm:$0xff]
        %1843 = vrot.lane.b32.xlu0 %v1827, 70
        %v1844 = vpop.permute.xlu0 %1843
        %1845 = vrot.lane.b32.xlu0 %v1828, 70
        %v1846 = vpop.permute.xlu0 %1845
        %1847 = vrot.lane.b32.xlu0 %v1829, 70
        %v1848 = vpop.permute.xlu0 %1847
        %1849 = vrot.lane.b32.xlu0 %v1830, 70
        %v1850 = vpop.permute.xlu0 %1849
        %1851 = vrot.lane.b32.xlu0 %v1831, 70
        %v1852 = vpop.permute.xlu0 %1851
        %1853 = vrot.lane.b32.xlu0 %v1832, 70
        %v1854 = vpop.permute.xlu0 %1853
        %1855 = vrot.lane.b32.xlu0 %v1833, 70
        %v1856 = vpop.permute.xlu0 %1855
        %1857 = vrot.lane.b32.xlu0 %v1834, 70
        %v1858 = vpop.permute.xlu0 %1857
        %vm1867 = vcmask 654896
        %1868 = vst.msk [vmem:[#allocation3] sm:$0xff] %vm1867, %v1844
        %1869 = vst.msk [vmem:[#allocation3 + $0x10] sm:$0xff] %vm1867, %v1846
        %1870 = vst.msk [vmem:[#allocation3 + $0x20] sm:$0xff] %vm1867, %v1848
        %1871 = vst.msk [vmem:[#allocation3 + $0x30] sm:$0xff] %vm1867, %v1850
        %1872 = vst.msk [vmem:[#allocation3 + $0x40] sm:$0xff] %vm1867, %v1852
        %1873 = vst.msk [vmem:[#allocation3 + $0x50] sm:$0xff] %vm1867, %v1854
        %1874 = vst.msk [vmem:[#allocation3 + $0x60] sm:$0xff] %vm1867, %v1856
        %1875 = vst.msk [vmem:[#allocation3 + $0x70] sm:$0xff] %vm1867, %v1858
        %v1876 = vld [vmem:[%s1728 + $0x3] sm:$0xff]
        %v1877 = vld [vmem:[%s1728 + $0x13] sm:$0xff]
        %v1878 = vld [vmem:[%s1728 + $0x23] sm:$0xff]
        %v1879 = vld [vmem:[%s1728 + $0x33] sm:$0xff]
        %v1880 = vld [vmem:[%s1728 + $0x43] sm:$0xff]
        %v1881 = vld [vmem:[%s1728 + $0x53] sm:$0xff]
        %v1882 = vld [vmem:[%s1728 + $0x63] sm:$0xff]
        %v1883 = vld [vmem:[%s1728 + $0x73] sm:$0xff]
        %1892 = vrot.lane.b32.xlu0 %v1876, 80
        %v1893 = vpop.permute.xlu0 %1892
        %1894 = vrot.lane.b32.xlu0 %v1877, 80
        %v1895 = vpop.permute.xlu0 %1894
        %1896 = vrot.lane.b32.xlu0 %v1878, 80
        %v1897 = vpop.permute.xlu0 %1896
        %1898 = vrot.lane.b32.xlu0 %v1879, 80
        %v1899 = vpop.permute.xlu0 %1898
        %1900 = vrot.lane.b32.xlu0 %v1880, 80
        %v1901 = vpop.permute.xlu0 %1900
        %1902 = vrot.lane.b32.xlu0 %v1881, 80
        %v1903 = vpop.permute.xlu0 %1902
        %1904 = vrot.lane.b32.xlu0 %v1882, 80
        %v1905 = vpop.permute.xlu0 %1904
        %1906 = vrot.lane.b32.xlu0 %v1883, 80
        %v1907 = vpop.permute.xlu0 %1906
        %vm1916 = vcmask 736896
        %1917 = vst.msk [vmem:[#allocation3] sm:$0xff] %vm1916, %v1893
        %1918 = vst.msk [vmem:[#allocation3 + $0x10] sm:$0xff] %vm1916, %v1895
        %1919 = vst.msk [vmem:[#allocation3 + $0x20] sm:$0xff] %vm1916, %v1897
        %1920 = vst.msk [vmem:[#allocation3 + $0x30] sm:$0xff] %vm1916, %v1899
        %1921 = vst.msk [vmem:[#allocation3 + $0x40] sm:$0xff] %vm1916, %v1901
        %1922 = vst.msk [vmem:[#allocation3 + $0x50] sm:$0xff] %vm1916, %v1903
        %1923 = vst.msk [vmem:[#allocation3 + $0x60] sm:$0xff] %vm1916, %v1905
        %1924 = vst.msk [vmem:[#allocation3 + $0x70] sm:$0xff] %vm1916, %v1907
        %v1925 = vld [vmem:[%s1728 + $0x4] sm:$0xff]
        %v1926 = vld [vmem:[%s1728 + $0x14] sm:$0xff]
        %v1927 = vld [vmem:[%s1728 + $0x24] sm:$0xff]
        %v1928 = vld [vmem:[%s1728 + $0x34] sm:$0xff]
        %v1929 = vld [vmem:[%s1728 + $0x44] sm:$0xff]
        %v1930 = vld [vmem:[%s1728 + $0x54] sm:$0xff]
        %v1931 = vld [vmem:[%s1728 + $0x64] sm:$0xff]
        %v1932 = vld [vmem:[%s1728 + $0x74] sm:$0xff]
        %1941 = vrot.lane.b32.xlu0 %v1925, 90
        %v1942 = vpop.permute.xlu0 %1941
        %1943 = vrot.lane.b32.xlu0 %v1926, 90
        %v1944 = vpop.permute.xlu0 %1943
        %1945 = vrot.lane.b32.xlu0 %v1927, 90
        %v1946 = vpop.permute.xlu0 %1945
        %1947 = vrot.lane.b32.xlu0 %v1928, 90
        %v1948 = vpop.permute.xlu0 %1947
        %1949 = vrot.lane.b32.xlu0 %v1929, 90
        %v1950 = vpop.permute.xlu0 %1949
        %1951 = vrot.lane.b32.xlu0 %v1930, 90
        %v1952 = vpop.permute.xlu0 %1951
        %1953 = vrot.lane.b32.xlu0 %v1931, 90
        %v1954 = vpop.permute.xlu0 %1953
        %1955 = vrot.lane.b32.xlu0 %v1932, 90
        %v1956 = vpop.permute.xlu0 %1955
        %vm1965 = vcmask 818896
        %1966 = vst.msk [vmem:[#allocation3] sm:$0xff] %vm1965, %v1942
        %1967 = vst.msk [vmem:[#allocation3 + $0x10] sm:$0xff] %vm1965, %v1944
        %1968 = vst.msk [vmem:[#allocation3 + $0x20] sm:$0xff] %vm1965, %v1946
        %1969 = vst.msk [vmem:[#allocation3 + $0x30] sm:$0xff] %vm1965, %v1948
        %1970 = vst.msk [vmem:[#allocation3 + $0x40] sm:$0xff] %vm1965, %v1950
        %1971 = vst.msk [vmem:[#allocation3 + $0x50] sm:$0xff] %vm1965, %v1952
        %1972 = vst.msk [vmem:[#allocation3 + $0x60] sm:$0xff] %vm1965, %v1954
        %1973 = vst.msk [vmem:[#allocation3 + $0x70] sm:$0xff] %vm1965, %v1956
        %s1974 = scalar_lea.vmem [#allocation2], 32
        %v1975 = vld [vmem:[%s1974] sm:$0xff]
        %v1976 = vld [vmem:[%s1974 + $0x10] sm:$0xff]
        %v1977 = vld [vmem:[%s1974 + $0x20] sm:$0xff]
        %v1978 = vld [vmem:[%s1974 + $0x30] sm:$0xff]
        %v1979 = vld [vmem:[%s1974 + $0x40] sm:$0xff]
        %v1980 = vld [vmem:[%s1974 + $0x50] sm:$0xff]
        %v1981 = vld [vmem:[%s1974 + $0x60] sm:$0xff]
        %v1982 = vld [vmem:[%s1974 + $0x70] sm:$0xff]
        %1991 = vrot.lane.b32.xlu0 %v1975, 100
        %v1992 = vpop.permute.xlu0 %1991
        %1993 = vrot.lane.b32.xlu0 %v1976, 100
        %v1994 = vpop.permute.xlu0 %1993
        %1995 = vrot.lane.b32.xlu0 %v1977, 100
        %v1996 = vpop.permute.xlu0 %1995
        %1997 = vrot.lane.b32.xlu0 %v1978, 100
        %v1998 = vpop.permute.xlu0 %1997
        %1999 = vrot.lane.b32.xlu0 %v1979, 100
        %v2000 = vpop.permute.xlu0 %1999
        %2001 = vrot.lane.b32.xlu0 %v1980, 100
        %v2002 = vpop.permute.xlu0 %2001
        %2003 = vrot.lane.b32.xlu0 %v1981, 100
        %v2004 = vpop.permute.xlu0 %2003
        %2005 = vrot.lane.b32.xlu0 %v1982, 100
        %v2006 = vpop.permute.xlu0 %2005
        %vm2015 = vcmask 900896
        %2016 = vst.msk [vmem:[#allocation3] sm:$0xff] %vm2015, %v1992
        %2017 = vst.msk [vmem:[#allocation3 + $0x10] sm:$0xff] %vm2015, %v1994
        %2018 = vst.msk [vmem:[#allocation3 + $0x20] sm:$0xff] %vm2015, %v1996
        %2019 = vst.msk [vmem:[#allocation3 + $0x30] sm:$0xff] %vm2015, %v1998
        %2020 = vst.msk [vmem:[#allocation3 + $0x40] sm:$0xff] %vm2015, %v2000
        %2021 = vst.msk [vmem:[#allocation3 + $0x50] sm:$0xff] %vm2015, %v2002
        %2022 = vst.msk [vmem:[#allocation3 + $0x60] sm:$0xff] %vm2015, %v2004
        %2023 = vst.msk [vmem:[#allocation3 + $0x70] sm:$0xff] %vm2015, %v2006
        %v2024 = vld [vmem:[%s1974 + $0x1] sm:$0xff]
        %v2025 = vld [vmem:[%s1974 + $0x11] sm:$0xff]
        %v2026 = vld [vmem:[%s1974 + $0x21] sm:$0xff]
        %v2027 = vld [vmem:[%s1974 + $0x31] sm:$0xff]
        %v2028 = vld [vmem:[%s1974 + $0x41] sm:$0xff]
        %v2029 = vld [vmem:[%s1974 + $0x51] sm:$0xff]
        %v2030 = vld [vmem:[%s1974 + $0x61] sm:$0xff]
        %v2031 = vld [vmem:[%s1974 + $0x71] sm:$0xff]
        %2040 = vrot.lane.b32.xlu0 %v2024, 110
        %v2041 = vpop.permute.xlu0 %2040
        %2042 = vrot.lane.b32.xlu0 %v2025, 110
        %v2043 = vpop.permute.xlu0 %2042
        %2044 = vrot.lane.b32.xlu0 %v2026, 110
        %v2045 = vpop.permute.xlu0 %2044
        %2046 = vrot.lane.b32.xlu0 %v2027, 110
        %v2047 = vpop.permute.xlu0 %2046
        %2048 = vrot.lane.b32.xlu0 %v2028, 110
        %v2049 = vpop.permute.xlu0 %2048
        %2050 = vrot.lane.b32.xlu0 %v2029, 110
        %v2051 = vpop.permute.xlu0 %2050
        %2052 = vrot.lane.b32.xlu0 %v2030, 110
        %v2053 = vpop.permute.xlu0 %2052
        %2054 = vrot.lane.b32.xlu0 %v2031, 110
        %v2055 = vpop.permute.xlu0 %2054
        %vm2064 = vcmask 982896
        %2065 = vst.msk [vmem:[#allocation3] sm:$0xff] %vm2064, %v2041
        %2066 = vst.msk [vmem:[#allocation3 + $0x10] sm:$0xff] %vm2064, %v2043
        %2067 = vst.msk [vmem:[#allocation3 + $0x20] sm:$0xff] %vm2064, %v2045
        %2068 = vst.msk [vmem:[#allocation3 + $0x30] sm:$0xff] %vm2064, %v2047
        %2069 = vst.msk [vmem:[#allocation3 + $0x40] sm:$0xff] %vm2064, %v2049
        %2070 = vst.msk [vmem:[#allocation3 + $0x50] sm:$0xff] %vm2064, %v2051
        %2071 = vst.msk [vmem:[#allocation3 + $0x60] sm:$0xff] %vm2064, %v2053
        %2072 = vst.msk [vmem:[#allocation3 + $0x70] sm:$0xff] %vm2064, %v2055
        %v2073 = vld [vmem:[%s1974 + $0x2] sm:$0xff]
        %v2074 = vld [vmem:[%s1974 + $0x12] sm:$0xff]
        %v2075 = vld [vmem:[%s1974 + $0x22] sm:$0xff]
        %v2076 = vld [vmem:[%s1974 + $0x32] sm:$0xff]
        %v2077 = vld [vmem:[%s1974 + $0x42] sm:$0xff]
        %v2078 = vld [vmem:[%s1974 + $0x52] sm:$0xff]
        %v2079 = vld [vmem:[%s1974 + $0x62] sm:$0xff]
        %v2080 = vld [vmem:[%s1974 + $0x72] sm:$0xff]
        %2089 = vrot.lane.b32.xlu0 %v2073, 120
        %v2090 = vpop.permute.xlu0 %2089
        %2091 = vrot.lane.b32.xlu0 %v2074, 120
        %v2092 = vpop.permute.xlu0 %2091
        %2093 = vrot.lane.b32.xlu0 %v2075, 120
        %v2094 = vpop.permute.xlu0 %2093
        %2095 = vrot.lane.b32.xlu0 %v2076, 120
        %v2096 = vpop.permute.xlu0 %2095
        %2097 = vrot.lane.b32.xlu0 %v2077, 120
        %v2098 = vpop.permute.xlu0 %2097
        %2099 = vrot.lane.b32.xlu0 %v2078, 120
        %v2100 = vpop.permute.xlu0 %2099
        %2101 = vrot.lane.b32.xlu0 %v2079, 120
        %v2102 = vpop.permute.xlu0 %2101
        %2103 = vrot.lane.b32.xlu0 %v2080, 120
        %v2104 = vpop.permute.xlu0 %2103
        %vm2113 = vcmask 1048512
        %2114 = vst.msk [vmem:[#allocation3] sm:$0xff] %vm2113, %v2090
        %vm2115 = vcmask 15360
        %2116 = vst.msk [vmem:[#allocation3 + $0x8] sm:$0xff] %vm2115, %v2090
        %2117 = vst.msk [vmem:[#allocation3 + $0x10] sm:$0xff] %vm2113, %v2092
        %2118 = vst.msk [vmem:[#allocation3 + $0x18] sm:$0xff] %vm2115, %v2092
        %2119 = vst.msk [vmem:[#allocation3 + $0x20] sm:$0xff] %vm2113, %v2094
        %2120 = vst.msk [vmem:[#allocation3 + $0x28] sm:$0xff] %vm2115, %v2094
        %2121 = vst.msk [vmem:[#allocation3 + $0x30] sm:$0xff] %vm2113, %v2096
        %2122 = vst.msk [vmem:[#allocation3 + $0x38] sm:$0xff] %vm2115, %v2096
        %2123 = vst.msk [vmem:[#allocation3 + $0x40] sm:$0xff] %vm2113, %v2098
        %2124 = vst.msk [vmem:[#allocation3 + $0x48] sm:$0xff] %vm2115, %v2098
        %2125 = vst.msk [vmem:[#allocation3 + $0x50] sm:$0xff] %vm2113, %v2100
        %2126 = vst.msk [vmem:[#allocation3 + $0x58] sm:$0xff] %vm2115, %v2100
        %2127 = vst.msk [vmem:[#allocation3 + $0x60] sm:$0xff] %vm2113, %v2102
        %2128 = vst.msk [vmem:[#allocation3 + $0x68] sm:$0xff] %vm2115, %v2102
        %2129 = vst.msk [vmem:[#allocation3 + $0x70] sm:$0xff] %vm2113, %v2104
        %2130 = vst.msk [vmem:[#allocation3 + $0x78] sm:$0xff] %vm2115, %v2104
        %v2131 = vld [vmem:[%s1974 + $0x3] sm:$0xff]
        %v2132 = vld [vmem:[%s1974 + $0x13] sm:$0xff]
        %v2133 = vld [vmem:[%s1974 + $0x23] sm:$0xff]
        %v2134 = vld [vmem:[%s1974 + $0x33] sm:$0xff]
        %v2135 = vld [vmem:[%s1974 + $0x43] sm:$0xff]
        %v2136 = vld [vmem:[%s1974 + $0x53] sm:$0xff]
        %v2137 = vld [vmem:[%s1974 + $0x63] sm:$0xff]
        %v2138 = vld [vmem:[%s1974 + $0x73] sm:$0xff]
        %2147 = vrot.lane.b32.xlu0 %v2131, 2
        %v2148 = vpop.permute.xlu0 %2147
        %2149 = vrot.lane.b32.xlu0 %v2132, 2
        %v2150 = vpop.permute.xlu0 %2149
        %2151 = vrot.lane.b32.xlu0 %v2133, 2
        %v2152 = vpop.permute.xlu0 %2151
        %2153 = vrot.lane.b32.xlu0 %v2134, 2
        %v2154 = vpop.permute.xlu0 %2153
        %2155 = vrot.lane.b32.xlu0 %v2135, 2
        %v2156 = vpop.permute.xlu0 %2155
        %2157 = vrot.lane.b32.xlu0 %v2136, 2
        %v2158 = vpop.permute.xlu0 %2157
        %2159 = vrot.lane.b32.xlu0 %v2137, 2
        %v2160 = vpop.permute.xlu0 %2159
        %2161 = vrot.lane.b32.xlu0 %v2138, 2
        %v2162 = vpop.permute.xlu0 %2161
        %vm2171 = vcmask 97296
        %2172 = vst.msk [vmem:[#allocation3 + $0x8] sm:$0xff] %vm2171, %v2148
        %2173 = vst.msk [vmem:[#allocation3 + $0x18] sm:$0xff] %vm2171, %v2150
        %2174 = vst.msk [vmem:[#allocation3 + $0x28] sm:$0xff] %vm2171, %v2152
        %2175 = vst.msk [vmem:[#allocation3 + $0x38] sm:$0xff] %vm2171, %v2154
        %2176 = vst.msk [vmem:[#allocation3 + $0x48] sm:$0xff] %vm2171, %v2156
        %2177 = vst.msk [vmem:[#allocation3 + $0x58] sm:$0xff] %vm2171, %v2158
        %2178 = vst.msk [vmem:[#allocation3 + $0x68] sm:$0xff] %vm2171, %v2160
        %2179 = vst.msk [vmem:[#allocation3 + $0x78] sm:$0xff] %vm2171, %v2162
        %v2180 = vld [vmem:[%s1974 + $0x4] sm:$0xff]
        %v2181 = vld [vmem:[%s1974 + $0x14] sm:$0xff]
        %v2182 = vld [vmem:[%s1974 + $0x24] sm:$0xff]
        %v2183 = vld [vmem:[%s1974 + $0x34] sm:$0xff]
        %v2184 = vld [vmem:[%s1974 + $0x44] sm:$0xff]
        %v2185 = vld [vmem:[%s1974 + $0x54] sm:$0xff]
        %v2186 = vld [vmem:[%s1974 + $0x64] sm:$0xff]
        %v2187 = vld [vmem:[%s1974 + $0x74] sm:$0xff]
        %2196 = vrot.lane.b32.xlu0 %v2180, 12
        %v2197 = vpop.permute.xlu0 %2196
        %2198 = vrot.lane.b32.xlu0 %v2181, 12
        %v2199 = vpop.permute.xlu0 %2198
        %2200 = vrot.lane.b32.xlu0 %v2182, 12
        %v2201 = vpop.permute.xlu0 %2200
        %2202 = vrot.lane.b32.xlu0 %v2183, 12
        %v2203 = vpop.permute.xlu0 %2202
        %2204 = vrot.lane.b32.xlu0 %v2184, 12
        %v2205 = vpop.permute.xlu0 %2204
        %2206 = vrot.lane.b32.xlu0 %v2185, 12
        %v2207 = vpop.permute.xlu0 %2206
        %2208 = vrot.lane.b32.xlu0 %v2186, 12
        %v2209 = vpop.permute.xlu0 %2208
        %2210 = vrot.lane.b32.xlu0 %v2187, 12
        %v2211 = vpop.permute.xlu0 %2210
        %vm2220 = vcmask 179296
        %2221 = vst.msk [vmem:[#allocation3 + $0x8] sm:$0xff] %vm2220, %v2197
        %2222 = vst.msk [vmem:[#allocation3 + $0x18] sm:$0xff] %vm2220, %v2199
        %2223 = vst.msk [vmem:[#allocation3 + $0x28] sm:$0xff] %vm2220, %v2201
        %2224 = vst.msk [vmem:[#allocation3 + $0x38] sm:$0xff] %vm2220, %v2203
        %2225 = vst.msk [vmem:[#allocation3 + $0x48] sm:$0xff] %vm2220, %v2205
        %2226 = vst.msk [vmem:[#allocation3 + $0x58] sm:$0xff] %vm2220, %v2207
        %2227 = vst.msk [vmem:[#allocation3 + $0x68] sm:$0xff] %vm2220, %v2209
        %2228 = vst.msk [vmem:[#allocation3 + $0x78] sm:$0xff] %vm2220, %v2211
        %s2229 = scalar_lea.vmem [#allocation2], 48
        %v2230 = vld [vmem:[%s2229] sm:$0xff]
        %v2231 = vld [vmem:[%s2229 + $0x10] sm:$0xff]
        %v2232 = vld [vmem:[%s2229 + $0x20] sm:$0xff]
        %v2233 = vld [vmem:[%s2229 + $0x30] sm:$0xff]
        %v2234 = vld [vmem:[%s2229 + $0x40] sm:$0xff]
        %v2235 = vld [vmem:[%s2229 + $0x50] sm:$0xff]
        %v2236 = vld [vmem:[%s2229 + $0x60] sm:$0xff]
        %v2237 = vld [vmem:[%s2229 + $0x70] sm:$0xff]
        %2246 = vrot.lane.b32.xlu0 %v2230, 22
        %v2247 = vpop.permute.xlu0 %2246
        %2248 = vrot.lane.b32.xlu0 %v2231, 22
        %v2249 = vpop.permute.xlu0 %2248
        %2250 = vrot.lane.b32.xlu0 %v2232, 22
        %v2251 = vpop.permute.xlu0 %2250
        %2252 = vrot.lane.b32.xlu0 %v2233, 22
        %v2253 = vpop.permute.xlu0 %2252
        %2254 = vrot.lane.b32.xlu0 %v2234, 22
        %v2255 = vpop.permute.xlu0 %2254
        %2256 = vrot.lane.b32.xlu0 %v2235, 22
        %v2257 = vpop.permute.xlu0 %2256
        %2258 = vrot.lane.b32.xlu0 %v2236, 22
        %v2259 = vpop.permute.xlu0 %2258
        %2260 = vrot.lane.b32.xlu0 %v2237, 22
        %v2261 = vpop.permute.xlu0 %2260
        %vm2270 = vcmask 261296
        %2271 = vst.msk [vmem:[#allocation3 + $0x8] sm:$0xff] %vm2270, %v2247
        %2272 = vst.msk [vmem:[#allocation3 + $0x18] sm:$0xff] %vm2270, %v2249
        %2273 = vst.msk [vmem:[#allocation3 + $0x28] sm:$0xff] %vm2270, %v2251
        %2274 = vst.msk [vmem:[#allocation3 + $0x38] sm:$0xff] %vm2270, %v2253
        %2275 = vst.msk [vmem:[#allocation3 + $0x48] sm:$0xff] %vm2270, %v2255
        %2276 = vst.msk [vmem:[#allocation3 + $0x58] sm:$0xff] %vm2270, %v2257
        %2277 = vst.msk [vmem:[#allocation3 + $0x68] sm:$0xff] %vm2270, %v2259
        %2278 = vst.msk [vmem:[#allocation3 + $0x78] sm:$0xff] %vm2270, %v2261
        %v2279 = vld [vmem:[%s2229 + $0x1] sm:$0xff]
        %v2280 = vld [vmem:[%s2229 + $0x11] sm:$0xff]
        %v2281 = vld [vmem:[%s2229 + $0x21] sm:$0xff]
        %v2282 = vld [vmem:[%s2229 + $0x31] sm:$0xff]
        %v2283 = vld [vmem:[%s2229 + $0x41] sm:$0xff]
        %v2284 = vld [vmem:[%s2229 + $0x51] sm:$0xff]
        %v2285 = vld [vmem:[%s2229 + $0x61] sm:$0xff]
        %v2286 = vld [vmem:[%s2229 + $0x71] sm:$0xff]
        %2295 = vrot.lane.b32.xlu0 %v2279, 32
        %v2296 = vpop.permute.xlu0 %2295
        %2297 = vrot.lane.b32.xlu0 %v2280, 32
        %v2298 = vpop.permute.xlu0 %2297
        %2299 = vrot.lane.b32.xlu0 %v2281, 32
        %v2300 = vpop.permute.xlu0 %2299
        %2301 = vrot.lane.b32.xlu0 %v2282, 32
        %v2302 = vpop.permute.xlu0 %2301
        %2303 = vrot.lane.b32.xlu0 %v2283, 32
        %v2304 = vpop.permute.xlu0 %2303
        %2305 = vrot.lane.b32.xlu0 %v2284, 32
        %v2306 = vpop.permute.xlu0 %2305
        %2307 = vrot.lane.b32.xlu0 %v2285, 32
        %v2308 = vpop.permute.xlu0 %2307
        %2309 = vrot.lane.b32.xlu0 %v2286, 32
        %v2310 = vpop.permute.xlu0 %2309
        %vm2319 = vcmask 343296
        %2320 = vst.msk [vmem:[#allocation3 + $0x8] sm:$0xff] %vm2319, %v2296
        %2321 = vst.msk [vmem:[#allocation3 + $0x18] sm:$0xff] %vm2319, %v2298
        %2322 = vst.msk [vmem:[#allocation3 + $0x28] sm:$0xff] %vm2319, %v2300
        %2323 = vst.msk [vmem:[#allocation3 + $0x38] sm:$0xff] %vm2319, %v2302
        %2324 = vst.msk [vmem:[#allocation3 + $0x48] sm:$0xff] %vm2319, %v2304
        %2325 = vst.msk [vmem:[#allocation3 + $0x58] sm:$0xff] %vm2319, %v2306
        %2326 = vst.msk [vmem:[#allocation3 + $0x68] sm:$0xff] %vm2319, %v2308
        %2327 = vst.msk [vmem:[#allocation3 + $0x78] sm:$0xff] %vm2319, %v2310
        %v2328 = vld [vmem:[%s2229 + $0x2] sm:$0xff]
        %v2329 = vld [vmem:[%s2229 + $0x12] sm:$0xff]
        %v2330 = vld [vmem:[%s2229 + $0x22] sm:$0xff]
        %v2331 = vld [vmem:[%s2229 + $0x32] sm:$0xff]
        %v2332 = vld [vmem:[%s2229 + $0x42] sm:$0xff]
        %v2333 = vld [vmem:[%s2229 + $0x52] sm:$0xff]
        %v2334 = vld [vmem:[%s2229 + $0x62] sm:$0xff]
        %v2335 = vld [vmem:[%s2229 + $0x72] sm:$0xff]
        %2344 = vrot.lane.b32.xlu0 %v2328, 42
        %v2345 = vpop.permute.xlu0 %2344
        %2346 = vrot.lane.b32.xlu0 %v2329, 42
        %v2347 = vpop.permute.xlu0 %2346
        %2348 = vrot.lane.b32.xlu0 %v2330, 42
        %v2349 = vpop.permute.xlu0 %2348
        %2350 = vrot.lane.b32.xlu0 %v2331, 42
        %v2351 = vpop.permute.xlu0 %2350
        %2352 = vrot.lane.b32.xlu0 %v2332, 42
        %v2353 = vpop.permute.xlu0 %2352
        %2354 = vrot.lane.b32.xlu0 %v2333, 42
        %v2355 = vpop.permute.xlu0 %2354
        %2356 = vrot.lane.b32.xlu0 %v2334, 42
        %v2357 = vpop.permute.xlu0 %2356
        %2358 = vrot.lane.b32.xlu0 %v2335, 42
        %v2359 = vpop.permute.xlu0 %2358
        %vm2368 = vcmask 425296
        %2369 = vst.msk [vmem:[#allocation3 + $0x8] sm:$0xff] %vm2368, %v2345
        %2370 = vst.msk [vmem:[#allocation3 + $0x18] sm:$0xff] %vm2368, %v2347
        %2371 = vst.msk [vmem:[#allocation3 + $0x28] sm:$0xff] %vm2368, %v2349
        %2372 = vst.msk [vmem:[#allocation3 + $0x38] sm:$0xff] %vm2368, %v2351
        %2373 = vst.msk [vmem:[#allocation3 + $0x48] sm:$0xff] %vm2368, %v2353
        %2374 = vst.msk [vmem:[#allocation3 + $0x58] sm:$0xff] %vm2368, %v2355
        %2375 = vst.msk [vmem:[#allocation3 + $0x68] sm:$0xff] %vm2368, %v2357
        %2376 = vst.msk [vmem:[#allocation3 + $0x78] sm:$0xff] %vm2368, %v2359
        %v2377 = vld [vmem:[%s2229 + $0x3] sm:$0xff]
        %v2378 = vld [vmem:[%s2229 + $0x13] sm:$0xff]
        %v2379 = vld [vmem:[%s2229 + $0x23] sm:$0xff]
        %v2380 = vld [vmem:[%s2229 + $0x33] sm:$0xff]
        %v2381 = vld [vmem:[%s2229 + $0x43] sm:$0xff]
        %v2382 = vld [vmem:[%s2229 + $0x53] sm:$0xff]
        %v2383 = vld [vmem:[%s2229 + $0x63] sm:$0xff]
        %v2384 = vld [vmem:[%s2229 + $0x73] sm:$0xff]
        %2393 = vrot.lane.b32.xlu0 %v2377, 52
        %v2394 = vpop.permute.xlu0 %2393
        %2395 = vrot.lane.b32.xlu0 %v2378, 52
        %v2396 = vpop.permute.xlu0 %2395
        %2397 = vrot.lane.b32.xlu0 %v2379, 52
        %v2398 = vpop.permute.xlu0 %2397
        %2399 = vrot.lane.b32.xlu0 %v2380, 52
        %v2400 = vpop.permute.xlu0 %2399
        %2401 = vrot.lane.b32.xlu0 %v2381, 52
        %v2402 = vpop.permute.xlu0 %2401
        %2403 = vrot.lane.b32.xlu0 %v2382, 52
        %v2404 = vpop.permute.xlu0 %2403
        %2405 = vrot.lane.b32.xlu0 %v2383, 52
        %v2406 = vpop.permute.xlu0 %2405
        %2407 = vrot.lane.b32.xlu0 %v2384, 52
        %v2408 = vpop.permute.xlu0 %2407
        %vm2417 = vcmask 507296
        %2418 = vst.msk [vmem:[#allocation3 + $0x8] sm:$0xff] %vm2417, %v2394
        %2419 = vst.msk [vmem:[#allocation3 + $0x18] sm:$0xff] %vm2417, %v2396
        %2420 = vst.msk [vmem:[#allocation3 + $0x28] sm:$0xff] %vm2417, %v2398
        %2421 = vst.msk [vmem:[#allocation3 + $0x38] sm:$0xff] %vm2417, %v2400
        %2422 = vst.msk [vmem:[#allocation3 + $0x48] sm:$0xff] %vm2417, %v2402
        %2423 = vst.msk [vmem:[#allocation3 + $0x58] sm:$0xff] %vm2417, %v2404
        %2424 = vst.msk [vmem:[#allocation3 + $0x68] sm:$0xff] %vm2417, %v2406
        %2425 = vst.msk [vmem:[#allocation3 + $0x78] sm:$0xff] %vm2417, %v2408
        %v2426 = vld [vmem:[%s2229 + $0x4] sm:$0xff]
        %v2427 = vld [vmem:[%s2229 + $0x14] sm:$0xff]
        %v2428 = vld [vmem:[%s2229 + $0x24] sm:$0xff]
        %v2429 = vld [vmem:[%s2229 + $0x34] sm:$0xff]
        %v2430 = vld [vmem:[%s2229 + $0x44] sm:$0xff]
        %v2431 = vld [vmem:[%s2229 + $0x54] sm:$0xff]
        %v2432 = vld [vmem:[%s2229 + $0x64] sm:$0xff]
        %v2433 = vld [vmem:[%s2229 + $0x74] sm:$0xff]
        %2442 = vrot.lane.b32.xlu0 %v2426, 62
        %v2443 = vpop.permute.xlu0 %2442
        %2444 = vrot.lane.b32.xlu0 %v2427, 62
        %v2445 = vpop.permute.xlu0 %2444
        %2446 = vrot.lane.b32.xlu0 %v2428, 62
        %v2447 = vpop.permute.xlu0 %2446
        %2448 = vrot.lane.b32.xlu0 %v2429, 62
        %v2449 = vpop.permute.xlu0 %2448
        %2450 = vrot.lane.b32.xlu0 %v2430, 62
        %v2451 = vpop.permute.xlu0 %2450
        %2452 = vrot.lane.b32.xlu0 %v2431, 62
        %v2453 = vpop.permute.xlu0 %2452
        %2454 = vrot.lane.b32.xlu0 %v2432, 62
        %v2455 = vpop.permute.xlu0 %2454
        %2456 = vrot.lane.b32.xlu0 %v2433, 62
        %v2457 = vpop.permute.xlu0 %2456
        %vm2466 = vcmask 589296
        %2467 = vst.msk [vmem:[#allocation3 + $0x8] sm:$0xff] %vm2466, %v2443
        %2468 = vst.msk [vmem:[#allocation3 + $0x18] sm:$0xff] %vm2466, %v2445
        %2469 = vst.msk [vmem:[#allocation3 + $0x28] sm:$0xff] %vm2466, %v2447
        %2470 = vst.msk [vmem:[#allocation3 + $0x38] sm:$0xff] %vm2466, %v2449
        %2471 = vst.msk [vmem:[#allocation3 + $0x48] sm:$0xff] %vm2466, %v2451
        %2472 = vst.msk [vmem:[#allocation3 + $0x58] sm:$0xff] %vm2466, %v2453
        %2473 = vst.msk [vmem:[#allocation3 + $0x68] sm:$0xff] %vm2466, %v2455
        %2474 = vst.msk [vmem:[#allocation3 + $0x78] sm:$0xff] %vm2466, %v2457
        %s2475 = scalar_lea.vmem [#allocation2], 64
        %v2476 = vld [vmem:[%s2475] sm:$0xff]
        %v2477 = vld [vmem:[%s2475 + $0x10] sm:$0xff]
        %v2478 = vld [vmem:[%s2475 + $0x20] sm:$0xff]
        %v2479 = vld [vmem:[%s2475 + $0x30] sm:$0xff]
        %v2480 = vld [vmem:[%s2475 + $0x40] sm:$0xff]
        %v2481 = vld [vmem:[%s2475 + $0x50] sm:$0xff]
        %v2482 = vld [vmem:[%s2475 + $0x60] sm:$0xff]
        %v2483 = vld [vmem:[%s2475 + $0x70] sm:$0xff]
        %2492 = vrot.lane.b32.xlu0 %v2476, 72
        %v2493 = vpop.permute.xlu0 %2492
        %2494 = vrot.lane.b32.xlu0 %v2477, 72
        %v2495 = vpop.permute.xlu0 %2494
        %2496 = vrot.lane.b32.xlu0 %v2478, 72
        %v2497 = vpop.permute.xlu0 %2496
        %2498 = vrot.lane.b32.xlu0 %v2479, 72
        %v2499 = vpop.permute.xlu0 %2498
        %2500 = vrot.lane.b32.xlu0 %v2480, 72
        %v2501 = vpop.permute.xlu0 %2500
        %2502 = vrot.lane.b32.xlu0 %v2481, 72
        %v2503 = vpop.permute.xlu0 %2502
        %2504 = vrot.lane.b32.xlu0 %v2482, 72
        %v2505 = vpop.permute.xlu0 %2504
        %2506 = vrot.lane.b32.xlu0 %v2483, 72
        %v2507 = vpop.permute.xlu0 %2506
        %vm2516 = vcmask 671296
        %2517 = vst.msk [vmem:[#allocation3 + $0x8] sm:$0xff] %vm2516, %v2493
        %2518 = vst.msk [vmem:[#allocation3 + $0x18] sm:$0xff] %vm2516, %v2495
        %2519 = vst.msk [vmem:[#allocation3 + $0x28] sm:$0xff] %vm2516, %v2497
        %2520 = vst.msk [vmem:[#allocation3 + $0x38] sm:$0xff] %vm2516, %v2499
        %2521 = vst.msk [vmem:[#allocation3 + $0x48] sm:$0xff] %vm2516, %v2501
        %2522 = vst.msk [vmem:[#allocation3 + $0x58] sm:$0xff] %vm2516, %v2503
        %2523 = vst.msk [vmem:[#allocation3 + $0x68] sm:$0xff] %vm2516, %v2505
        %2524 = vst.msk [vmem:[#allocation3 + $0x78] sm:$0xff] %vm2516, %v2507
        %v2525 = vld [vmem:[%s2475 + $0x1] sm:$0xff]
        %v2526 = vld [vmem:[%s2475 + $0x11] sm:$0xff]
        %v2527 = vld [vmem:[%s2475 + $0x21] sm:$0xff]
        %v2528 = vld [vmem:[%s2475 + $0x31] sm:$0xff]
        %v2529 = vld [vmem:[%s2475 + $0x41] sm:$0xff]
        %v2530 = vld [vmem:[%s2475 + $0x51] sm:$0xff]
        %v2531 = vld [vmem:[%s2475 + $0x61] sm:$0xff]
        %v2532 = vld [vmem:[%s2475 + $0x71] sm:$0xff]
        %2541 = vrot.lane.b32.xlu0 %v2525, 82
        %v2542 = vpop.permute.xlu0 %2541
        %2543 = vrot.lane.b32.xlu0 %v2526, 82
        %v2544 = vpop.permute.xlu0 %2543
        %2545 = vrot.lane.b32.xlu0 %v2527, 82
        %v2546 = vpop.permute.xlu0 %2545
        %2547 = vrot.lane.b32.xlu0 %v2528, 82
        %v2548 = vpop.permute.xlu0 %2547
        %2549 = vrot.lane.b32.xlu0 %v2529, 82
        %v2550 = vpop.permute.xlu0 %2549
        %2551 = vrot.lane.b32.xlu0 %v2530, 82
        %v2552 = vpop.permute.xlu0 %2551
        %2553 = vrot.lane.b32.xlu0 %v2531, 82
        %v2554 = vpop.permute.xlu0 %2553
        %2555 = vrot.lane.b32.xlu0 %v2532, 82
        %v2556 = vpop.permute.xlu0 %2555
        %vm2565 = vcmask 753296
        %2566 = vst.msk [vmem:[#allocation3 + $0x8] sm:$0xff] %vm2565, %v2542
        %2567 = vst.msk [vmem:[#allocation3 + $0x18] sm:$0xff] %vm2565, %v2544
        %2568 = vst.msk [vmem:[#allocation3 + $0x28] sm:$0xff] %vm2565, %v2546
        %2569 = vst.msk [vmem:[#allocation3 + $0x38] sm:$0xff] %vm2565, %v2548
        %2570 = vst.msk [vmem:[#allocation3 + $0x48] sm:$0xff] %vm2565, %v2550
        %2571 = vst.msk [vmem:[#allocation3 + $0x58] sm:$0xff] %vm2565, %v2552
        %2572 = vst.msk [vmem:[#allocation3 + $0x68] sm:$0xff] %vm2565, %v2554
        %2573 = vst.msk [vmem:[#allocation3 + $0x78] sm:$0xff] %vm2565, %v2556
        %v2574 = vld [vmem:[%s2475 + $0x2] sm:$0xff]
        %v2575 = vld [vmem:[%s2475 + $0x12] sm:$0xff]
        %v2576 = vld [vmem:[%s2475 + $0x22] sm:$0xff]
        %v2577 = vld [vmem:[%s2475 + $0x32] sm:$0xff]
        %v2578 = vld [vmem:[%s2475 + $0x42] sm:$0xff]
        %v2579 = vld [vmem:[%s2475 + $0x52] sm:$0xff]
        %v2580 = vld [vmem:[%s2475 + $0x62] sm:$0xff]
        %v2581 = vld [vmem:[%s2475 + $0x72] sm:$0xff]
        %2590 = vrot.lane.b32.xlu0 %v2574, 92
        %v2591 = vpop.permute.xlu0 %2590
        %2592 = vrot.lane.b32.xlu0 %v2575, 92
        %v2593 = vpop.permute.xlu0 %2592
        %2594 = vrot.lane.b32.xlu0 %v2576, 92
        %v2595 = vpop.permute.xlu0 %2594
        %2596 = vrot.lane.b32.xlu0 %v2577, 92
        %v2597 = vpop.permute.xlu0 %2596
        %2598 = vrot.lane.b32.xlu0 %v2578, 92
        %v2599 = vpop.permute.xlu0 %2598
        %2600 = vrot.lane.b32.xlu0 %v2579, 92
        %v2601 = vpop.permute.xlu0 %2600
        %2602 = vrot.lane.b32.xlu0 %v2580, 92
        %v2603 = vpop.permute.xlu0 %2602
        %2604 = vrot.lane.b32.xlu0 %v2581, 92
        %v2605 = vpop.permute.xlu0 %2604
        %vm2614 = vcmask 835296
        %2615 = vst.msk [vmem:[#allocation3 + $0x8] sm:$0xff] %vm2614, %v2591
        %2616 = vst.msk [vmem:[#allocation3 + $0x18] sm:$0xff] %vm2614, %v2593
        %2617 = vst.msk [vmem:[#allocation3 + $0x28] sm:$0xff] %vm2614, %v2595
        %2618 = vst.msk [vmem:[#allocation3 + $0x38] sm:$0xff] %vm2614, %v2597
        %2619 = vst.msk [vmem:[#allocation3 + $0x48] sm:$0xff] %vm2614, %v2599
        %2620 = vst.msk [vmem:[#allocation3 + $0x58] sm:$0xff] %vm2614, %v2601
        %2621 = vst.msk [vmem:[#allocation3 + $0x68] sm:$0xff] %vm2614, %v2603
        %2622 = vst.msk [vmem:[#allocation3 + $0x78] sm:$0xff] %vm2614, %v2605
        %v2623 = vld [vmem:[%s2475 + $0x3] sm:$0xff]
        %v2624 = vld [vmem:[%s2475 + $0x13] sm:$0xff]
        %v2625 = vld [vmem:[%s2475 + $0x23] sm:$0xff]
        %v2626 = vld [vmem:[%s2475 + $0x33] sm:$0xff]
        %v2627 = vld [vmem:[%s2475 + $0x43] sm:$0xff]
        %v2628 = vld [vmem:[%s2475 + $0x53] sm:$0xff]
        %v2629 = vld [vmem:[%s2475 + $0x63] sm:$0xff]
        %v2630 = vld [vmem:[%s2475 + $0x73] sm:$0xff]
        %2639 = vrot.lane.b32.xlu0 %v2623, 102
        %v2640 = vpop.permute.xlu0 %2639
        %2641 = vrot.lane.b32.xlu0 %v2624, 102
        %v2642 = vpop.permute.xlu0 %2641
        %2643 = vrot.lane.b32.xlu0 %v2625, 102
        %v2644 = vpop.permute.xlu0 %2643
        %2645 = vrot.lane.b32.xlu0 %v2626, 102
        %v2646 = vpop.permute.xlu0 %2645
        %2647 = vrot.lane.b32.xlu0 %v2627, 102
        %v2648 = vpop.permute.xlu0 %2647
        %2649 = vrot.lane.b32.xlu0 %v2628, 102
        %v2650 = vpop.permute.xlu0 %2649
        %2651 = vrot.lane.b32.xlu0 %v2629, 102
        %v2652 = vpop.permute.xlu0 %2651
        %2653 = vrot.lane.b32.xlu0 %v2630, 102
        %v2654 = vpop.permute.xlu0 %2653
        %vm2663 = vcmask 917296
        %2664 = vst.msk [vmem:[#allocation3 + $0x8] sm:$0xff] %vm2663, %v2640
        %2665 = vst.msk [vmem:[#allocation3 + $0x18] sm:$0xff] %vm2663, %v2642
        %2666 = vst.msk [vmem:[#allocation3 + $0x28] sm:$0xff] %vm2663, %v2644
        %2667 = vst.msk [vmem:[#allocation3 + $0x38] sm:$0xff] %vm2663, %v2646
        %2668 = vst.msk [vmem:[#allocation3 + $0x48] sm:$0xff] %vm2663, %v2648
        %2669 = vst.msk [vmem:[#allocation3 + $0x58] sm:$0xff] %vm2663, %v2650
        %2670 = vst.msk [vmem:[#allocation3 + $0x68] sm:$0xff] %vm2663, %v2652
        %2671 = vst.msk [vmem:[#allocation3 + $0x78] sm:$0xff] %vm2663, %v2654
        %v2672 = vld [vmem:[%s2475 + $0x4] sm:$0xff]
        %v2673 = vld [vmem:[%s2475 + $0x14] sm:$0xff]
        %v2674 = vld [vmem:[%s2475 + $0x24] sm:$0xff]
        %v2675 = vld [vmem:[%s2475 + $0x34] sm:$0xff]
        %v2676 = vld [vmem:[%s2475 + $0x44] sm:$0xff]
        %v2677 = vld [vmem:[%s2475 + $0x54] sm:$0xff]
        %v2678 = vld [vmem:[%s2475 + $0x64] sm:$0xff]
        %v2679 = vld [vmem:[%s2475 + $0x74] sm:$0xff]
        %2688 = vrot.lane.b32.xlu0 %v2672, 112
        %v2689 = vpop.permute.xlu0 %2688
        %2690 = vrot.lane.b32.xlu0 %v2673, 112
        %v2691 = vpop.permute.xlu0 %2690
        %2692 = vrot.lane.b32.xlu0 %v2674, 112
        %v2693 = vpop.permute.xlu0 %2692
        %2694 = vrot.lane.b32.xlu0 %v2675, 112
        %v2695 = vpop.permute.xlu0 %2694
        %2696 = vrot.lane.b32.xlu0 %v2676, 112
        %v2697 = vpop.permute.xlu0 %2696
        %2698 = vrot.lane.b32.xlu0 %v2677, 112
        %v2699 = vpop.permute.xlu0 %2698
        %2700 = vrot.lane.b32.xlu0 %v2678, 112
        %v2701 = vpop.permute.xlu0 %2700
        %2702 = vrot.lane.b32.xlu0 %v2679, 112
        %v2703 = vpop.permute.xlu0 %2702
        %vm2712 = vcmask 999296
        %2713 = vst.msk [vmem:[#allocation3 + $0x8] sm:$0xff] %vm2712, %v2689
        %2714 = vst.msk [vmem:[#allocation3 + $0x18] sm:$0xff] %vm2712, %v2691
        %2715 = vst.msk [vmem:[#allocation3 + $0x28] sm:$0xff] %vm2712, %v2693
        %2716 = vst.msk [vmem:[#allocation3 + $0x38] sm:$0xff] %vm2712, %v2695
        %2717 = vst.msk [vmem:[#allocation3 + $0x48] sm:$0xff] %vm2712, %v2697
        %2718 = vst.msk [vmem:[#allocation3 + $0x58] sm:$0xff] %vm2712, %v2699
        %2719 = vst.msk [vmem:[#allocation3 + $0x68] sm:$0xff] %vm2712, %v2701
        %2720 = vst.msk [vmem:[#allocation3 + $0x78] sm:$0xff] %vm2712, %v2703
        %v2721 = vld [vmem:[#allocation3] sm:$0xff]
        %v2722 = vld [vmem:[#allocation3 + $0x8] sm:$0xff]
        %v2723 = vld [vmem:[#allocation3 + $0x10] sm:$0xff]
        %v2724 = vld [vmem:[#allocation3 + $0x18] sm:$0xff]
        %v2725 = vld [vmem:[#allocation3 + $0x20] sm:$0xff]
        %v2726 = vld [vmem:[#allocation3 + $0x28] sm:$0xff]
        %v2727 = vld [vmem:[#allocation3 + $0x30] sm:$0xff]
        %v2728 = vld [vmem:[#allocation3 + $0x38] sm:$0xff]
        %v2729 = vld [vmem:[#allocation3 + $0x40] sm:$0xff]
        %v2730 = vld [vmem:[#allocation3 + $0x48] sm:$0xff]
        %v2731 = vld [vmem:[#allocation3 + $0x50] sm:$0xff]
        %v2732 = vld [vmem:[#allocation3 + $0x58] sm:$0xff]
        %v2733 = vld [vmem:[#allocation3 + $0x60] sm:$0xff]
        %v2734 = vld [vmem:[#allocation3 + $0x68] sm:$0xff]
        %v2735 = vld [vmem:[#allocation3 + $0x70] sm:$0xff]
        %v2736 = vld [vmem:[#allocation3 + $0x78] sm:$0xff]
        %v2737 = vld [vmem:[%s3] sm:$0xff]
        %v2738 = vld [vmem:[%s3 + $0x8] sm:$0xff]
        %v2739 = vld [vmem:[%s3 + $0x10] sm:$0xff]
        %v2740 = vld [vmem:[%s3 + $0x18] sm:$0xff]
        %v2741 = vld [vmem:[%s3 + $0x20] sm:$0xff]
        %v2742 = vld [vmem:[%s3 + $0x28] sm:$0xff]
        %v2743 = vld [vmem:[%s3 + $0x30] sm:$0xff]
        %v2744 = vld [vmem:[%s3 + $0x38] sm:$0xff]
        %v2745 = vld [vmem:[%s3 + $0x40] sm:$0xff]
        %v2746 = vld [vmem:[%s3 + $0x48] sm:$0xff]
        %v2747 = vld [vmem:[%s3 + $0x50] sm:$0xff]
        %v2748 = vld [vmem:[%s3 + $0x58] sm:$0xff]
        %v2749 = vld [vmem:[%s3 + $0x60] sm:$0xff]
        %v2750 = vld [vmem:[%s3 + $0x68] sm:$0xff]
        %v2751 = vld [vmem:[%s3 + $0x70] sm:$0xff]
        %v2752 = vld [vmem:[%s3 + $0x78] sm:$0xff]
        %v2753 = vld [vmem:[%s3 + $0x80] sm:$0xff]
        %v2754 = vld [vmem:[%s3 + $0x88] sm:$0xff]
        %v2755 = vld [vmem:[%s3 + $0x90] sm:$0xff]
        %v2756 = vld [vmem:[%s3 + $0x98] sm:$0xff]
        %v2757 = vld [vmem:[%s3 + $0xa0] sm:$0xff]
        %v2758 = vld [vmem:[%s3 + $0xa8] sm:$0xff]
        %v2759 = vld [vmem:[%s3 + $0xb0] sm:$0xff]
        %v2760 = vld [vmem:[%s3 + $0xb8] sm:$0xff]
        %v2761 = vld [vmem:[%s3 + $0xc0] sm:$0xff]
        %v2762 = vld [vmem:[%s3 + $0xc8] sm:$0xff]
        %v2763 = vld [vmem:[%s3 + $0xd0] sm:$0xff]
        %v2764 = vld [vmem:[%s3 + $0xd8] sm:$0xff]
        %v2765 = vld [vmem:[%s3 + $0xe0] sm:$0xff]
        %v2766 = vld [vmem:[%s3 + $0xe8] sm:$0xff]
        %v2767 = vld [vmem:[%s3 + $0xf0] sm:$0xff]
        %v2768 = vld [vmem:[%s3 + $0xf8] sm:$0x3]
        %vm2769 = vcmask 998400
        %v2771 = vsel %vm2769, %v2722, 0
        %v2774 = vsel %vm2769, %v2724, 0
        %v2777 = vsel %vm2769, %v2726, 0
        %v2780 = vsel %vm2769, %v2728, 0
        %v2783 = vsel %vm2769, %v2730, 0
        %v2786 = vsel %vm2769, %v2732, 0
        %v2789 = vsel %vm2769, %v2734, 0
        %v2792 = vsel %vm2769, %v2736, 0
        %vm2794 = vcmask 1041408
        %v2796 = vsel %vm2794, %v2768, 0
        %2798 = vmatprep.subr.mxu0 0.0
        %2799 = vmatpush1.msra.mxu0 %v2737
        %2800 = vmatprep.subr.mxu0 0.0
        %2801 = vmatpush1.msra.mxu0 %v2738
        %2802 = vmatprep.subr.mxu0 0.0
        %2803 = vmatpush1.msra.mxu0 %v2739
        %2804 = vmatprep.subr.mxu0 0.0
        %2805 = vmatpush1.msra.mxu0 %v2740
        %2806 = vmatprep.subr.mxu0 0.0
        %2807 = vmatpush1.msra.mxu0 %v2741
        %2808 = vmatprep.subr.mxu0 0.0
        %2809 = vmatpush1.msra.mxu0 %v2742
        %2810 = vmatprep.subr.mxu0 0.0
        %2811 = vmatpush1.msra.mxu0 %v2743
        %2812 = vmatprep.subr.mxu0 0.0
        %2813 = vmatpush1.msra.mxu0 %v2744
        %2814 = vmatprep.subr.mxu0 0.0
        %2815 = vmatpush1.msra.mxu0 %v2745
        %2816 = vmatprep.subr.mxu0 0.0
        %2817 = vmatpush1.msra.mxu0 %v2746
        %2818 = vmatprep.subr.mxu0 0.0
        %2819 = vmatpush1.msra.mxu0 %v2747
        %2820 = vmatprep.subr.mxu0 0.0
        %2821 = vmatpush1.msra.mxu0 %v2748
        %2822 = vmatprep.subr.mxu0 0.0
        %2823 = vmatpush1.msra.mxu0 %v2749
        %2824 = vmatprep.subr.mxu0 0.0
        %2825 = vmatpush1.msra.mxu0 %v2750
        %2826 = vmatprep.subr.mxu0 0.0
        %2827 = vmatpush1.msra.mxu0 %v2751
        %2828 = vmatprep.subr.mxu0 0.0
        %2829 = vmatpush1.msra.mxu0 %v2752
        %2830 = vmatprep.subr.mxu0 0.0
        %2831 = vmatpush1.msra.mxu0 %v2753
        %2832 = vmatprep.subr.mxu0 0.0
        %2833 = vmatpush1.msra.mxu0 %v2754
        %2834 = vmatprep.subr.mxu0 0.0
        %2835 = vmatpush1.msra.mxu0 %v2755
        %2836 = vmatprep.subr.mxu0 0.0
        %2837 = vmatpush1.msra.mxu0 %v2756
        %2838 = vmatprep.subr.mxu0 0.0
        %2839 = vmatpush1.msra.mxu0 %v2757
        %2840 = vmatprep.subr.mxu0 0.0
        %2841 = vmatpush1.msra.mxu0 %v2758
        %2842 = vmatprep.subr.mxu0 0.0
        %2843 = vmatpush1.msra.mxu0 %v2759
        %2844 = vmatprep.subr.mxu0 0.0
        %2845 = vmatpush1.msra.mxu0 %v2760
        %2846 = vmatprep.subr.mxu0 0.0
        %2847 = vmatpush1.msra.mxu0 %v2761
        %2848 = vmatprep.subr.mxu0 0.0
        %2849 = vmatpush1.msra.mxu0 %v2762
        %2850 = vmatprep.subr.mxu0 0.0
        %2851 = vmatpush1.msra.mxu0 %v2763
        %2852 = vmatprep.subr.mxu0 0.0
        %2853 = vmatpush1.msra.mxu0 %v2764
        %2854 = vmatprep.subr.mxu0 0.0
        %2855 = vmatpush1.msra.mxu0 %v2765
        %2856 = vmatprep.subr.mxu0 0.0
        %2857 = vmatpush1.msra.mxu0 %v2766
        %2858 = vmatprep.subr.mxu0 0.0
        %2859 = vmatpush1.msra.mxu0 %v2767
        %2860 = vmatprep.subr.mxu0 0.0
        %2861 = vmatpush1.msra.mxu0 %v2796
        %2862 = vmatprep.mubr.f32.mxu0 %v2771
        %2863 = vmatmul.mubr.f32.gmra.mrb[0].mxu0 %v2721
        %v2864 = vpop.f32.mrb[0].mxu0
        %v2865 = vadd.f32 0.0, %v2864
        %v2866 = vpop.f32.mrb[0].mxu0
        %2867 = vmatprep.mubr.f32.mxu0 %v2774
        %2868 = vmatmul.mubr.f32.gmra.mrb[0].mxu0 %v2723
        %v2869 = vpop.f32.mrb[0].mxu0
        %v2870 = vadd.f32 0.0, %v2869
        %v2871 = vpop.f32.mrb[0].mxu0
        %2872 = vmatprep.mubr.f32.mxu0 %v2777
        %2873 = vmatmul.mubr.f32.gmra.mrb[0].mxu0 %v2725
        %v2874 = vpop.f32.mrb[0].mxu0
        %v2875 = vadd.f32 0.0, %v2874
        %v2876 = vpop.f32.mrb[0].mxu0
        %2877 = vmatprep.mubr.f32.mxu0 %v2780
        %2878 = vmatmul.mubr.f32.gmra.mrb[0].mxu0 %v2727
        %v2879 = vpop.f32.mrb[0].mxu0
        %v2880 = vadd.f32 0.0, %v2879
        %v2881 = vpop.f32.mrb[0].mxu0
        %2882 = vmatprep.mubr.f32.mxu0 %v2783
        %2883 = vmatmul.mubr.f32.gmra.mrb[0].mxu0 %v2729
        %v2884 = vpop.f32.mrb[0].mxu0
        %v2885 = vadd.f32 0.0, %v2884
        %v2886 = vpop.f32.mrb[0].mxu0
        %2887 = vmatprep.mubr.f32.mxu0 %v2786
        %2888 = vmatmul.mubr.f32.gmra.mrb[0].mxu0 %v2731
        %v2889 = vpop.f32.mrb[0].mxu0
        %v2890 = vadd.f32 0.0, %v2889
        %v2891 = vpop.f32.mrb[0].mxu0
        %2892 = vmatprep.mubr.f32.mxu0 %v2789
        %2893 = vmatmul.mubr.f32.gmra.mrb[0].mxu0 %v2733
        %v2894 = vpop.f32.mrb[0].mxu0
        %v2895 = vadd.f32 0.0, %v2894
        %v2896 = vpop.f32.mrb[0].mxu0
        %2897 = vmatprep.mubr.f32.mxu0 %v2792
        %2898 = vmatmul.mubr.f32.gmra.mrb[0].mxu0 %v2735
        %v2899 = vpop.f32.mrb[0].mxu0
        %v2900 = vadd.f32 0.0, %v2899
        %v2901 = vpop.f32.mrb[0].mxu0
        %2902 = vdwg.mxu0
        %vm2903 = vcmask 162816
        %v2904 = vsel %vm2903, %v2865, -inf
        %v2905 = vsel %vm2903, %v2870, -inf
        %v2906 = vmax.f32 %v2904, %v2905
        %v2907 = vsel %vm2903, %v2875, -inf
        %v2908 = vsel %vm2903, %v2880, -inf
        %v2909 = vmax.f32 %v2907, %v2908
        %v2910 = vsel %vm2903, %v2885, -inf
        %v2911 = vsel %vm2903, %v2890, -inf
        %v2912 = vmax.f32 %v2910, %v2911
        %v2913 = vsel %vm2903, %v2895, -inf
        %v2914 = vsel %vm2903, %v2900, -inf
        %v2915 = vmax.f32 %v2913, %v2914
        %v2916 = vld [vmem:[%s4] sm:$0x1]
        %v2918 = vlaneseq
        %v2919 = vshrl.u32 %v2918, 7
        %v2920 = vsub.s32 0, %v2919
        %v2921 = vrot.slane %v2916, %v2920
        %v2923 = vadd.f32 %v2906, %v2921
        %v2924 = vadd.f32 %v2909, %v2921
        %v2925 = vadd.f32 %v2912, %v2921
        %v2926 = vadd.f32 %v2915, %v2921
        %v2927 = vmax.f32 %v2923, 0.0
        %v2928 = vmax.f32 %v2924, 0.0
        %v2929 = vmax.f32 %v2925, 0.0
        %v2930 = vmax.f32 %v2926, 0.0
        %v2932 = vrot.slane %v2927, 1
        %v2934 = vmax.f32 %v2927, %v2932
        %v2935 = vlaneseq
        %vm2936 = vcmp.ge.s32.totalorder %v2935, 0
        %vm2937 = vcmp.lt.s32.totalorder %v2935, 20
        %vm2938 = vmand %vm2936, %vm2937
        %2939 = vst.msk [vmem:[#allocation4] sm:$0x1] %vm2938, %v2934
        %v2942 = vunpack.c.l.s4 1966171168
        %v2943 = vunpack.c.0.s8 %v2942
        %v2944 = vlaneseq
        %v2945 = vshrl.u32 %v2944, 7
        %v2946 = vsub.s32 %v2943, %v2945
        %v2947 = vrot.slane %v2934, %v2946
        %v2949 = vunpack.c.l.s4 1966171168
        %v2950 = vunpack.c.0.s8 %v2949
        %v2951 = vlaneseq
        %v2952 = vshrl.u32 %v2951, 7
        %v2953 = vsub.s32 %v2950, %v2952
        %v2954 = vrot.slane %v2947, %v2953
        %v2955 = vcombine.high %v2954, %v2954
        %2956 = vrot.lane.b32.xlu0 %v2955, 20
        %v2957 = vpop.permute.xlu0 %2956
        %vm2959 = vcmp.ge.s32.totalorder %v2935, 20
        %vm2960 = vcmp.lt.s32.totalorder %v2935, 40
        %vm2961 = vmand %vm2959, %vm2960
        %2962 = vst.msk [vmem:[#allocation4] sm:$0x1] %vm2961, %v2957
        %v2963 = vcombine.high %v2934, %v2934
        %v2965 = vunpack.c.l.s4 1966171168
        %v2966 = vunpack.c.0.s8 %v2965
        %v2967 = vlaneseq
        %v2968 = vshrl.u32 %v2967, 7
        %v2969 = vsub.s32 %v2966, %v2968
        %v2970 = vrot.slane %v2963, %v2969
        %v2972 = vunpack.c.l.s4 1966171168
        %v2973 = vunpack.c.0.s8 %v2972
        %v2974 = vlaneseq
        %v2975 = vshrl.u32 %v2974, 7
        %v2976 = vsub.s32 %v2973, %v2975
        %v2977 = vrot.slane %v2970, %v2976
        %2978 = vrot.lane.b32.xlu0 %v2977, 40
        %v2979 = vpop.permute.xlu0 %2978
        %vm2981 = vcmp.ge.s32.totalorder %v2935, 40
        %vm2982 = vcmp.lt.s32.totalorder %v2935, 60
        %vm2983 = vmand %vm2981, %vm2982
        %2984 = vst.msk [vmem:[#allocation4] sm:$0x1] %vm2983, %v2979
        %v2985 = vcombine.high %v2977, %v2977
        %2986 = vrot.lane.b32.xlu0 %v2985, 60
        %v2987 = vpop.permute.xlu0 %2986
        %vm2989 = vcmp.ge.s32.totalorder %v2935, 60
        %vm2990 = vcmp.lt.s32.totalorder %v2935, 80
        %vm2991 = vmand %vm2989, %vm2990
        %2992 = vst.msk [vmem:[#allocation4] sm:$0x1] %vm2991, %v2987
        %v2994 = vrot.slane %v2928, 1
        %v2996 = vmax.f32 %v2928, %v2994
        %v2999 = vunpack.c.l.s4 1966171168
        %v3000 = vunpack.c.0.s8 %v2999
        %v3001 = vlaneseq
        %v3002 = vshrl.u32 %v3001, 7
        %v3003 = vsub.s32 %v3000, %v3002
        %v3004 = vrot.slane %v2996, %v3003
        %v3006 = vunpack.c.l.s4 1966171168
        %v3007 = vunpack.c.0.s8 %v3006
        %v3008 = vlaneseq
        %v3009 = vshrl.u32 %v3008, 7
        %v3010 = vsub.s32 %v3007, %v3009
        %v3011 = vrot.slane %v3004, %v3010
        %3012 = vrot.lane.b32.xlu0 %v3011, 80
        %v3013 = vpop.permute.xlu0 %3012
        %vm3015 = vcmp.ge.s32.totalorder %v2935, 80
        %vm3016 = vcmp.lt.s32.totalorder %v2935, 100
        %vm3017 = vmand %vm3015, %vm3016
        %3018 = vst.msk [vmem:[#allocation4] sm:$0x1] %vm3017, %v3013
        %v3019 = vcombine.high %v3011, %v3011
        %3020 = vrot.lane.b32.xlu0 %v3019, 100
        %v3021 = vpop.permute.xlu0 %3020
        %vm3023 = vcmp.ge.s32.totalorder %v2935, 100
        %vm3024 = vcmp.lt.s32.totalorder %v2935, 120
        %vm3025 = vmand %vm3023, %vm3024
        %3026 = vst.msk [vmem:[#allocation4] sm:$0x1] %vm3025, %v3021
        %v3027 = vcombine.high %v2996, %v2996
        %v3029 = vunpack.c.l.s4 1966171168
        %v3030 = vunpack.c.0.s8 %v3029
        %v3031 = vlaneseq
        %v3032 = vshrl.u32 %v3031, 7
        %v3033 = vsub.s32 %v3030, %v3032
        %v3034 = vrot.slane %v3027, %v3033
        %v3036 = vunpack.c.l.s4 1966171168
        %v3037 = vunpack.c.0.s8 %v3036
        %v3038 = vlaneseq
        %v3039 = vshrl.u32 %v3038, 7
        %v3040 = vsub.s32 %v3037, %v3039
        %v3041 = vrot.slane %v3034, %v3040
        %3042 = vrot.lane.b32.xlu0 %v3041, 120
        %v3043 = vpop.permute.xlu0 %3042
        %v3044 = vrot.slane %v3043, 7
        %vm3045 = vcmask 982016
        %v3046 = vsel %vm3045, %v3044, %v3043
        %vm3048 = vcmp.ge.s32.totalorder %v2935, 120
        %vm3049 = vcmp.lt.s32.totalorder %v2935, 140
        %vm3050 = vmand %vm3048, %vm3049
        %3051 = vst.msk [vmem:[#allocation4] sm:$0x3] %vm3050, %v3046
        %v3052 = vcombine.high %v3041, %v3041
        %3053 = vrot.lane.b32.xlu0 %v3052, 12
        %v3054 = vpop.permute.xlu0 %3053
        %vm3056 = vcmp.ge.s32.totalorder %v2935, 12
        %vm3057 = vcmp.lt.s32.totalorder %v2935, 32
        %vm3058 = vmand %vm3056, %vm3057
        %3059 = vst.msk [vmem:[#allocation4 + $0x1] sm:$0x1] %vm3058, %v3054
        %v3061 = vrot.slane %v2929, 1
        %v3063 = vmax.f32 %v2929, %v3061
        %v3066 = vunpack.c.l.s4 1966171168
        %v3067 = vunpack.c.0.s8 %v3066
        %v3068 = vlaneseq
        %v3069 = vshrl.u32 %v3068, 7
        %v3070 = vsub.s32 %v3067, %v3069
        %v3071 = vrot.slane %v3063, %v3070
        %v3073 = vunpack.c.l.s4 1966171168
        %v3074 = vunpack.c.0.s8 %v3073
        %v3075 = vlaneseq
        %v3076 = vshrl.u32 %v3075, 7
        %v3077 = vsub.s32 %v3074, %v3076
        %v3078 = vrot.slane %v3071, %v3077
        %3079 = vrot.lane.b32.xlu0 %v3078, 32
        %v3080 = vpop.permute.xlu0 %3079
        %vm3082 = vcmp.ge.s32.totalorder %v2935, 32
        %vm3083 = vcmp.lt.s32.totalorder %v2935, 52
        %vm3084 = vmand %vm3082, %vm3083
        %3085 = vst.msk [vmem:[#allocation4 + $0x1] sm:$0x1] %vm3084, %v3080
        %v3086 = vcombine.high %v3078, %v3078
        %3087 = vrot.lane.b32.xlu0 %v3086, 52
        %v3088 = vpop.permute.xlu0 %3087
        %vm3090 = vcmp.ge.s32.totalorder %v2935, 52
        %vm3091 = vcmp.lt.s32.totalorder %v2935, 72
        %vm3092 = vmand %vm3090, %vm3091
        %3093 = vst.msk [vmem:[#allocation4 + $0x1] sm:$0x1] %vm3092, %v3088
        %v3094 = vcombine.high %v3063, %v3063
        %v3096 = vunpack.c.l.s4 1966171168
        %v3097 = vunpack.c.0.s8 %v3096
        %v3098 = vlaneseq
        %v3099 = vshrl.u32 %v3098, 7
        %v3100 = vsub.s32 %v3097, %v3099
        %v3101 = vrot.slane %v3094, %v3100
        %v3103 = vunpack.c.l.s4 1966171168
        %v3104 = vunpack.c.0.s8 %v3103
        %v3105 = vlaneseq
        %v3106 = vshrl.u32 %v3105, 7
        %v3107 = vsub.s32 %v3104, %v3106
        %v3108 = vrot.slane %v3101, %v3107
        %3109 = vrot.lane.b32.xlu0 %v3108, 72
        %v3110 = vpop.permute.xlu0 %3109
        %vm3112 = vcmp.ge.s32.totalorder %v2935, 72
        %vm3113 = vcmp.lt.s32.totalorder %v2935, 92
        %vm3114 = vmand %vm3112, %vm3113
        %3115 = vst.msk [vmem:[#allocation4 + $0x1] sm:$0x1] %vm3114, %v3110
        %v3116 = vcombine.high %v3108, %v3108
        %3117 = vrot.lane.b32.xlu0 %v3116, 92
        %v3118 = vpop.permute.xlu0 %3117
        %vm3120 = vcmp.ge.s32.totalorder %v2935, 92
        %vm3121 = vcmp.lt.s32.totalorder %v2935, 112
        %vm3122 = vmand %vm3120, %vm3121
        %3123 = vst.msk [vmem:[#allocation4 + $0x1] sm:$0x1] %vm3122, %v3118
        %v3125 = vrot.slane %v2930, 1
        %v3127 = vmax.f32 %v2930, %v3125
        %v3130 = vunpack.c.l.s4 1966171168
        %v3131 = vunpack.c.0.s8 %v3130
        %v3132 = vlaneseq
        %v3133 = vshrl.u32 %v3132, 7
        %v3134 = vsub.s32 %v3131, %v3133
        %v3135 = vrot.slane %v3127, %v3134
        %v3137 = vunpack.c.l.s4 1966171168
        %v3138 = vunpack.c.0.s8 %v3137
        %v3139 = vlaneseq
        %v3140 = vshrl.u32 %v3139, 7
        %v3141 = vsub.s32 %v3138, %v3140
        %v3142 = vrot.slane %v3135, %v3141
        %3143 = vrot.lane.b32.xlu0 %v3142, 112
        %v3144 = vpop.permute.xlu0 %3143
        %v3145 = vrot.slane %v3144, 7
        %vm3146 = vcmask 916480
        %v3147 = vsel %vm3146, %v3145, %v3144
        %vm3149 = vcmp.ge.s32.totalorder %v2935, 112
        %vm3150 = vcmp.lt.s32.totalorder %v2935, 132
        %vm3151 = vmand %vm3149, %vm3150
        %3152 = vst.msk [vmem:[#allocation4 + $0x1] sm:$0x3] %vm3151, %v3147
        %v3153 = vcombine.high %v3142, %v3142
        %3154 = vrot.lane.b32.xlu0 %v3153, 4
        %v3155 = vpop.permute.xlu0 %3154
        %vm3157 = vcmp.ge.s32.totalorder %v2935, 4
        %vm3158 = vcmp.lt.s32.totalorder %v2935, 24
        %vm3159 = vmand %vm3157, %vm3158
        %3160 = vst.msk [vmem:[#allocation4 + $0x2] sm:$0x1] %vm3159, %v3155
        %v3161 = vcombine.high %v3127, %v3127
        %v3163 = vunpack.c.l.s4 1966171168
        %v3164 = vunpack.c.0.s8 %v3163
        %v3165 = vlaneseq
        %v3166 = vshrl.u32 %v3165, 7
        %v3167 = vsub.s32 %v3164, %v3166
        %v3168 = vrot.slane %v3161, %v3167
        %v3170 = vunpack.c.l.s4 1966171168
        %v3171 = vunpack.c.0.s8 %v3170
        %v3172 = vlaneseq
        %v3173 = vshrl.u32 %v3172, 7
        %v3174 = vsub.s32 %v3171, %v3173
        %v3175 = vrot.slane %v3168, %v3174
        %3176 = vrot.lane.b32.xlu0 %v3175, 24
        %v3177 = vpop.permute.xlu0 %3176
        %vm3179 = vcmp.ge.s32.totalorder %v2935, 24
        %vm3180 = vcmp.lt.s32.totalorder %v2935, 44
        %vm3181 = vmand %vm3179, %vm3180
        %3182 = vst.msk [vmem:[#allocation4 + $0x2] sm:$0x1] %vm3181, %v3177
        %v3183 = vcombine.high %v3175, %v3175
        %3184 = vrot.lane.b32.xlu0 %v3183, 44
        %v3185 = vpop.permute.xlu0 %3184
        %vm3187 = vcmp.ge.s32.totalorder %v2935, 44
        %vm3188 = vcmp.lt.s32.totalorder %v2935, 64
        %vm3189 = vmand %vm3187, %vm3188
        %3190 = vst.msk [vmem:[#allocation4 + $0x2] sm:$0x1] %vm3189, %v3185
        %v3191 = vld [vmem:[#allocation4] sm:$0x7]
        %v3192 = vld [vmem:[%s5] sm:$0xff]
        %v3193 = vld [vmem:[%s5 + $0x8] sm:$0xff]
        %v3194 = vld [vmem:[%s5 + $0x10] sm:$0xff]
        %v3195 = vld [vmem:[%s5 + $0x18] sm:$0xff]
        %v3196 = vld [vmem:[%s5 + $0x20] sm:$0xff]
        %v3197 = vld [vmem:[%s5 + $0x28] sm:$0xff]
        %v3198 = vld [vmem:[%s5 + $0x30] sm:$0xff]
        %v3199 = vld [vmem:[%s5 + $0x38] sm:$0xff]
        %v3200 = vld [vmem:[%s5 + $0x40] sm:$0xff]
        %v3201 = vld [vmem:[%s5 + $0x48] sm:$0xff]
        %v3202 = vld [vmem:[%s5 + $0x50] sm:$0xff]
        %v3203 = vld [vmem:[%s5 + $0x58] sm:$0xff]
        %v3204 = vld [vmem:[%s5 + $0x60] sm:$0xff]
        %v3205 = vld [vmem:[%s5 + $0x68] sm:$0xff]
        %v3206 = vld [vmem:[%s5 + $0x70] sm:$0xff]
        %v3207 = vld [vmem:[%s5 + $0x78] sm:$0xff]
        %v3208 = vld [vmem:[%s5 + $0x80] sm:$0xff]
        %v3209 = vld [vmem:[%s5 + $0x88] sm:$0xff]
        %v3210 = vld [vmem:[%s5 + $0x90] sm:$0xff]
        %v3211 = vld [vmem:[%s5 + $0x98] sm:$0xff]
        %v3212 = vld [vmem:[%s5 + $0xa0] sm:$0xff]
        %v3213 = vld [vmem:[%s5 + $0xa8] sm:$0xff]
        %v3214 = vld [vmem:[%s5 + $0xb0] sm:$0xff]
        %v3215 = vld [vmem:[%s5 + $0xb8] sm:$0xff]
        %v3216 = vld [vmem:[%s5 + $0xc0] sm:$0xff]
        %v3217 = vld [vmem:[%s5 + $0xc8] sm:$0xff]
        %v3218 = vld [vmem:[%s5 + $0xd0] sm:$0xff]
        %v3219 = vld [vmem:[%s5 + $0xd8] sm:$0xff]
        %v3220 = vld [vmem:[%s5 + $0xe0] sm:$0xff]
        %v3221 = vld [vmem:[%s5 + $0xe8] sm:$0xff]
        %v3222 = vld [vmem:[%s5 + $0xf0] sm:$0xff]
        %v3223 = vld [vmem:[%s5 + $0xf8] sm:$0xff]
        %v3224 = vld [vmem:[%s5 + $0x100] sm:$0xff]
        %v3225 = vld [vmem:[%s5 + $0x108] sm:$0xff]
        %v3226 = vld [vmem:[%s5 + $0x110] sm:$0xff]
        %v3227 = vld [vmem:[%s5 + $0x118] sm:$0xff]
        %v3228 = vld [vmem:[%s5 + $0x120] sm:$0xff]
        %v3229 = vld [vmem:[%s5 + $0x128] sm:$0xff]
        %v3230 = vld [vmem:[%s5 + $0x130] sm:$0xff]
        %v3231 = vld [vmem:[%s5 + $0x138] sm:$0xff]
        %v3232 = vld [vmem:[%s6] sm:$0x1]
        %v3234 = vlaneseq
        %v3235 = vshrl.u32 %v3234, 7
        %v3236 = vsub.s32 0, %v3235
        %v3237 = vrot.slane %v3191, %v3236
        %v3238 = vlaneseq
        %v3239 = vshrl.u32 %v3238, 7
        %v3240 = vsub.s32 1, %v3239
        %v3241 = vrot.slane %v3191, %v3240
        %v3242 = vlaneseq
        %v3243 = vshrl.u32 %v3242, 7
        %v3244 = vsub.s32 2, %v3243
        %v3245 = vrot.slane %v3191, %v3244
        %vm3248 = vcmask 523264
        %v3249 = vsel %vm3248, %v3245, 0
        %3251 = vmatprep.subr.mxu0 0.0
        %3252 = vmatpush1.msra.mxu0 %v3192
        %3253 = vmatprep.subr.mxu0 0.0
        %3254 = vmatpush1.msra.mxu0 %v3193
        %3255 = vmatprep.subr.mxu0 0.0
        %3256 = vmatpush1.msra.mxu0 %v3194
        %3257 = vmatprep.subr.mxu0 0.0
        %3258 = vmatpush1.msra.mxu0 %v3195
        %3259 = vmatprep.subr.mxu0 0.0
        %3260 = vmatpush1.msra.mxu0 %v3196
        %3261 = vmatprep.subr.mxu0 0.0
        %3262 = vmatpush1.msra.mxu0 %v3197
        %3263 = vmatprep.subr.mxu0 0.0
        %3264 = vmatpush1.msra.mxu0 %v3198
        %3265 = vmatprep.subr.mxu0 0.0
        %3266 = vmatpush1.msra.mxu0 %v3199
        %3267 = vmatprep.subr.mxu0 0.0
        %3268 = vmatpush1.msra.mxu0 %v3200
        %3269 = vmatprep.subr.mxu0 0.0
        %3270 = vmatpush1.msra.mxu0 %v3201
        %3271 = vmatprep.subr.mxu0 0.0
        %3272 = vmatpush1.msra.mxu0 %v3202
        %3273 = vmatprep.subr.mxu0 0.0
        %3274 = vmatpush1.msra.mxu0 %v3203
        %3275 = vmatprep.subr.mxu0 0.0
        %3276 = vmatpush1.msra.mxu0 %v3204
        %3277 = vmatprep.subr.mxu0 0.0
        %3278 = vmatpush1.msra.mxu0 %v3205
        %3279 = vmatprep.subr.mxu0 0.0
        %3280 = vmatpush1.msra.mxu0 %v3206
        %3281 = vmatprep.subr.mxu0 0.0
        %3282 = vmatpush1.msra.mxu0 %v3207
        %3283 = vmatprep.subr.mxu0 0.0
        %3284 = vmatpush1.msra.mxu0 %v3208
        %3285 = vmatprep.subr.mxu0 0.0
        %3286 = vmatpush1.msra.mxu0 %v3209
        %3287 = vmatprep.subr.mxu0 0.0
        %3288 = vmatpush1.msra.mxu0 %v3210
        %3289 = vmatprep.subr.mxu0 0.0
        %3290 = vmatpush1.msra.mxu0 %v3211
        %3291 = vmatprep.subr.mxu0 0.0
        %3292 = vmatpush1.msra.mxu0 %v3212
        %3293 = vmatprep.subr.mxu0 0.0
        %3294 = vmatpush1.msra.mxu0 %v3213
        %3295 = vmatprep.subr.mxu0 0.0
        %3296 = vmatpush1.msra.mxu0 %v3214
        %3297 = vmatprep.subr.mxu0 0.0
        %3298 = vmatpush1.msra.mxu0 %v3215
        %3299 = vmatprep.subr.mxu0 0.0
        %3300 = vmatpush1.msra.mxu0 %v3216
        %3301 = vmatprep.subr.mxu0 0.0
        %3302 = vmatpush1.msra.mxu0 %v3217
        %3303 = vmatprep.subr.mxu0 0.0
        %3304 = vmatpush1.msra.mxu0 %v3218
        %3305 = vmatprep.subr.mxu0 0.0
        %3306 = vmatpush1.msra.mxu0 %v3219
        %3307 = vmatprep.subr.mxu0 0.0
        %3308 = vmatpush1.msra.mxu0 %v3220
        %3309 = vmatprep.subr.mxu0 0.0
        %3310 = vmatpush1.msra.mxu0 %v3221
        %3311 = vmatprep.subr.mxu0 0.0
        %3312 = vmatpush1.msra.mxu0 %v3222
        %3313 = vmatprep.subr.mxu0 0.0
        %3314 = vmatpush1.msra.mxu0 %v3223
        %3315 = vmatprep.mubr.f32.mxu0 %v3241
        %3316 = vmatmul.mubr.f32.gmra.mrb[0].mxu0 %v3237
        %v3317 = vpop.f32.mrb[0].mxu0
        %v3318 = vadd.f32 %v3232, %v3317
        %v3319 = vpop.f32.mrb[0].mxu0
        %3320 = vdwg.mxu0
        %3321 = vmatprep.subr.mxu0 0.0
        %3322 = vmatpush1.msra.mxu0 %v3224
        %3323 = vmatprep.subr.mxu0 0.0
        %3324 = vmatpush1.msra.mxu0 %v3225
        %3325 = vmatprep.subr.mxu0 0.0
        %3326 = vmatpush1.msra.mxu0 %v3226
        %3327 = vmatprep.subr.mxu0 0.0
        %3328 = vmatpush1.msra.mxu0 %v3227
        %3329 = vmatprep.subr.mxu0 0.0
        %3330 = vmatpush1.msra.mxu0 %v3228
        %3331 = vmatprep.subr.mxu0 0.0
        %3332 = vmatpush1.msra.mxu0 %v3229
        %3333 = vmatprep.subr.mxu0 0.0
        %3334 = vmatpush1.msra.mxu0 %v3230
        %3335 = vmatprep.subr.mxu0 0.0
        %3336 = vmatpush1.msra.mxu0 %v3231
        %3337 = vmatprep.subr.mxu0 0.0
        %3338 = vmatpush1.msra.mxu0 0.0
        %3339 = vmatprep.subr.mxu0 0.0
        %3340 = vmatpush1.msra.mxu0 0.0
        %3341 = vmatprep.subr.mxu0 0.0
        %3342 = vmatpush1.msra.mxu0 0.0
        %3343 = vmatprep.subr.mxu0 0.0
        %3344 = vmatpush1.msra.mxu0 0.0
        %3345 = vmatprep.subr.mxu0 0.0
        %3346 = vmatpush1.msra.mxu0 0.0
        %3347 = vmatprep.subr.mxu0 0.0
        %3348 = vmatpush1.msra.mxu0 0.0
        %3349 = vmatprep.subr.mxu0 0.0
        %3350 = vmatpush1.msra.mxu0 0.0
        %3351 = vmatprep.subr.mxu0 0.0
        %3352 = vmatpush1.msra.mxu0 0.0
        %3353 = vmatprep.subr.mxu0 0.0
        %3354 = vmatpush1.msra.mxu0 0.0
        %3355 = vmatprep.subr.mxu0 0.0
        %3356 = vmatpush1.msra.mxu0 0.0
        %3357 = vmatprep.subr.mxu0 0.0
        %3358 = vmatpush1.msra.mxu0 0.0
        %3359 = vmatprep.subr.mxu0 0.0
        %3360 = vmatpush1.msra.mxu0 0.0
        %3361 = vmatprep.subr.mxu0 0.0
        %3362 = vmatpush1.msra.mxu0 0.0
        %3363 = vmatprep.subr.mxu0 0.0
        %3364 = vmatpush1.msra.mxu0 0.0
        %3365 = vmatprep.subr.mxu0 0.0
        %3366 = vmatpush1.msra.mxu0 0.0
        %3367 = vmatprep.subr.mxu0 0.0
        %3368 = vmatpush1.msra.mxu0 0.0
        %3369 = vmatprep.subr.mxu0 0.0
        %3370 = vmatpush1.msra.mxu0 0.0
        %3371 = vmatprep.subr.mxu0 0.0
        %3372 = vmatpush1.msra.mxu0 0.0
        %3373 = vmatprep.subr.mxu0 0.0
        %3374 = vmatpush1.msra.mxu0 0.0
        %3375 = vmatprep.subr.mxu0 0.0
        %3376 = vmatpush1.msra.mxu0 0.0
        %3377 = vmatprep.subr.mxu0 0.0
        %3378 = vmatpush1.msra.mxu0 0.0
        %3379 = vmatprep.subr.mxu0 0.0
        %3380 = vmatpush1.msra.mxu0 0.0
        %3381 = vmatprep.subr.mxu0 0.0
        %3382 = vmatpush1.msra.mxu0 0.0
        %3383 = vmatprep.subr.mxu0 0.0
        %3384 = vmatpush1.msra.mxu0 0.0
        %3385 = vmatprep.mubr.f32.mxu0 0.0
        %3386 = vmatmul.mubr.f32.gmra.mrb[0].mxu0 %v3249
        %v3387 = vpop.f32.mrb[0].mxu0
        %v3388 = vadd.f32 %v3318, %v3387
        %v3389 = vpop.f32.mrb[0].mxu0
        %3390 = vdwg.mxu0
        %v3391 = vmax.f32 %v3388, 0.0
        %v3392 = vld [vmem:[%s7] sm:$0xff]
        %v3393 = vld [vmem:[%s7 + $0x8] sm:$0xff]
        %v3394 = vld [vmem:[%s7 + $0x10] sm:$0xff]
        %v3395 = vld [vmem:[%s7 + $0x18] sm:$0xff]
        %v3396 = vld [vmem:[%s7 + $0x20] sm:$0xff]
        %v3397 = vld [vmem:[%s7 + $0x28] sm:$0xff]
        %v3398 = vld [vmem:[%s7 + $0x30] sm:$0x3]
        %v3399 = vld [vmem:[%s8] sm:$0x1]
        %vm3400 = vcmask 408576
        %v3402 = vsel %vm3400, %v3391, 0
        %v3405 = vsel %vm2794, %v3398, 0
        %3407 = vmatprep.subr.mxu0 0.0
        %3408 = vmatpush1.msra.mxu0 %v3392
        %3409 = vmatprep.subr.mxu0 0.0
        %3410 = vmatpush1.msra.mxu0 %v3393
        %3411 = vmatprep.subr.mxu0 0.0
        %3412 = vmatpush1.msra.mxu0 %v3394
        %3413 = vmatprep.subr.mxu0 0.0
        %3414 = vmatpush1.msra.mxu0 %v3395
        %3415 = vmatprep.subr.mxu0 0.0
        %3416 = vmatpush1.msra.mxu0 %v3396
        %3417 = vmatprep.subr.mxu0 0.0
        %3418 = vmatpush1.msra.mxu0 %v3397
        %3419 = vmatprep.subr.mxu0 0.0
        %3420 = vmatpush1.msra.mxu0 %v3405
        %3421 = vmatprep.subr.mxu0 0.0
        %3422 = vmatpush1.msra.mxu0 0.0
        %3423 = vmatprep.subr.mxu0 0.0
        %3424 = vmatpush1.msra.mxu0 0.0
        %3425 = vmatprep.subr.mxu0 0.0
        %3426 = vmatpush1.msra.mxu0 0.0
        %3427 = vmatprep.subr.mxu0 0.0
        %3428 = vmatpush1.msra.mxu0 0.0
        %3429 = vmatprep.subr.mxu0 0.0
        %3430 = vmatpush1.msra.mxu0 0.0
        %3431 = vmatprep.subr.mxu0 0.0
        %3432 = vmatpush1.msra.mxu0 0.0
        %3433 = vmatprep.subr.mxu0 0.0
        %3434 = vmatpush1.msra.mxu0 0.0
        %3435 = vmatprep.subr.mxu0 0.0
        %3436 = vmatpush1.msra.mxu0 0.0
        %3437 = vmatprep.subr.mxu0 0.0
        %3438 = vmatpush1.msra.mxu0 0.0
        %3439 = vmatprep.subr.mxu0 0.0
        %3440 = vmatpush1.msra.mxu0 0.0
        %3441 = vmatprep.subr.mxu0 0.0
        %3442 = vmatpush1.msra.mxu0 0.0
        %3443 = vmatprep.subr.mxu0 0.0
        %3444 = vmatpush1.msra.mxu0 0.0
        %3445 = vmatprep.subr.mxu0 0.0
        %3446 = vmatpush1.msra.mxu0 0.0
        %3447 = vmatprep.subr.mxu0 0.0
        %3448 = vmatpush1.msra.mxu0 0.0
        %3449 = vmatprep.subr.mxu0 0.0
        %3450 = vmatpush1.msra.mxu0 0.0
        %3451 = vmatprep.subr.mxu0 0.0
        %3452 = vmatpush1.msra.mxu0 0.0
        %3453 = vmatprep.subr.mxu0 0.0
        %3454 = vmatpush1.msra.mxu0 0.0
        %3455 = vmatprep.subr.mxu0 0.0
        %3456 = vmatpush1.msra.mxu0 0.0
        %3457 = vmatprep.subr.mxu0 0.0
        %3458 = vmatpush1.msra.mxu0 0.0
        %3459 = vmatprep.subr.mxu0 0.0
        %3460 = vmatpush1.msra.mxu0 0.0
        %3461 = vmatprep.subr.mxu0 0.0
        %3462 = vmatpush1.msra.mxu0 0.0
        %3463 = vmatprep.subr.mxu0 0.0
        %3464 = vmatpush1.msra.mxu0 0.0
        %3465 = vmatprep.subr.mxu0 0.0
        %3466 = vmatpush1.msra.mxu0 0.0
        %3467 = vmatprep.subr.mxu0 0.0
        %3468 = vmatpush1.msra.mxu0 0.0
        %3469 = vmatprep.subr.mxu0 0.0
        %3470 = vmatpush1.msra.mxu0 0.0
        %3471 = vmatprep.mubr.f32.mxu0 0.0
        %3472 = vmatmul.mubr.f32.gmra.mrb[0].mxu0 %v3402
        %v3473 = vpop.f32.mrb[0].mxu0
        %v3474 = vadd.f32 %v3399, %v3473
        %v3475 = vpop.f32.mrb[0].mxu0
        %3476 = vdwg.mxu0
        %vm3477 = vcmask 73728
        %v3478 = vsel %vm3477, %v3474, -inf
        %3479 = vmax.xlane.f32.xlu0 %v3478
        %v3480 = vpop.xlane.xlu0 %3479
        %v3481 = vsub.f32 %v3474, %v3480
        %v3482 = vmul.f32 %v3481, 1.442695
        %v3483 = vpow.pop %v3482
        %v3484 = vsel %vm3477, %v3483, 0.0
        %3485 = vadd.xlane.f32.xlu0 %v3484
        %v3486 = vpop.xlane.xlu0 %3485
        %v3487 = vlog2.pop %v3486
        %v3488 = vmul.f32 %v3487, 0.6931472
        %v3489 = vadd.f32 %v3480, %v3488
        %v3490 = vsub.f32 %v3474, %v3489
        %3491 = vst.msk [vmem:[%s324] sm:$0x1] %vm3477, %v3490
        %s3492 = sand.u32 %s225, 1
        %s3493 = scalar_lea.sflag [#allocation6], %s3492
        %s3494 = sand.u32 %s225, 1
        %s3495 = scalar_lea.vmem [#allocation5], %s3494
        // Predicated region
        $region57: #{mnist_net_forward.1} parent=55 // pred_check
          %p3496 = pneg %p235
        $region58: #{mnist_net_forward.1} parent=55 // pred_check_branch
          %3498 = sbr.rel (%p3496) target = $region60
        $region59: #{mnist_net_forward.1} parent=55 // pred_region
          %s3500 = ssub.s32 16, 16
          %3501 = vsyncadd %s3493, %s3500
          %s3502 = smul.addr %s23, 16
          %s3503 = scalar_lea.hbm %s9, %s3502
          %s3505 = sshll.u32 %s3495, 4
          %s3506 = int_to_ptr.vmem [resolvable:$true] %s3505
          %3508 = dma.vmem_to_hbm [thread:$0]  %s3506, 16, %s3503, %s3493
        $region60: #{mnist_net_forward.1} parent=55 // pred_fallthru
          _
      $region56: #{mnist_net_forward.1} parent=5 // pred_fallthru
        _
      %p3509 = scmp.le.s32.totalorder 2, %s18
      // Predicated region
      $region61: #{mnist_net_forward.1} parent=5 // pred_check
        %p3510 = pneg %p3509
      $region62: #{mnist_net_forward.1} parent=5 // pred_check_branch
        %3512 = sbr.rel (%p3510) target = $region64
      $region63: #{mnist_net_forward.1} parent=5 // pred_region
        %s3513 = ssub.s32 %s18, 2
        // Predicated region
        $region65: #{mnist_net_forward.1} parent=63 // pred_check
          %p3514 = pneg %p241
        $region66: #{mnist_net_forward.1} parent=63 // pred_check_branch
          %3516 = sbr.rel (%p3514) target = $region68
        $region67: #{mnist_net_forward.1} parent=63 // pred_region
          %s3517 = sand.u32 %s226, 1
          %s3518 = scalar_lea.sflag [#allocation6], %s3517
          %s3519 = sand.u32 %s226, 1
          %s3520 = scalar_lea.vmem [#allocation5], %s3519
          %3521 = dma.done %s3518, 16
        $region68: #{mnist_net_forward.1} parent=63 // pred_fallthru
          _
      $region64: #{mnist_net_forward.1} parent=5 // pred_fallthru
        _
    $region6: #{mnist_net_forward.1} parent=1 // loop_footer
      %s22 = sadd.s32 1, %s18
    $region7: #{mnist_net_forward.1} parent=1 // loop_footer_branch
      %17 = sbr.rel target = $region3
    $region8: #{mnist_net_forward.1} parent=1 // loop_exit
      _
    %3522 = vsyncpa [#allocation6], 1
    %s3523 = scalar_lea.sflag [#allocation6], 1
    %3524 = vsyncpa %s3523, 1

</llo_original>
